<compile_context>
chip_gen: v7x
topology: tpu7x:2x2x1
jax: 0.10.0
libtpu: 0.0.40
codegen_flags: <defaults>
</compile_context>

<pallas_src>
import jax
import jax.numpy as jnp
from jax.experimental import pallas as pl
from jax.experimental.pallas import tpu as pltpu

CHANNEL = 256            # fixed by the PyTorch module (Channel_Attention(256))
REDUCTION = 16           # channel // 16 bottleneck
_HIGHEST = jax.lax.Precision.HIGHEST


# --------------------------------------------------------------------------- tiling
def _vmem_capacity_bytes():
    """Physical VMEM per TensorCore; conservative fallback if the query fails."""
    try:
        info = pltpu.get_tpu_info()
        cap = getattr(info, "vmem_capacity_bytes", None)
        if cap:
            return int(cap)
    except Exception:
        pass
    return 64 * 1024 * 1024          # v7x per-TensorCore VMEM (smallest of v5e/v6e/v7x)


def _working_set_budget(capacity):
    # Leave headroom below physical VMEM: ~48 MiB on v7x (64 MiB/TC),
    # 64 MiB on the 128 MiB chips (v5e/v6e).
    return min((capacity * 3) // 4, 64 * 1024 * 1024)


def _pick_b_tile(n, per_block_io, working_per_block, budget):
    """Batch tile: as big as the VMEM budget allows, but prefer >= 4 grid steps
    (>= 2 per v7x TensorCore) as long as each block keeps >= ~1 MiB of I/O so the
    ~0.35 us per-grid-step overhead stays negligible."""
    cap = max(1, budget // max(1, working_per_block))
    b = min(n, cap)
    target = -(-n // 4)                                   # cdiv(n, 4)
    if target < b:
        min_b = max(1, (1 << 20) // max(1, per_block_io))
        b = max(target, min(min_b, b))
    return max(1, b)


# --------------------------------------------------------------------------- kernels
def _make_fused_kernel(hw, c, b_tile):
    inv_hw = 1.0 / float(hw)
    inv_c = 1.0 / float(c)

    def kernel(x_ref, w1t_ref, w2t_ref, spw_ref, spb_ref, o_ref):
        # x block: (B, C, HW) -- HW is the full extent (masked stores if HW % 128 != 0).
        x = x_ref[...].astype(jnp.float32)

        # ---------------- channel attention ----------------
        avg_c = jnp.sum(x, axis=-1) * inv_hw                # (B, C)
        max_c = jnp.max(x, axis=-1)                         # (B, C)
        # Fused shared MLP: one matmul pair for both (avg, max) branches.
        stacked = jnp.concatenate([avg_c, max_c], axis=0)   # (2B, C)
        hid = jnp.maximum(
            jnp.dot(stacked, w1t_ref[...],
                    preferred_element_type=jnp.float32, precision=_HIGHEST), 0.0)
        yy = jnp.dot(hid, w2t_ref[...],
                     preferred_element_type=jnp.float32, precision=_HIGHEST)
        y = jax.nn.sigmoid(yy[:b_tile] + yy[b_tile:])       # (B, C)

        ca = x * y[:, :, None]                              # (B, C, HW)

        # ------------- spatial attention (reuse ca; VPU/XLU channel reduces) -------------
        avg_s = jnp.sum(ca, axis=1, keepdims=True) * inv_c  # (B, 1, HW)
        max_s = jnp.max(ca, axis=1, keepdims=True)          # (B, 1, HW)
        # 1x1 conv with 2 input channels, 1 output channel (with bias) == weighted sum.
        mask = jax.nn.sigmoid(spw_ref[0] * avg_s + spw_ref[1] * max_s + spb_ref[0])

        # ---------------- residual + ReLU ----------------
        o_ref[...] = jnp.maximum(x + ca * mask, 0.0).astype(o_ref.dtype)

    return kernel


def _make_stats_kernel(hw, chunk):
    """Pass 1 of the HW-split path: accumulate per-(sample, channel) sum & max."""
    ragged = (hw % chunk) != 0

    def kernel(x_ref, sum_ref, max_ref):
        h = pl.program_id(1)
        x = x_ref[...].astype(jnp.float32)                  # (B, C, chunk)
        if ragged:
            # Only the final HW chunk has out-of-bounds lanes; mask them out of the
            # reductions (this is the fallback path, chunk-local cost is acceptable).
            lane = jax.lax.broadcasted_iota(jnp.int32, x.shape, 2) + h * chunk
            valid = lane < hw
            s = jnp.sum(jnp.where(valid, x, 0.0), axis=-1)          # (B, C)
            m = jnp.max(jnp.where(valid, x, -jnp.inf), axis=-1)     # (B, C)
        else:
            s = jnp.sum(x, axis=-1)
            m = jnp.max(x, axis=-1)

        @pl.when(h == 0)
        def _():
            sum_ref[...] = s[:, None, :]
            max_ref[...] = m[:, None, :]

        @pl.when(h > 0)
        def _():
            sum_ref[...] = sum_ref[...] + s[:, None, :]
            max_ref[...] = jnp.maximum(max_ref[...], m[:, None, :])

    return kernel


def _make_apply_kernel(c):
    """Pass 2 of the HW-split path: apply channel + spatial attention per HW chunk."""
    inv_c = 1.0 / float(c)

    def kernel(x_ref, y_ref, spw_ref, spb_ref, o_ref):
        x = x_ref[...].astype(jnp.float32)                  # (B, C, chunk)
        y = jnp.swapaxes(y_ref[...], 1, 2)                  # (B, 1, C) -> (B, C, 1)
        ca = x * y
        avg_s = jnp.sum(ca, axis=1, keepdims=True) * inv_c
        max_s = jnp.max(ca, axis=1, keepdims=True)
        mask = jax.nn.sigmoid(spw_ref[0] * avg_s + spw_ref[1] * max_s + spb_ref[0])
        o_ref[...] = jnp.maximum(x + ca * mask, 0.0).astype(o_ref.dtype)

    return kernel


# --------------------------------------------------------------------------- drivers
def _cbam_fused(xf, w1t, w2t, spw, spb, budget, capacity,
                per_sample_io, working_per_sample):
    N, C, hw = xf.shape
    b_tile = _pick_b_tile(N, per_sample_io, working_per_sample, budget)
    grid = (pl.cdiv(N, b_tile),)
    weight_bytes = 2 * (w1t.size + w2t.size) * w1t.dtype.itemsize
    vmem_limit = int(min(capacity,
                         max(32 * 1024 * 1024,
                             b_tile * working_per_sample + weight_bytes + (4 << 20))))

    return pl.pallas_call(
        _make_fused_kernel(hw, C, b_tile),
        out_shape=jax.ShapeDtypeStruct((N, C, hw), xf.dtype),
        grid=grid,
        in_specs=[
            pl.BlockSpec((b_tile, C, hw), lambda n: (n, 0, 0)),       # x batch tile
            pl.BlockSpec((C, C // REDUCTION), lambda n: (0, 0)),      # fc1 weight (transposed)
            pl.BlockSpec((C // REDUCTION, C), lambda n: (0, 0)),      # fc2 weight (transposed)
            pl.BlockSpec(memory_space=pltpu.MemorySpace.SMEM),        # spatial conv weights (2,)
            pl.BlockSpec(memory_space=pltpu.MemorySpace.SMEM),        # spatial conv bias (1,)
        ],
        out_specs=pl.BlockSpec((b_tile, C, hw), lambda n: (n, 0, 0)),
        compiler_params=pltpu.CompilerParams(
            dimension_semantics=("parallel",),
            vmem_limit_bytes=vmem_limit,
        ),
    )(xf, w1t, w2t, spw, spb)


def _cbam_split(xf, w1t, w2t, spw, spb, budget, capacity, max_hw_chunk=None):
    """Two-pass path for per-sample blocks that exceed the VMEM budget (v7x large HW)."""
    N, C, hw = xf.shape
    itemsize = xf.dtype.itemsize

    def chunk_working(chunk):          # in/out double-buffers + ~3 f32 chunk temps
        return 4 * C * chunk * itemsize + 3 * C * chunk * 4

    # Largest 128-multiple HW chunk whose single-sample working set fits the budget.
    chunk = 128 * max(1, budget // chunk_working(128))
    if max_hw_chunk is not None:
        chunk = min(chunk, max_hw_chunk)
    if chunk >= hw:
        chunk = hw                      # full extent: exempt from 128-divisibility
    n_hw = pl.cdiv(hw, chunk)

    per_block_io = C * chunk * itemsize
    working_per_block = chunk_working(chunk)
    b_tile = _pick_b_tile(N, per_block_io, working_per_block, budget)
    n_b = pl.cdiv(N, b_tile)
    vmem_limit = int(min(capacity,
                         max(32 * 1024 * 1024,
                             b_tile * working_per_block + (4 << 20))))

    # ---- pass 1: per-(sample, channel) sum & max over HW, accumulated over chunks.
    sums, maxs = pl.pallas_call(
        _make_stats_kernel(hw, chunk),
        out_shape=(jax.ShapeDtypeStruct((N, 1, C), jnp.float32),
                   jax.ShapeDtypeStruct((N, 1, C), jnp.float32)),
        grid=(n_b, n_hw),
        in_specs=[pl.BlockSpec((b_tile, C, chunk), lambda b, h: (b, 0, h))],
        out_specs=(pl.BlockSpec((b_tile, 1, C), lambda b, h: (b, 0, 0)),
                   pl.BlockSpec((b_tile, 1, C), lambda b, h: (b, 0, 0))),
        compiler_params=pltpu.CompilerParams(
            dimension_semantics=("parallel", "arbitrary"),
            vmem_limit_bytes=vmem_limit,
        ),
    )(xf)

    # ---- tiny shared MLP on (N, C) stats: plain JAX, negligible HBM traffic.
    avg_c = sums[:, 0, :] * (1.0 / float(hw))
    max_c = maxs[:, 0, :]
    stacked = jnp.concatenate([avg_c, max_c], axis=0)                 # (2N, C)
    hid = jnp.maximum(jnp.dot(stacked, w1t, precision=_HIGHEST), 0.0)
    yy = jnp.dot(hid, w2t, precision=_HIGHEST)
    y = jax.nn.sigmoid(yy[:N] + yy[N:]).reshape(N, 1, C)              # (N, 1, C) f32

    # ---- pass 2: apply channel + spatial attention per HW chunk.
    return pl.pallas_call(
        _make_apply_kernel(C),
        out_shape=jax.ShapeDtypeStruct((N, C, hw), xf.dtype),
        grid=(n_b, n_hw),
        in_specs=[
            pl.BlockSpec((b_tile, C, chunk), lambda b, h: (b, 0, h)),
            pl.BlockSpec((b_tile, 1, C), lambda b, h: (b, 0, 0)),
            pl.BlockSpec(memory_space=pltpu.MemorySpace.SMEM),
            pl.BlockSpec(memory_space=pltpu.MemorySpace.SMEM),
        ],
        out_specs=pl.BlockSpec((b_tile, C, chunk), lambda b, h: (b, 0, h)),
        compiler_params=pltpu.CompilerParams(
            dimension_semantics=("parallel", "parallel"),
            vmem_limit_bytes=vmem_limit,
        ),
    )(xf, y, spw, spb)


def cbam(x, w1, w2, spw, spb, *, force_split=False, _max_hw_chunk=None):
    """x: (N, 256, H, W); w1: (16, 256); w2: (256, 16); spw: (2,); spb: (1,)."""
    N, C, H, W = x.shape
    assert C == CHANNEL
    hw = H * W
    xf = x.reshape(N, C, hw)                      # metadata-only reshape, no HBM pass

    capacity = _vmem_capacity_bytes()
    budget = _working_set_budget(capacity)

    itemsize = x.dtype.itemsize
    per_sample_io = C * hw * itemsize
    # 2x in-double-buffer + 2x out-double-buffer (I/O dtype) + ~3 full-block f32 temps.
    working_per_sample = 4 * per_sample_io + 3 * C * hw * 4

    w1t = jnp.transpose(w1).astype(jnp.float32)   # (C, C//16)
    w2t = jnp.transpose(w2).astype(jnp.float32)   # (C//16, C)
    spw = spw.astype(jnp.float32)
    spb = spb.astype(jnp.float32)

    if force_split or working_per_sample > budget:
        out = _cbam_split(xf, w1t, w2t, spw, spb, budget, capacity,
                          max_hw_chunk=_max_hw_chunk)
    else:
        out = _cbam_fused(xf, w1t, w2t, spw, spb, budget, capacity,
                          per_sample_io, working_per_sample)
    return out.reshape(N, C, H, W)


# --------------------------------------------------------------------------- reference
def cbam_reference(x, w1, w2, spw, spb):
    """Pure-JAX f32 reference of the PyTorch forward, for validation."""
    xf = x.astype(jnp.float32)
    w1 = w1.astype(jnp.float32)
    w2 = w2.astype(jnp.float32)
    avg_c = jnp.mean(xf, axis=(2, 3), keepdims=True)                  # (N,C,1,1)
    max_c = jnp.max(xf, axis=(2, 3), keepdims=True)

    def fc(v):  # v: (N,C,1,1)
        h = jnp.einsum('rc,ncij->nrij', w1, v, precision=_HIGHEST)
        h = jnp.maximum(h, 0.0)
        return jnp.einsum('cr,nrij->ncij', w2, h, precision=_HIGHEST)

    y = jax.nn.sigmoid(fc(avg_c) + fc(max_c))
    ca = xf * y
    avg_s = jnp.mean(ca, axis=1, keepdims=True)
    max_s = jnp.max(ca, axis=1, keepdims=True)
    mask = jax.nn.sigmoid(spw[0] * avg_s + spw[1] * max_s + spb[0])
    return jnp.maximum(xf + ca * mask, 0.0)


if __name__ == "__main__":
    key = jax.random.PRNGKey(0)
    k_x1, k_x2, k_x3, k_w1, k_w2, k_sw, k_sb = jax.random.split(key, 7)

    C = CHANNEL
    # Parameter shapes from the module's __init__ (1x1 kernels squeezed):
    #   Conv2d(256, 16, 1, bias=False) -> (16, 256); Conv2d(16, 256, 1, bias=False) -> (256, 16)
    #   Conv2d(2, 1, kernel_size=1)    -> weight (2,), bias (1,)
    w1 = jax.random.normal(k_w1, (C // REDUCTION, C), dtype=jnp.float32) * 0.05
    w2 = jax.random.normal(k_w2, (C, C // REDUCTION), dtype=jnp.float32) * 0.05
    spw = jax.random.normal(k_sw, (2,), dtype=jnp.float32) * 0.5
    spb = jax.random.normal(k_sb, (1,), dtype=jnp.float32) * 0.1

    def check(out, ref, atol, rtol, name):
        assert out.shape == ref.shape, name
        assert jnp.allclose(out.astype(jnp.float32), ref, atol=atol, rtol=rtol), \
            f"mismatch vs reference: {name}"

    # 1) Aligned spatial size (16x16 -> hw=256): fused single-pass path.
    x1 = jax.random.normal(k_x1, (2, C, 16, 16), dtype=jnp.float32)
    out1 = jax.block_until_ready(cbam(x1, w1, w2, spw, spb))
    check(out1, cbam_reference(x1, w1, w2, spw, spb), 2e-5, 2e-5, "f32 16x16")

    # 2) Non-128-multiple spatial size (14x14 -> hw=196): full-extent last dim,
    #    no wrapper pad / output slice, masked stores.
    x2 = jax.random.normal(k_x2, (2, C, 14, 14), dtype=jnp.float32)
    out2 = jax.block_until_ready(cbam(x2, w1, w2, spw, spb))
    ref2 = cbam_reference(x2, w1, w2, spw, spb)
    check(out2, ref2, 2e-5, 2e-5, "f32 14x14")

    # 3) Batch not divisible by the tile: cdiv grid with a ragged final batch block.
    x3 = jax.random.normal(k_x3, (5, C, 16, 16), dtype=jnp.float32)
    out3 = jax.block_until_ready(cbam(x3, w1, w2, spw, spb))
    check(out3, cbam_reference(x3, w1, w2, spw, spb), 2e-5, 2e-5, "f32 ragged batch")

    # 4) Two-pass HW-chunked path (v7x large-spatial fallback), forced at small shape
    #    with a 128-lane chunk so the ragged-chunk masking is exercised.
    out4 = jax.block_until_ready(
        cbam(x2, w1, w2, spw, spb, force_split=True, _max_hw_chunk=128))
    check(out4, ref2, 2e-5, 2e-5, "split 14x14")

    # 5) bf16 I/O (f32 accumulation in-kernel), halves HBM traffic on all generations.
    x5 = x1.astype(jnp.bfloat16)
    out5 = jax.block_until_ready(cbam(x5, w1, w2, spw, spb))
    check(out5, cbam_reference(x5, w1, w2, spw, spb), 5e-2, 5e-2, "bf16 16x16")

    print("KERNEL_OK")
</pallas_src>

<mosaic_0001>
module attributes {stable_mosaic.version = 11 : i64} {
  func.func @kernel(%arg0: i32, %arg1: memref<2x256x256xf32, #tpu.memory_space<vmem>>, %arg2: memref<256x16xf32, #tpu.memory_space<vmem>>, %arg3: memref<16x256xf32, #tpu.memory_space<vmem>>, %arg4: memref<2xf32, #tpu.memory_space<smem>>, %arg5: memref<1xf32, #tpu.memory_space<smem>>, %arg6: memref<2x256x256xf32, #tpu.memory_space<vmem>>) attributes {dimension_semantics = [#tpu.dimension_semantics<parallel>], iteration_bounds = array<i64: 1>, scalar_prefetch = 0 : i64, scratch_operands = 0 : i64, tpu.core_type = #tpu.core_type<tc>, window_params = [{transform_indices = @transform_0, window_bounds = array<i64: 2, 256, 256>}, {pipeline_mode = #tpu.pipeline_mode<synchronous>, transform_indices = @transform_1, window_bounds = array<i64: 256, 16>}, {pipeline_mode = #tpu.pipeline_mode<synchronous>, transform_indices = @transform_2, window_bounds = array<i64: 16, 256>}, {transform_indices = @transform_3, window_bounds = array<i64: 2>}, {transform_indices = @transform_4, window_bounds = array<i64: 1>}, {transform_indices = @transform_5, window_bounds = array<i64: 2, 256, 256>}]} {
    %c0 = arith.constant 0 : index
    %c0_0 = arith.constant 0 : index
    %c0_1 = arith.constant 0 : index
    %0 = vector.load %arg1[%c0, %c0_0, %c0_1] : memref<2x256x256xf32, #tpu.memory_space<vmem>>, vector<2x256x256xf32>
    %cst = arith.constant dense<0.000000e+00> : vector<2x256xf32>
    %1 = vector.multi_reduction <add>, %0, %cst [2] : vector<2x256x256xf32> to vector<2x256xf32>
    %cst_2 = arith.constant 3.906250e-03 : f32
    %2 = vector.broadcast %cst_2 : f32 to vector<2x256xf32>
    %3 = arith.mulf %1, %2 : vector<2x256xf32>
    %cst_3 = arith.constant dense<0xFF800000> : vector<2x256xf32>
    %4 = vector.multi_reduction <maximumf>, %0, %cst_3 [2] : vector<2x256x256xf32> to vector<2x256xf32>
    %5 = tpu.concatenate %3, %4 in 0 : vector<2x256xf32>, vector<2x256xf32> -> vector<4x256xf32>
    %c0_4 = arith.constant 0 : index
    %c0_5 = arith.constant 0 : index
    %6 = vector.load %arg2[%c0_4, %c0_5] : memref<256x16xf32, #tpu.memory_space<vmem>>, vector<256x16xf32>
    %cst_6 = arith.constant dense<0.000000e+00> : vector<4x16xf32>
    %7 = tpu.matmul %5, %6, %cst_6 {dimension_numbers = #tpu.dot_dimension_numbers<[1], [0], [0], [1], [0, 0, 1, 1], [], []>, precision = #tpu.contract_precision<fp32>} : vector<4x256xf32>, vector<256x16xf32>, vector<4x16xf32> -> vector<4x16xf32>
    %cst_7 = arith.constant 0.000000e+00 : f32
    %8 = vector.broadcast %cst_7 : f32 to vector<4x16xf32>
    %9 = arith.maximumf %7, %8 : vector<4x16xf32>
    %c0_8 = arith.constant 0 : index
    %c0_9 = arith.constant 0 : index
    %10 = vector.load %arg3[%c0_8, %c0_9] : memref<16x256xf32, #tpu.memory_space<vmem>>, vector<16x256xf32>
    %cst_10 = arith.constant dense<0.000000e+00> : vector<4x256xf32>
    %11 = tpu.matmul %9, %10, %cst_10 {dimension_numbers = #tpu.dot_dimension_numbers<[1], [0], [0], [1], [0, 0, 1, 1], [], []>, precision = #tpu.contract_precision<fp32>} : vector<4x16xf32>, vector<16x256xf32>, vector<4x256xf32> -> vector<4x256xf32>
    %12 = vector.extract_strided_slice %11 {offsets = [0, 0], sizes = [2, 256], strides = [1, 1]} : vector<4x256xf32> to vector<2x256xf32>
    %13 = vector.extract_strided_slice %11 {offsets = [2, 0], sizes = [2, 256], strides = [1, 1]} : vector<4x256xf32> to vector<2x256xf32>
    %14 = arith.addf %12, %13 : vector<2x256xf32>
    %15 = arith.negf %14 : vector<2x256xf32>
    %16 = math.exp %15 : vector<2x256xf32>
    %cst_11 = arith.constant 1.000000e+00 : f32
    %17 = vector.broadcast %cst_11 : f32 to vector<2x256xf32>
    %18 = arith.addf %17, %16 : vector<2x256xf32>
    %19 = arith.divf %17, %18 : vector<2x256xf32>
    %20 = vector.shape_cast %19 : vector<2x256xf32> to vector<2x256x1xf32>
    %21 = vector.broadcast %20 : vector<2x256x1xf32> to vector<2x256x256xf32>
    %22 = arith.mulf %0, %21 : vector<2x256x256xf32>
    %cst_12 = arith.constant dense<0.000000e+00> : vector<2x256xf32>
    %23 = vector.multi_reduction <add>, %22, %cst_12 [1] : vector<2x256x256xf32> to vector<2x256xf32>
    %24 = vector.shape_cast %23 : vector<2x256xf32> to vector<2x1x256xf32>
    %cst_13 = arith.constant 3.906250e-03 : f32
    %25 = vector.broadcast %cst_13 : f32 to vector<2x1x256xf32>
    %26 = arith.mulf %24, %25 : vector<2x1x256xf32>
    %cst_14 = arith.constant dense<0xFF800000> : vector<2x256xf32>
    %27 = vector.multi_reduction <maximumf>, %22, %cst_14 [1] : vector<2x256x256xf32> to vector<2x256xf32>
    %28 = vector.shape_cast %27 : vector<2x256xf32> to vector<2x1x256xf32>
    %c0_15 = arith.constant 0 : index
    %29 = memref.load %arg4[%c0_15] : memref<2xf32, #tpu.memory_space<smem>>
    %30 = vector.broadcast %29 : f32 to vector<2x1x256xf32>
    %31 = arith.mulf %30, %26 : vector<2x1x256xf32>
    %c1 = arith.constant 1 : index
    %32 = memref.load %arg4[%c1] : memref<2xf32, #tpu.memory_space<smem>>
    %33 = vector.broadcast %32 : f32 to vector<2x1x256xf32>
    %34 = arith.mulf %33, %28 : vector<2x1x256xf32>
    %35 = arith.addf %31, %34 : vector<2x1x256xf32>
    %c0_16 = arith.constant 0 : index
    %36 = memref.load %arg5[%c0_16] : memref<1xf32, #tpu.memory_space<smem>>
    %37 = vector.broadcast %36 : f32 to vector<2x1x256xf32>
    %38 = arith.addf %35, %37 : vector<2x1x256xf32>
    %39 = arith.negf %38 : vector<2x1x256xf32>
    %40 = math.exp %39 : vector<2x1x256xf32>
    %cst_17 = arith.constant 1.000000e+00 : f32
    %41 = vector.broadcast %cst_17 : f32 to vector<2x1x256xf32>
    %42 = arith.addf %41, %40 : vector<2x1x256xf32>
    %43 = arith.divf %41, %42 : vector<2x1x256xf32>
    %44 = vector.broadcast %43 : vector<2x1x256xf32> to vector<2x256x256xf32>
    %45 = arith.mulf %22, %44 : vector<2x256x256xf32>
    %46 = arith.addf %0, %45 : vector<2x256x256xf32>
    %cst_18 = arith.constant 0.000000e+00 : f32
    %47 = vector.broadcast %cst_18 : f32 to vector<2x256x256xf32>
    %48 = arith.maximumf %46, %47 : vector<2x256x256xf32>
    %c0_19 = arith.constant 0 : index
    %c0_20 = arith.constant 0 : index
    %c0_21 = arith.constant 0 : index
    %49 = vector.load %arg6[%c0_19, %c0_20, %c0_21] : memref<2x256x256xf32, #tpu.memory_space<vmem>>, vector<2x256x256xf32>
    tpu.vector_store %arg6[%c0_19, %c0_20, %c0_21], %48 {strides = array<i32>} : memref<2x256x256xf32, #tpu.memory_space<vmem>>, vector<2x256x256xf32>,
    return
  }
  func.func @transform_0(%arg0: i32) -> (i32, i32, i32) {
    %c0_i32 = arith.constant 0 : i32
    %c0_i32_0 = arith.constant 0 : i32
    %c0_i32_1 = arith.constant 0 : i32
    return %arg0, %c0_i32, %c0_i32_0 : i32, i32, i32
  }
  func.func @transform_1(%arg0: i32) -> (i32, i32) {
    %c0_i32 = arith.constant 0 : i32
    %c0_i32_0 = arith.constant 0 : i32
    %c0_i32_1 = arith.constant 0 : i32
    return %c0_i32, %c0_i32_0 : i32, i32
  }
  func.func @transform_2(%arg0: i32) -> (i32, i32) {
    %c0_i32 = arith.constant 0 : i32
    %c0_i32_0 = arith.constant 0 : i32
    %c0_i32_1 = arith.constant 0 : i32
    return %c0_i32, %c0_i32_0 : i32, i32
  }
  func.func @transform_3(%arg0: i32) -> i32 {
    %c0_i32 = arith.constant 0 : i32
    %c0_i32_0 = arith.constant 0 : i32
    return %c0_i32 : i32
  }
  func.func @transform_4(%arg0: i32) -> i32 {
    %c0_i32 = arith.constant 0 : i32
    %c0_i32_0 = arith.constant 0 : i32
    return %c0_i32 : i32
  }
  func.func @transform_5(%arg0: i32) -> (i32, i32, i32) {
    %c0_i32 = arith.constant 0 : i32
    %c0_i32_0 = arith.constant 0 : i32
    %c0_i32_1 = arith.constant 0 : i32
    return %arg0, %c0_i32, %c0_i32_0 : i32, i32, i32
  }
}

</mosaic_0001>

<llo_original>
// kernel: tpu_custom_call.1
$region0: #{tpu_custom_call.1}
  #allocation0 [shape = 'u32[]', space=smem, size = 0x4, offset = 0x4, fixed_abs, tag = 'smem constant byte address 0x4 - core index']
  #allocation1 [shape = 'u32[144,128]{1,0:T(1,128)}', space=vmem, size = 0x12000, scoped, tag = 'internal scratch']
  #allocation2 [shape = 'f32[1]{0:T(128)S(6)}', space=smem, size = 0x200, scoped, tag = 'scoped memory for tpu_custom_call.1']
  %s0 = inlined_call_operand.hbm [shape: f32[2,256,256], index: 0, kind: input, shape index: {}]
  %s1 = inlined_call_operand.vmem [shape: f32[256,16], index: 1, kind: input, shape index: {}]
  %s2 = inlined_call_operand.vmem [shape: f32[16,256], index: 2, kind: input, shape index: {}]
  %s3 = inlined_call_operand.vmem [shape: f32[2], index: 3, kind: input, shape index: {}]
  %s4 = inlined_call_operand.<no memory space> [shape: f32[1], index: 4, kind: input, shape index: {}]
  %s5 = inlined_call_operand.hbm [shape: f32[2,256,256], index: 5, kind: output, shape index: {}]
  %s6 = sld [smem:[#allocation0]]
  $region38: #{tpu_custom_call.1} parent=0
    _
  %s8 = ssub.s32 1, %s6
  %s9 = scalar_select 0, %s8, %s6
  %10 = sst [smem:[#allocation2]] %s4
  $region1: #{tpu_custom_call.1} parent=0
    #allocation3 [shape = 'u8[524288]{0}', space=vmem, size = 0x80000, scoped, tag = 'input window, operand 0, single buffered']
    #allocation4 [shape = 's32[1]{0}', space=sflag, size = 0x4, scoped, tag = 'scoped memory for tpu_custom_call.1']
    #allocation5 [shape = 's32[1]{0}', space=sflag, size = 0x4, scoped, tag = 'scoped memory for tpu_custom_call.1']
    #allocation6 [shape = 's32[1]{0}', space=sflag, size = 0x4, scoped, tag = 'scoped memory for tpu_custom_call.1']
    #allocation7 [shape = 'u8[512]{0}', space=smem, size = 0x200, scoped, tag = 'input window, operand 3, single buffered']
    #allocation8 [shape = 'u8[524288]{0}', space=vmem, size = 0x80000, scoped, tag = 'output window, operand 0, single buffered']
    %11 = vsyncpa [#allocation4], 0
    %12 = vsyncpa [#allocation6], 0
    %13 = vsyncpa [#allocation5], 0
    // Predicated region
    $region2: #{tpu_custom_call.1} parent=1 // pred_check
      _
    $region3: #{tpu_custom_call.1} parent=1 // pred_check_branch
      %15 = sbr.rel (0) target = $region5
    $region4: #{tpu_custom_call.1} parent=1 // pred_region
      %s17 = ssub.s32 16384, 16384
      %18 = vsyncadd [#allocation4], %s17
      %s19 = sshll.u32 [#allocation3], 4
      %s20 = int_to_ptr.vmem [resolvable:$true] %s19
      %25 = dma.hbm_to_vmem [thread:$0]  %s0, 16384, %s20, [#allocation4], 256, 256, 16
    $region5: #{tpu_custom_call.1} parent=1 // pred_fallthru
      _
    // Predicated region
    $region6: #{tpu_custom_call.1} parent=1 // pred_check
      _
    $region7: #{tpu_custom_call.1} parent=1 // pred_check_branch
      %27 = sbr.rel (0) target = $region9
    $region8: #{tpu_custom_call.1} parent=1 // pred_region
      _
    $region9: #{tpu_custom_call.1} parent=1 // pred_fallthru
      _
    // Predicated region
    $region10: #{tpu_custom_call.1} parent=1 // pred_check
      _
    $region11: #{tpu_custom_call.1} parent=1 // pred_check_branch
      %29 = sbr.rel (0) target = $region13
    $region12: #{tpu_custom_call.1} parent=1 // pred_region
      _
    $region13: #{tpu_custom_call.1} parent=1 // pred_fallthru
      _
    // Predicated region
    $region14: #{tpu_custom_call.1} parent=1 // pred_check
      _
    $region15: #{tpu_custom_call.1} parent=1 // pred_check_branch
      %31 = sbr.rel (0) target = $region17
    $region16: #{tpu_custom_call.1} parent=1 // pred_region
      %s33 = ssub.s32 16, 16
      %34 = vsyncadd [#allocation6], %s33
      %s36 = sshll.u32 %s3, 4
      %s37 = int_to_ptr.vmem [resolvable:$true] %s36
      %39 = dma.vmem_to_smem %s37, 16, [#allocation7], [#allocation6]
    $region17: #{tpu_custom_call.1} parent=1 // pred_fallthru
      _
    // Predicated region
    $region18: #{tpu_custom_call.1} parent=1 // pred_check
      _
    $region19: #{tpu_custom_call.1} parent=1 // pred_check_branch
      %41 = sbr.rel (0) target = $region21
    $region20: #{tpu_custom_call.1} parent=1 // pred_region
      _
    $region21: #{tpu_custom_call.1} parent=1 // pred_fallthru
      _
    // Predicated region
    $region22: #{tpu_custom_call.1} parent=1 // pred_check
      _
    $region23: #{tpu_custom_call.1} parent=1 // pred_check_branch
      %43 = sbr.rel (0) target = $region25
    $region24: #{tpu_custom_call.1} parent=1 // pred_region
      %44 = dma.done [#allocation4], 16384
    $region25: #{tpu_custom_call.1} parent=1 // pred_fallthru
      _
    // Predicated region
    $region26: #{tpu_custom_call.1} parent=1 // pred_check
      _
    $region27: #{tpu_custom_call.1} parent=1 // pred_check_branch
      %46 = sbr.rel (0) target = $region29
    $region28: #{tpu_custom_call.1} parent=1 // pred_region
      %47 = dma.done [#allocation6], 16
    $region29: #{tpu_custom_call.1} parent=1 // pred_fallthru
      _
    %48 = sfence
    %v49 = vld [vmem:[#allocation3] sm:$0xff]
    %v50 = vld [vmem:[#allocation3 + $0x8] sm:$0xff]
    %v51 = vld [vmem:[#allocation3 + $0x10] sm:$0xff]
    %v52 = vld [vmem:[#allocation3 + $0x18] sm:$0xff]
    %v53 = vld [vmem:[#allocation3 + $0x20] sm:$0xff]
    %v54 = vld [vmem:[#allocation3 + $0x28] sm:$0xff]
    %v55 = vld [vmem:[#allocation3 + $0x30] sm:$0xff]
    %v56 = vld [vmem:[#allocation3 + $0x38] sm:$0xff]
    %v57 = vld [vmem:[#allocation3 + $0x40] sm:$0xff]
    %v58 = vld [vmem:[#allocation3 + $0x48] sm:$0xff]
    %v59 = vld [vmem:[#allocation3 + $0x50] sm:$0xff]
    %v60 = vld [vmem:[#allocation3 + $0x58] sm:$0xff]
    %v61 = vld [vmem:[#allocation3 + $0x60] sm:$0xff]
    %v62 = vld [vmem:[#allocation3 + $0x68] sm:$0xff]
    %v63 = vld [vmem:[#allocation3 + $0x70] sm:$0xff]
    %v64 = vld [vmem:[#allocation3 + $0x78] sm:$0xff]
    %v65 = vld [vmem:[#allocation3 + $0x80] sm:$0xff]
    %v66 = vld [vmem:[#allocation3 + $0x88] sm:$0xff]
    %v67 = vld [vmem:[#allocation3 + $0x90] sm:$0xff]
    %v68 = vld [vmem:[#allocation3 + $0x98] sm:$0xff]
    %v69 = vld [vmem:[#allocation3 + $0xa0] sm:$0xff]
    %v70 = vld [vmem:[#allocation3 + $0xa8] sm:$0xff]
    %v71 = vld [vmem:[#allocation3 + $0xb0] sm:$0xff]
    %v72 = vld [vmem:[#allocation3 + $0xb8] sm:$0xff]
    %v73 = vld [vmem:[#allocation3 + $0xc0] sm:$0xff]
    %v74 = vld [vmem:[#allocation3 + $0xc8] sm:$0xff]
    %v75 = vld [vmem:[#allocation3 + $0xd0] sm:$0xff]
    %v76 = vld [vmem:[#allocation3 + $0xd8] sm:$0xff]
    %v77 = vld [vmem:[#allocation3 + $0xe0] sm:$0xff]
    %v78 = vld [vmem:[#allocation3 + $0xe8] sm:$0xff]
    %v79 = vld [vmem:[#allocation3 + $0xf0] sm:$0xff]
    %v80 = vld [vmem:[#allocation3 + $0xf8] sm:$0xff]
    %v81 = vld [vmem:[#allocation3 + $0x100] sm:$0xff]
    %v82 = vld [vmem:[#allocation3 + $0x108] sm:$0xff]
    %v83 = vld [vmem:[#allocation3 + $0x110] sm:$0xff]
    %v84 = vld [vmem:[#allocation3 + $0x118] sm:$0xff]
    %v85 = vld [vmem:[#allocation3 + $0x120] sm:$0xff]
    %v86 = vld [vmem:[#allocation3 + $0x128] sm:$0xff]
    %v87 = vld [vmem:[#allocation3 + $0x130] sm:$0xff]
    %v88 = vld [vmem:[#allocation3 + $0x138] sm:$0xff]
    %v89 = vld [vmem:[#allocation3 + $0x140] sm:$0xff]
    %v90 = vld [vmem:[#allocation3 + $0x148] sm:$0xff]
    %v91 = vld [vmem:[#allocation3 + $0x150] sm:$0xff]
    %v92 = vld [vmem:[#allocation3 + $0x158] sm:$0xff]
    %v93 = vld [vmem:[#allocation3 + $0x160] sm:$0xff]
    %v94 = vld [vmem:[#allocation3 + $0x168] sm:$0xff]
    %v95 = vld [vmem:[#allocation3 + $0x170] sm:$0xff]
    %v96 = vld [vmem:[#allocation3 + $0x178] sm:$0xff]
    %v97 = vld [vmem:[#allocation3 + $0x180] sm:$0xff]
    %v98 = vld [vmem:[#allocation3 + $0x188] sm:$0xff]
    %v99 = vld [vmem:[#allocation3 + $0x190] sm:$0xff]
    %v100 = vld [vmem:[#allocation3 + $0x198] sm:$0xff]
    %v101 = vld [vmem:[#allocation3 + $0x1a0] sm:$0xff]
    %v102 = vld [vmem:[#allocation3 + $0x1a8] sm:$0xff]
    %v103 = vld [vmem:[#allocation3 + $0x1b0] sm:$0xff]
    %v104 = vld [vmem:[#allocation3 + $0x1b8] sm:$0xff]
    %v105 = vld [vmem:[#allocation3 + $0x1c0] sm:$0xff]
    %v106 = vld [vmem:[#allocation3 + $0x1c8] sm:$0xff]
    %v107 = vld [vmem:[#allocation3 + $0x1d0] sm:$0xff]
    %v108 = vld [vmem:[#allocation3 + $0x1d8] sm:$0xff]
    %v109 = vld [vmem:[#allocation3 + $0x1e0] sm:$0xff]
    %v110 = vld [vmem:[#allocation3 + $0x1e8] sm:$0xff]
    %v111 = vld [vmem:[#allocation3 + $0x1f0] sm:$0xff]
    %v112 = vld [vmem:[#allocation3 + $0x1f8] sm:$0xff]
    %v113 = vld [vmem:[#allocation3 + $0x200] sm:$0xff]
    %v114 = vld [vmem:[#allocation3 + $0x208] sm:$0xff]
    %v115 = vld [vmem:[#allocation3 + $0x210] sm:$0xff]
    %v116 = vld [vmem:[#allocation3 + $0x218] sm:$0xff]
    %v117 = vld [vmem:[#allocation3 + $0x220] sm:$0xff]
    %v118 = vld [vmem:[#allocation3 + $0x228] sm:$0xff]
    %v119 = vld [vmem:[#allocation3 + $0x230] sm:$0xff]
    %v120 = vld [vmem:[#allocation3 + $0x238] sm:$0xff]
    %v121 = vld [vmem:[#allocation3 + $0x240] sm:$0xff]
    %v122 = vld [vmem:[#allocation3 + $0x248] sm:$0xff]
    %v123 = vld [vmem:[#allocation3 + $0x250] sm:$0xff]
    %v124 = vld [vmem:[#allocation3 + $0x258] sm:$0xff]
    %v125 = vld [vmem:[#allocation3 + $0x260] sm:$0xff]
    %v126 = vld [vmem:[#allocation3 + $0x268] sm:$0xff]
    %v127 = vld [vmem:[#allocation3 + $0x270] sm:$0xff]
    %v128 = vld [vmem:[#allocation3 + $0x278] sm:$0xff]
    %v129 = vld [vmem:[#allocation3 + $0x280] sm:$0xff]
    %v130 = vld [vmem:[#allocation3 + $0x288] sm:$0xff]
    %v131 = vld [vmem:[#allocation3 + $0x290] sm:$0xff]
    %v132 = vld [vmem:[#allocation3 + $0x298] sm:$0xff]
    %v133 = vld [vmem:[#allocation3 + $0x2a0] sm:$0xff]
    %v134 = vld [vmem:[#allocation3 + $0x2a8] sm:$0xff]
    %v135 = vld [vmem:[#allocation3 + $0x2b0] sm:$0xff]
    %v136 = vld [vmem:[#allocation3 + $0x2b8] sm:$0xff]
    %v137 = vld [vmem:[#allocation3 + $0x2c0] sm:$0xff]
    %v138 = vld [vmem:[#allocation3 + $0x2c8] sm:$0xff]
    %v139 = vld [vmem:[#allocation3 + $0x2d0] sm:$0xff]
    %v140 = vld [vmem:[#allocation3 + $0x2d8] sm:$0xff]
    %v141 = vld [vmem:[#allocation3 + $0x2e0] sm:$0xff]
    %v142 = vld [vmem:[#allocation3 + $0x2e8] sm:$0xff]
    %v143 = vld [vmem:[#allocation3 + $0x2f0] sm:$0xff]
    %v144 = vld [vmem:[#allocation3 + $0x2f8] sm:$0xff]
    %v145 = vld [vmem:[#allocation3 + $0x300] sm:$0xff]
    %v146 = vld [vmem:[#allocation3 + $0x308] sm:$0xff]
    %v147 = vld [vmem:[#allocation3 + $0x310] sm:$0xff]
    %v148 = vld [vmem:[#allocation3 + $0x318] sm:$0xff]
    %v149 = vld [vmem:[#allocation3 + $0x320] sm:$0xff]
    %v150 = vld [vmem:[#allocation3 + $0x328] sm:$0xff]
    %v151 = vld [vmem:[#allocation3 + $0x330] sm:$0xff]
    %v152 = vld [vmem:[#allocation3 + $0x338] sm:$0xff]
    %v153 = vld [vmem:[#allocation3 + $0x340] sm:$0xff]
    %v154 = vld [vmem:[#allocation3 + $0x348] sm:$0xff]
    %v155 = vld [vmem:[#allocation3 + $0x350] sm:$0xff]
    %v156 = vld [vmem:[#allocation3 + $0x358] sm:$0xff]
    %v157 = vld [vmem:[#allocation3 + $0x360] sm:$0xff]
    %v158 = vld [vmem:[#allocation3 + $0x368] sm:$0xff]
    %v159 = vld [vmem:[#allocation3 + $0x370] sm:$0xff]
    %v160 = vld [vmem:[#allocation3 + $0x378] sm:$0xff]
    %v161 = vld [vmem:[#allocation3 + $0x380] sm:$0xff]
    %v162 = vld [vmem:[#allocation3 + $0x388] sm:$0xff]
    %v163 = vld [vmem:[#allocation3 + $0x390] sm:$0xff]
    %v164 = vld [vmem:[#allocation3 + $0x398] sm:$0xff]
    %v165 = vld [vmem:[#allocation3 + $0x3a0] sm:$0xff]
    %v166 = vld [vmem:[#allocation3 + $0x3a8] sm:$0xff]
    %v167 = vld [vmem:[#allocation3 + $0x3b0] sm:$0xff]
    %v168 = vld [vmem:[#allocation3 + $0x3b8] sm:$0xff]
    %v169 = vld [vmem:[#allocation3 + $0x3c0] sm:$0xff]
    %v170 = vld [vmem:[#allocation3 + $0x3c8] sm:$0xff]
    %v171 = vld [vmem:[#allocation3 + $0x3d0] sm:$0xff]
    %v172 = vld [vmem:[#allocation3 + $0x3d8] sm:$0xff]
    %v173 = vld [vmem:[#allocation3 + $0x3e0] sm:$0xff]
    %v174 = vld [vmem:[#allocation3 + $0x3e8] sm:$0xff]
    %v175 = vld [vmem:[#allocation3 + $0x3f0] sm:$0xff]
    %v176 = vld [vmem:[#allocation3 + $0x3f8] sm:$0xff]
    %v177 = vadd.f32 %v49, %v50
    %178 = vadd.xlane.f32.xlu0 %v177
    %v179 = vpop.xlane.xlu0 %178
    %v180 = vadd.f32 %v51, %v52
    %181 = vadd.xlane.f32.xlu0 %v180
    %v182 = vpop.xlane.xlu0 %181
    %v183 = vadd.f32 %v53, %v54
    %184 = vadd.xlane.f32.xlu0 %v183
    %v185 = vpop.xlane.xlu0 %184
    %v186 = vadd.f32 %v55, %v56
    %187 = vadd.xlane.f32.xlu0 %v186
    %v188 = vpop.xlane.xlu0 %187
    %v189 = vadd.f32 %v57, %v58
    %190 = vadd.xlane.f32.xlu0 %v189
    %v191 = vpop.xlane.xlu0 %190
    %v192 = vadd.f32 %v59, %v60
    %193 = vadd.xlane.f32.xlu0 %v192
    %v194 = vpop.xlane.xlu0 %193
    %v195 = vadd.f32 %v61, %v62
    %196 = vadd.xlane.f32.xlu0 %v195
    %v197 = vpop.xlane.xlu0 %196
    %v198 = vadd.f32 %v63, %v64
    %199 = vadd.xlane.f32.xlu0 %v198
    %v200 = vpop.xlane.xlu0 %199
    %v201 = vadd.f32 %v65, %v66
    %202 = vadd.xlane.f32.xlu0 %v201
    %v203 = vpop.xlane.xlu0 %202
    %v204 = vadd.f32 %v67, %v68
    %205 = vadd.xlane.f32.xlu0 %v204
    %v206 = vpop.xlane.xlu0 %205
    %v207 = vadd.f32 %v69, %v70
    %208 = vadd.xlane.f32.xlu0 %v207
    %v209 = vpop.xlane.xlu0 %208
    %v210 = vadd.f32 %v71, %v72
    %211 = vadd.xlane.f32.xlu0 %v210
    %v212 = vpop.xlane.xlu0 %211
    %v213 = vadd.f32 %v73, %v74
    %214 = vadd.xlane.f32.xlu0 %v213
    %v215 = vpop.xlane.xlu0 %214
    %v216 = vadd.f32 %v75, %v76
    %217 = vadd.xlane.f32.xlu0 %v216
    %v218 = vpop.xlane.xlu0 %217
    %v219 = vadd.f32 %v77, %v78
    %220 = vadd.xlane.f32.xlu0 %v219
    %v221 = vpop.xlane.xlu0 %220
    %v222 = vadd.f32 %v79, %v80
    %223 = vadd.xlane.f32.xlu0 %v222
    %v224 = vpop.xlane.xlu0 %223
    %v225 = vadd.f32 %v81, %v82
    %226 = vadd.xlane.f32.xlu0 %v225
    %v227 = vpop.xlane.xlu0 %226
    %v228 = vadd.f32 %v83, %v84
    %229 = vadd.xlane.f32.xlu0 %v228
    %v230 = vpop.xlane.xlu0 %229
    %v231 = vadd.f32 %v85, %v86
    %232 = vadd.xlane.f32.xlu0 %v231
    %v233 = vpop.xlane.xlu0 %232
    %v234 = vadd.f32 %v87, %v88
    %235 = vadd.xlane.f32.xlu0 %v234
    %v236 = vpop.xlane.xlu0 %235
    %v237 = vadd.f32 %v89, %v90
    %238 = vadd.xlane.f32.xlu0 %v237
    %v239 = vpop.xlane.xlu0 %238
    %v240 = vadd.f32 %v91, %v92
    %241 = vadd.xlane.f32.xlu0 %v240
    %v242 = vpop.xlane.xlu0 %241
    %v243 = vadd.f32 %v93, %v94
    %244 = vadd.xlane.f32.xlu0 %v243
    %v245 = vpop.xlane.xlu0 %244
    %v246 = vadd.f32 %v95, %v96
    %247 = vadd.xlane.f32.xlu0 %v246
    %v248 = vpop.xlane.xlu0 %247
    %v249 = vadd.f32 %v97, %v98
    %250 = vadd.xlane.f32.xlu0 %v249
    %v251 = vpop.xlane.xlu0 %250
    %v252 = vadd.f32 %v99, %v100
    %253 = vadd.xlane.f32.xlu0 %v252
    %v254 = vpop.xlane.xlu0 %253
    %v255 = vadd.f32 %v101, %v102
    %256 = vadd.xlane.f32.xlu0 %v255
    %v257 = vpop.xlane.xlu0 %256
    %v258 = vadd.f32 %v103, %v104
    %259 = vadd.xlane.f32.xlu0 %v258
    %v260 = vpop.xlane.xlu0 %259
    %v261 = vadd.f32 %v105, %v106
    %262 = vadd.xlane.f32.xlu0 %v261
    %v263 = vpop.xlane.xlu0 %262
    %v264 = vadd.f32 %v107, %v108
    %265 = vadd.xlane.f32.xlu0 %v264
    %v266 = vpop.xlane.xlu0 %265
    %v267 = vadd.f32 %v109, %v110
    %268 = vadd.xlane.f32.xlu0 %v267
    %v269 = vpop.xlane.xlu0 %268
    %v270 = vadd.f32 %v111, %v112
    %271 = vadd.xlane.f32.xlu0 %v270
    %v272 = vpop.xlane.xlu0 %271
    %v273 = vadd.f32 %v113, %v114
    %274 = vadd.xlane.f32.xlu0 %v273
    %v275 = vpop.xlane.xlu0 %274
    %v276 = vadd.f32 %v115, %v116
    %277 = vadd.xlane.f32.xlu0 %v276
    %v278 = vpop.xlane.xlu0 %277
    %v279 = vadd.f32 %v117, %v118
    %280 = vadd.xlane.f32.xlu0 %v279
    %v281 = vpop.xlane.xlu0 %280
    %v282 = vadd.f32 %v119, %v120
    %283 = vadd.xlane.f32.xlu0 %v282
    %v284 = vpop.xlane.xlu0 %283
    %v285 = vadd.f32 %v121, %v122
    %286 = vadd.xlane.f32.xlu0 %v285
    %v287 = vpop.xlane.xlu0 %286
    %v288 = vadd.f32 %v123, %v124
    %289 = vadd.xlane.f32.xlu0 %v288
    %v290 = vpop.xlane.xlu0 %289
    %v291 = vadd.f32 %v125, %v126
    %292 = vadd.xlane.f32.xlu0 %v291
    %v293 = vpop.xlane.xlu0 %292
    %v294 = vadd.f32 %v127, %v128
    %295 = vadd.xlane.f32.xlu0 %v294
    %v296 = vpop.xlane.xlu0 %295
    %v297 = vadd.f32 %v129, %v130
    %298 = vadd.xlane.f32.xlu0 %v297
    %v299 = vpop.xlane.xlu0 %298
    %v300 = vadd.f32 %v131, %v132
    %301 = vadd.xlane.f32.xlu0 %v300
    %v302 = vpop.xlane.xlu0 %301
    %v303 = vadd.f32 %v133, %v134
    %304 = vadd.xlane.f32.xlu0 %v303
    %v305 = vpop.xlane.xlu0 %304
    %v306 = vadd.f32 %v135, %v136
    %307 = vadd.xlane.f32.xlu0 %v306
    %v308 = vpop.xlane.xlu0 %307
    %v309 = vadd.f32 %v137, %v138
    %310 = vadd.xlane.f32.xlu0 %v309
    %v311 = vpop.xlane.xlu0 %310
    %v312 = vadd.f32 %v139, %v140
    %313 = vadd.xlane.f32.xlu0 %v312
    %v314 = vpop.xlane.xlu0 %313
    %v315 = vadd.f32 %v141, %v142
    %316 = vadd.xlane.f32.xlu0 %v315
    %v317 = vpop.xlane.xlu0 %316
    %v318 = vadd.f32 %v143, %v144
    %319 = vadd.xlane.f32.xlu0 %v318
    %v320 = vpop.xlane.xlu0 %319
    %v321 = vadd.f32 %v145, %v146
    %322 = vadd.xlane.f32.xlu0 %v321
    %v323 = vpop.xlane.xlu0 %322
    %v324 = vadd.f32 %v147, %v148
    %325 = vadd.xlane.f32.xlu0 %v324
    %v326 = vpop.xlane.xlu0 %325
    %v327 = vadd.f32 %v149, %v150
    %328 = vadd.xlane.f32.xlu0 %v327
    %v329 = vpop.xlane.xlu0 %328
    %v330 = vadd.f32 %v151, %v152
    %331 = vadd.xlane.f32.xlu0 %v330
    %v332 = vpop.xlane.xlu0 %331
    %v333 = vadd.f32 %v153, %v154
    %334 = vadd.xlane.f32.xlu0 %v333
    %v335 = vpop.xlane.xlu0 %334
    %v336 = vadd.f32 %v155, %v156
    %337 = vadd.xlane.f32.xlu0 %v336
    %v338 = vpop.xlane.xlu0 %337
    %v339 = vadd.f32 %v157, %v158
    %340 = vadd.xlane.f32.xlu0 %v339
    %v341 = vpop.xlane.xlu0 %340
    %v342 = vadd.f32 %v159, %v160
    %343 = vadd.xlane.f32.xlu0 %v342
    %v344 = vpop.xlane.xlu0 %343
    %v345 = vadd.f32 %v161, %v162
    %346 = vadd.xlane.f32.xlu0 %v345
    %v347 = vpop.xlane.xlu0 %346
    %v348 = vadd.f32 %v163, %v164
    %349 = vadd.xlane.f32.xlu0 %v348
    %v350 = vpop.xlane.xlu0 %349
    %v351 = vadd.f32 %v165, %v166
    %352 = vadd.xlane.f32.xlu0 %v351
    %v353 = vpop.xlane.xlu0 %352
    %v354 = vadd.f32 %v167, %v168
    %355 = vadd.xlane.f32.xlu0 %v354
    %v356 = vpop.xlane.xlu0 %355
    %v357 = vadd.f32 %v169, %v170
    %358 = vadd.xlane.f32.xlu0 %v357
    %v359 = vpop.xlane.xlu0 %358
    %v360 = vadd.f32 %v171, %v172
    %361 = vadd.xlane.f32.xlu0 %v360
    %v362 = vpop.xlane.xlu0 %361
    %v363 = vadd.f32 %v173, %v174
    %364 = vadd.xlane.f32.xlu0 %v363
    %v365 = vpop.xlane.xlu0 %364
    %v366 = vadd.f32 %v175, %v176
    %367 = vadd.xlane.f32.xlu0 %v366
    %v368 = vpop.xlane.xlu0 %367
    %v369 = vmul.f32 %v179, 0.00390625
    %v370 = vmul.f32 %v182, 0.00390625
    %v371 = vmul.f32 %v185, 0.00390625
    %v372 = vmul.f32 %v188, 0.00390625
    %v373 = vmul.f32 %v191, 0.00390625
    %v374 = vmul.f32 %v194, 0.00390625
    %v375 = vmul.f32 %v197, 0.00390625
    %v376 = vmul.f32 %v200, 0.00390625
    %v377 = vmul.f32 %v203, 0.00390625
    %v378 = vmul.f32 %v206, 0.00390625
    %v379 = vmul.f32 %v209, 0.00390625
    %v380 = vmul.f32 %v212, 0.00390625
    %v381 = vmul.f32 %v215, 0.00390625
    %v382 = vmul.f32 %v218, 0.00390625
    %v383 = vmul.f32 %v221, 0.00390625
    %v384 = vmul.f32 %v224, 0.00390625
    %v385 = vmul.f32 %v227, 0.00390625
    %v386 = vmul.f32 %v230, 0.00390625
    %v387 = vmul.f32 %v233, 0.00390625
    %v388 = vmul.f32 %v236, 0.00390625
    %v389 = vmul.f32 %v239, 0.00390625
    %v390 = vmul.f32 %v242, 0.00390625
    %v391 = vmul.f32 %v245, 0.00390625
    %v392 = vmul.f32 %v248, 0.00390625
    %v393 = vmul.f32 %v251, 0.00390625
    %v394 = vmul.f32 %v254, 0.00390625
    %v395 = vmul.f32 %v257, 0.00390625
    %v396 = vmul.f32 %v260, 0.00390625
    %v397 = vmul.f32 %v263, 0.00390625
    %v398 = vmul.f32 %v266, 0.00390625
    %v399 = vmul.f32 %v269, 0.00390625
    %v400 = vmul.f32 %v272, 0.00390625
    %v401 = vmul.f32 %v275, 0.00390625
    %v402 = vmul.f32 %v278, 0.00390625
    %v403 = vmul.f32 %v281, 0.00390625
    %v404 = vmul.f32 %v284, 0.00390625
    %v405 = vmul.f32 %v287, 0.00390625
    %v406 = vmul.f32 %v290, 0.00390625
    %v407 = vmul.f32 %v293, 0.00390625
    %v408 = vmul.f32 %v296, 0.00390625
    %v409 = vmul.f32 %v299, 0.00390625
    %v410 = vmul.f32 %v302, 0.00390625
    %v411 = vmul.f32 %v305, 0.00390625
    %v412 = vmul.f32 %v308, 0.00390625
    %v413 = vmul.f32 %v311, 0.00390625
    %v414 = vmul.f32 %v314, 0.00390625
    %v415 = vmul.f32 %v317, 0.00390625
    %v416 = vmul.f32 %v320, 0.00390625
    %v417 = vmul.f32 %v323, 0.00390625
    %v418 = vmul.f32 %v326, 0.00390625
    %v419 = vmul.f32 %v329, 0.00390625
    %v420 = vmul.f32 %v332, 0.00390625
    %v421 = vmul.f32 %v335, 0.00390625
    %v422 = vmul.f32 %v338, 0.00390625
    %v423 = vmul.f32 %v341, 0.00390625
    %v424 = vmul.f32 %v344, 0.00390625
    %v425 = vmul.f32 %v347, 0.00390625
    %v426 = vmul.f32 %v350, 0.00390625
    %v427 = vmul.f32 %v353, 0.00390625
    %v428 = vmul.f32 %v356, 0.00390625
    %v429 = vmul.f32 %v359, 0.00390625
    %v430 = vmul.f32 %v362, 0.00390625
    %v431 = vmul.f32 %v365, 0.00390625
    %v432 = vmul.f32 %v368, 0.00390625
    %v433 = vmax.f32 %v49, %v50
    %434 = vmax.xlane.f32.xlu0 %v433
    %v435 = vpop.xlane.xlu0 %434
    %v436 = vmax.f32 %v51, %v52
    %437 = vmax.xlane.f32.xlu0 %v436
    %v438 = vpop.xlane.xlu0 %437
    %v439 = vmax.f32 %v53, %v54
    %440 = vmax.xlane.f32.xlu0 %v439
    %v441 = vpop.xlane.xlu0 %440
    %v442 = vmax.f32 %v55, %v56
    %443 = vmax.xlane.f32.xlu0 %v442
    %v444 = vpop.xlane.xlu0 %443
    %v445 = vmax.f32 %v57, %v58
    %446 = vmax.xlane.f32.xlu0 %v445
    %v447 = vpop.xlane.xlu0 %446
    %v448 = vmax.f32 %v59, %v60
    %449 = vmax.xlane.f32.xlu0 %v448
    %v450 = vpop.xlane.xlu0 %449
    %v451 = vmax.f32 %v61, %v62
    %452 = vmax.xlane.f32.xlu0 %v451
    %v453 = vpop.xlane.xlu0 %452
    %v454 = vmax.f32 %v63, %v64
    %455 = vmax.xlane.f32.xlu0 %v454
    %v456 = vpop.xlane.xlu0 %455
    %v457 = vmax.f32 %v65, %v66
    %458 = vmax.xlane.f32.xlu0 %v457
    %v459 = vpop.xlane.xlu0 %458
    %v460 = vmax.f32 %v67, %v68
    %461 = vmax.xlane.f32.xlu0 %v460
    %v462 = vpop.xlane.xlu0 %461
    %v463 = vmax.f32 %v69, %v70
    %464 = vmax.xlane.f32.xlu0 %v463
    %v465 = vpop.xlane.xlu0 %464
    %v466 = vmax.f32 %v71, %v72
    %467 = vmax.xlane.f32.xlu0 %v466
    %v468 = vpop.xlane.xlu0 %467
    %v469 = vmax.f32 %v73, %v74
    %470 = vmax.xlane.f32.xlu0 %v469
    %v471 = vpop.xlane.xlu0 %470
    %v472 = vmax.f32 %v75, %v76
    %473 = vmax.xlane.f32.xlu0 %v472
    %v474 = vpop.xlane.xlu0 %473
    %v475 = vmax.f32 %v77, %v78
    %476 = vmax.xlane.f32.xlu0 %v475
    %v477 = vpop.xlane.xlu0 %476
    %v478 = vmax.f32 %v79, %v80
    %479 = vmax.xlane.f32.xlu0 %v478
    %v480 = vpop.xlane.xlu0 %479
    %v481 = vmax.f32 %v81, %v82
    %482 = vmax.xlane.f32.xlu0 %v481
    %v483 = vpop.xlane.xlu0 %482
    %v484 = vmax.f32 %v83, %v84
    %485 = vmax.xlane.f32.xlu0 %v484
    %v486 = vpop.xlane.xlu0 %485
    %v487 = vmax.f32 %v85, %v86
    %488 = vmax.xlane.f32.xlu0 %v487
    %v489 = vpop.xlane.xlu0 %488
    %v490 = vmax.f32 %v87, %v88
    %491 = vmax.xlane.f32.xlu0 %v490
    %v492 = vpop.xlane.xlu0 %491
    %v493 = vmax.f32 %v89, %v90
    %494 = vmax.xlane.f32.xlu0 %v493
    %v495 = vpop.xlane.xlu0 %494
    %v496 = vmax.f32 %v91, %v92
    %497 = vmax.xlane.f32.xlu0 %v496
    %v498 = vpop.xlane.xlu0 %497
    %v499 = vmax.f32 %v93, %v94
    %500 = vmax.xlane.f32.xlu0 %v499
    %v501 = vpop.xlane.xlu0 %500
    %v502 = vmax.f32 %v95, %v96
    %503 = vmax.xlane.f32.xlu0 %v502
    %v504 = vpop.xlane.xlu0 %503
    %v505 = vmax.f32 %v97, %v98
    %506 = vmax.xlane.f32.xlu0 %v505
    %v507 = vpop.xlane.xlu0 %506
    %v508 = vmax.f32 %v99, %v100
    %509 = vmax.xlane.f32.xlu0 %v508
    %v510 = vpop.xlane.xlu0 %509
    %v511 = vmax.f32 %v101, %v102
    %512 = vmax.xlane.f32.xlu0 %v511
    %v513 = vpop.xlane.xlu0 %512
    %v514 = vmax.f32 %v103, %v104
    %515 = vmax.xlane.f32.xlu0 %v514
    %v516 = vpop.xlane.xlu0 %515
    %v517 = vmax.f32 %v105, %v106
    %518 = vmax.xlane.f32.xlu0 %v517
    %v519 = vpop.xlane.xlu0 %518
    %v520 = vmax.f32 %v107, %v108
    %521 = vmax.xlane.f32.xlu0 %v520
    %v522 = vpop.xlane.xlu0 %521
    %v523 = vmax.f32 %v109, %v110
    %524 = vmax.xlane.f32.xlu0 %v523
    %v525 = vpop.xlane.xlu0 %524
    %v526 = vmax.f32 %v111, %v112
    %527 = vmax.xlane.f32.xlu0 %v526
    %v528 = vpop.xlane.xlu0 %527
    %v529 = vmax.f32 %v113, %v114
    %530 = vmax.xlane.f32.xlu0 %v529
    %v531 = vpop.xlane.xlu0 %530
    %v532 = vmax.f32 %v115, %v116
    %533 = vmax.xlane.f32.xlu0 %v532
    %v534 = vpop.xlane.xlu0 %533
    %v535 = vmax.f32 %v117, %v118
    %536 = vmax.xlane.f32.xlu0 %v535
    %v537 = vpop.xlane.xlu0 %536
    %v538 = vmax.f32 %v119, %v120
    %539 = vmax.xlane.f32.xlu0 %v538
    %v540 = vpop.xlane.xlu0 %539
    %v541 = vmax.f32 %v121, %v122
    %542 = vmax.xlane.f32.xlu0 %v541
    %v543 = vpop.xlane.xlu0 %542
    %v544 = vmax.f32 %v123, %v124
    %545 = vmax.xlane.f32.xlu0 %v544
    %v546 = vpop.xlane.xlu0 %545
    %v547 = vmax.f32 %v125, %v126
    %548 = vmax.xlane.f32.xlu0 %v547
    %v549 = vpop.xlane.xlu0 %548
    %v550 = vmax.f32 %v127, %v128
    %551 = vmax.xlane.f32.xlu0 %v550
    %v552 = vpop.xlane.xlu0 %551
    %v553 = vmax.f32 %v129, %v130
    %554 = vmax.xlane.f32.xlu0 %v553
    %v555 = vpop.xlane.xlu0 %554
    %v556 = vmax.f32 %v131, %v132
    %557 = vmax.xlane.f32.xlu0 %v556
    %v558 = vpop.xlane.xlu0 %557
    %v559 = vmax.f32 %v133, %v134
    %560 = vmax.xlane.f32.xlu0 %v559
    %v561 = vpop.xlane.xlu0 %560
    %v562 = vmax.f32 %v135, %v136
    %563 = vmax.xlane.f32.xlu0 %v562
    %v564 = vpop.xlane.xlu0 %563
    %v565 = vmax.f32 %v137, %v138
    %566 = vmax.xlane.f32.xlu0 %v565
    %v567 = vpop.xlane.xlu0 %566
    %v568 = vmax.f32 %v139, %v140
    %569 = vmax.xlane.f32.xlu0 %v568
    %v570 = vpop.xlane.xlu0 %569
    %v571 = vmax.f32 %v141, %v142
    %572 = vmax.xlane.f32.xlu0 %v571
    %v573 = vpop.xlane.xlu0 %572
    %v574 = vmax.f32 %v143, %v144
    %575 = vmax.xlane.f32.xlu0 %v574
    %v576 = vpop.xlane.xlu0 %575
    %v577 = vmax.f32 %v145, %v146
    %578 = vmax.xlane.f32.xlu0 %v577
    %v579 = vpop.xlane.xlu0 %578
    %v580 = vmax.f32 %v147, %v148
    %581 = vmax.xlane.f32.xlu0 %v580
    %v582 = vpop.xlane.xlu0 %581
    %v583 = vmax.f32 %v149, %v150
    %584 = vmax.xlane.f32.xlu0 %v583
    %v585 = vpop.xlane.xlu0 %584
    %v586 = vmax.f32 %v151, %v152
    %587 = vmax.xlane.f32.xlu0 %v586
    %v588 = vpop.xlane.xlu0 %587
    %v589 = vmax.f32 %v153, %v154
    %590 = vmax.xlane.f32.xlu0 %v589
    %v591 = vpop.xlane.xlu0 %590
    %v592 = vmax.f32 %v155, %v156
    %593 = vmax.xlane.f32.xlu0 %v592
    %v594 = vpop.xlane.xlu0 %593
    %v595 = vmax.f32 %v157, %v158
    %596 = vmax.xlane.f32.xlu0 %v595
    %v597 = vpop.xlane.xlu0 %596
    %v598 = vmax.f32 %v159, %v160
    %599 = vmax.xlane.f32.xlu0 %v598
    %v600 = vpop.xlane.xlu0 %599
    %v601 = vmax.f32 %v161, %v162
    %602 = vmax.xlane.f32.xlu0 %v601
    %v603 = vpop.xlane.xlu0 %602
    %v604 = vmax.f32 %v163, %v164
    %605 = vmax.xlane.f32.xlu0 %v604
    %v606 = vpop.xlane.xlu0 %605
    %v607 = vmax.f32 %v165, %v166
    %608 = vmax.xlane.f32.xlu0 %v607
    %v609 = vpop.xlane.xlu0 %608
    %v610 = vmax.f32 %v167, %v168
    %611 = vmax.xlane.f32.xlu0 %v610
    %v612 = vpop.xlane.xlu0 %611
    %v613 = vmax.f32 %v169, %v170
    %614 = vmax.xlane.f32.xlu0 %v613
    %v615 = vpop.xlane.xlu0 %614
    %v616 = vmax.f32 %v171, %v172
    %617 = vmax.xlane.f32.xlu0 %v616
    %v618 = vpop.xlane.xlu0 %617
    %v619 = vmax.f32 %v173, %v174
    %620 = vmax.xlane.f32.xlu0 %v619
    %v621 = vpop.xlane.xlu0 %620
    %v622 = vmax.f32 %v175, %v176
    %623 = vmax.xlane.f32.xlu0 %v622
    %v624 = vpop.xlane.xlu0 %623
    %v689 = vlaneseq
    %v690 = vand.u32 %v689, 127
    %v691 = vlaneseq
    %v692 = vshrl.u32 %v691, 7
    %v693 = vsub.s32 %v690, %v692
    %v694 = vrot.slane %v369, %v693
    %v695 = vadd.s32 %v690, 4294967288
    %v696 = vlaneseq
    %v697 = vshrl.u32 %v696, 7
    %v698 = vsub.s32 %v695, %v697
    %v699 = vrot.slane %v370, %v698
    %vm700 = vcmask 130112
    %v701 = vsel %vm700, %v699, %v694
    %v702 = vadd.s32 %v690, 4294967280
    %v703 = vlaneseq
    %v704 = vshrl.u32 %v703, 7
    %v705 = vsub.s32 %v702, %v704
    %v706 = vrot.slane %v371, %v705
    %vm707 = vcmask 195712
    %v708 = vsel %vm707, %v706, %v701
    %v709 = vadd.s32 %v690, 4294967272
    %v710 = vlaneseq
    %v711 = vshrl.u32 %v710, 7
    %v712 = vsub.s32 %v709, %v711
    %v713 = vrot.slane %v372, %v712
    %vm714 = vcmask 261312
    %v715 = vsel %vm714, %v713, %v708
    %v716 = vadd.s32 %v690, 4294967264
    %v717 = vlaneseq
    %v718 = vshrl.u32 %v717, 7
    %v719 = vsub.s32 %v716, %v718
    %v720 = vrot.slane %v373, %v719
    %vm721 = vcmask 326912
    %v722 = vsel %vm721, %v720, %v715
    %v723 = vadd.s32 %v690, 4294967256
    %v724 = vlaneseq
    %v725 = vshrl.u32 %v724, 7
    %v726 = vsub.s32 %v723, %v725
    %v727 = vrot.slane %v374, %v726
    %vm728 = vcmask 392512
    %v729 = vsel %vm728, %v727, %v722
    %v730 = vadd.s32 %v690, 4294967248
    %v731 = vlaneseq
    %v732 = vshrl.u32 %v731, 7
    %v733 = vsub.s32 %v730, %v732
    %v734 = vrot.slane %v375, %v733
    %vm735 = vcmask 458112
    %v736 = vsel %vm735, %v734, %v729
    %v737 = vadd.s32 %v690, 4294967240
    %v738 = vlaneseq
    %v739 = vshrl.u32 %v738, 7
    %v740 = vsub.s32 %v737, %v739
    %v741 = vrot.slane %v376, %v740
    %vm742 = vcmask 523712
    %v743 = vsel %vm742, %v741, %v736
    %v744 = vadd.s32 %v690, 4294967232
    %v745 = vlaneseq
    %v746 = vshrl.u32 %v745, 7
    %v747 = vsub.s32 %v744, %v746
    %v748 = vrot.slane %v377, %v747
    %vm749 = vcmask 589312
    %v750 = vsel %vm749, %v748, %v743
    %v751 = vadd.s32 %v690, 4294967224
    %v752 = vlaneseq
    %v753 = vshrl.u32 %v752, 7
    %v754 = vsub.s32 %v751, %v753
    %v755 = vrot.slane %v378, %v754
    %vm756 = vcmask 654912
    %v757 = vsel %vm756, %v755, %v750
    %v758 = vadd.s32 %v690, 4294967216
    %v759 = vlaneseq
    %v760 = vshrl.u32 %v759, 7
    %v761 = vsub.s32 %v758, %v760
    %v762 = vrot.slane %v379, %v761
    %vm763 = vcmask 720512
    %v764 = vsel %vm763, %v762, %v757
    %v765 = vadd.s32 %v690, 4294967208
    %v766 = vlaneseq
    %v767 = vshrl.u32 %v766, 7
    %v768 = vsub.s32 %v765, %v767
    %v769 = vrot.slane %v380, %v768
    %vm770 = vcmask 786112
    %v771 = vsel %vm770, %v769, %v764
    %v772 = vadd.s32 %v690, 4294967200
    %v773 = vlaneseq
    %v774 = vshrl.u32 %v773, 7
    %v775 = vsub.s32 %v772, %v774
    %v776 = vrot.slane %v381, %v775
    %vm777 = vcmask 851712
    %v778 = vsel %vm777, %v776, %v771
    %v779 = vadd.s32 %v690, 4294967192
    %v780 = vlaneseq
    %v781 = vshrl.u32 %v780, 7
    %v782 = vsub.s32 %v779, %v781
    %v783 = vrot.slane %v382, %v782
    %vm784 = vcmask 917312
    %v785 = vsel %vm784, %v783, %v778
    %v786 = vadd.s32 %v690, 4294967184
    %v787 = vlaneseq
    %v788 = vshrl.u32 %v787, 7
    %v789 = vsub.s32 %v786, %v788
    %v790 = vrot.slane %v383, %v789
    %vm791 = vcmask 982912
    %v792 = vsel %vm791, %v790, %v785
    %v793 = vadd.s32 %v690, 4294967176
    %v794 = vlaneseq
    %v795 = vshrl.u32 %v794, 7
    %v796 = vsub.s32 %v793, %v795
    %v797 = vrot.slane %v384, %v796
    %vm798 = vcmask 1048512
    %v799 = vsel %vm798, %v797, %v792
    %v800 = vlaneseq
    %v801 = vshrl.u32 %v800, 7
    %v802 = vsub.s32 %v690, %v801
    %v803 = vrot.slane %v385, %v802
    %v804 = vlaneseq
    %v805 = vshrl.u32 %v804, 7
    %v806 = vsub.s32 %v695, %v805
    %v807 = vrot.slane %v386, %v806
    %v808 = vsel %vm700, %v807, %v803
    %v809 = vlaneseq
    %v810 = vshrl.u32 %v809, 7
    %v811 = vsub.s32 %v702, %v810
    %v812 = vrot.slane %v387, %v811
    %v813 = vsel %vm707, %v812, %v808
    %v814 = vlaneseq
    %v815 = vshrl.u32 %v814, 7
    %v816 = vsub.s32 %v709, %v815
    %v817 = vrot.slane %v388, %v816
    %v818 = vsel %vm714, %v817, %v813
    %v819 = vlaneseq
    %v820 = vshrl.u32 %v819, 7
    %v821 = vsub.s32 %v716, %v820
    %v822 = vrot.slane %v389, %v821
    %v823 = vsel %vm721, %v822, %v818
    %v824 = vlaneseq
    %v825 = vshrl.u32 %v824, 7
    %v826 = vsub.s32 %v723, %v825
    %v827 = vrot.slane %v390, %v826
    %v828 = vsel %vm728, %v827, %v823
    %v829 = vlaneseq
    %v830 = vshrl.u32 %v829, 7
    %v831 = vsub.s32 %v730, %v830
    %v832 = vrot.slane %v391, %v831
    %v833 = vsel %vm735, %v832, %v828
    %v834 = vlaneseq
    %v835 = vshrl.u32 %v834, 7
    %v836 = vsub.s32 %v737, %v835
    %v837 = vrot.slane %v392, %v836
    %v838 = vsel %vm742, %v837, %v833
    %v839 = vlaneseq
    %v840 = vshrl.u32 %v839, 7
    %v841 = vsub.s32 %v744, %v840
    %v842 = vrot.slane %v393, %v841
    %v843 = vsel %vm749, %v842, %v838
    %v844 = vlaneseq
    %v845 = vshrl.u32 %v844, 7
    %v846 = vsub.s32 %v751, %v845
    %v847 = vrot.slane %v394, %v846
    %v848 = vsel %vm756, %v847, %v843
    %v849 = vlaneseq
    %v850 = vshrl.u32 %v849, 7
    %v851 = vsub.s32 %v758, %v850
    %v852 = vrot.slane %v395, %v851
    %v853 = vsel %vm763, %v852, %v848
    %v854 = vlaneseq
    %v855 = vshrl.u32 %v854, 7
    %v856 = vsub.s32 %v765, %v855
    %v857 = vrot.slane %v396, %v856
    %v858 = vsel %vm770, %v857, %v853
    %v859 = vlaneseq
    %v860 = vshrl.u32 %v859, 7
    %v861 = vsub.s32 %v772, %v860
    %v862 = vrot.slane %v397, %v861
    %v863 = vsel %vm777, %v862, %v858
    %v864 = vlaneseq
    %v865 = vshrl.u32 %v864, 7
    %v866 = vsub.s32 %v779, %v865
    %v867 = vrot.slane %v398, %v866
    %v868 = vsel %vm784, %v867, %v863
    %v869 = vlaneseq
    %v870 = vshrl.u32 %v869, 7
    %v871 = vsub.s32 %v786, %v870
    %v872 = vrot.slane %v399, %v871
    %v873 = vsel %vm791, %v872, %v868
    %v874 = vlaneseq
    %v875 = vshrl.u32 %v874, 7
    %v876 = vsub.s32 %v793, %v875
    %v877 = vrot.slane %v400, %v876
    %v878 = vsel %vm798, %v877, %v873
    %v879 = vlaneseq
    %v880 = vshrl.u32 %v879, 7
    %v881 = vsub.s32 %v690, %v880
    %v882 = vrot.slane %v401, %v881
    %v883 = vlaneseq
    %v884 = vshrl.u32 %v883, 7
    %v885 = vsub.s32 %v695, %v884
    %v886 = vrot.slane %v402, %v885
    %v887 = vsel %vm700, %v886, %v882
    %v888 = vlaneseq
    %v889 = vshrl.u32 %v888, 7
    %v890 = vsub.s32 %v702, %v889
    %v891 = vrot.slane %v403, %v890
    %v892 = vsel %vm707, %v891, %v887
    %v893 = vlaneseq
    %v894 = vshrl.u32 %v893, 7
    %v895 = vsub.s32 %v709, %v894
    %v896 = vrot.slane %v404, %v895
    %v897 = vsel %vm714, %v896, %v892
    %v898 = vlaneseq
    %v899 = vshrl.u32 %v898, 7
    %v900 = vsub.s32 %v716, %v899
    %v901 = vrot.slane %v405, %v900
    %v902 = vsel %vm721, %v901, %v897
    %v903 = vlaneseq
    %v904 = vshrl.u32 %v903, 7
    %v905 = vsub.s32 %v723, %v904
    %v906 = vrot.slane %v406, %v905
    %v907 = vsel %vm728, %v906, %v902
    %v908 = vlaneseq
    %v909 = vshrl.u32 %v908, 7
    %v910 = vsub.s32 %v730, %v909
    %v911 = vrot.slane %v407, %v910
    %v912 = vsel %vm735, %v911, %v907
    %v913 = vlaneseq
    %v914 = vshrl.u32 %v913, 7
    %v915 = vsub.s32 %v737, %v914
    %v916 = vrot.slane %v408, %v915
    %v917 = vsel %vm742, %v916, %v912
    %v918 = vlaneseq
    %v919 = vshrl.u32 %v918, 7
    %v920 = vsub.s32 %v744, %v919
    %v921 = vrot.slane %v409, %v920
    %v922 = vsel %vm749, %v921, %v917
    %v923 = vlaneseq
    %v924 = vshrl.u32 %v923, 7
    %v925 = vsub.s32 %v751, %v924
    %v926 = vrot.slane %v410, %v925
    %v927 = vsel %vm756, %v926, %v922
    %v928 = vlaneseq
    %v929 = vshrl.u32 %v928, 7
    %v930 = vsub.s32 %v758, %v929
    %v931 = vrot.slane %v411, %v930
    %v932 = vsel %vm763, %v931, %v927
    %v933 = vlaneseq
    %v934 = vshrl.u32 %v933, 7
    %v935 = vsub.s32 %v765, %v934
    %v936 = vrot.slane %v412, %v935
    %v937 = vsel %vm770, %v936, %v932
    %v938 = vlaneseq
    %v939 = vshrl.u32 %v938, 7
    %v940 = vsub.s32 %v772, %v939
    %v941 = vrot.slane %v413, %v940
    %v942 = vsel %vm777, %v941, %v937
    %v943 = vlaneseq
    %v944 = vshrl.u32 %v943, 7
    %v945 = vsub.s32 %v779, %v944
    %v946 = vrot.slane %v414, %v945
    %v947 = vsel %vm784, %v946, %v942
    %v948 = vlaneseq
    %v949 = vshrl.u32 %v948, 7
    %v950 = vsub.s32 %v786, %v949
    %v951 = vrot.slane %v415, %v950
    %v952 = vsel %vm791, %v951, %v947
    %v953 = vlaneseq
    %v954 = vshrl.u32 %v953, 7
    %v955 = vsub.s32 %v793, %v954
    %v956 = vrot.slane %v416, %v955
    %v957 = vsel %vm798, %v956, %v952
    %v958 = vlaneseq
    %v959 = vshrl.u32 %v958, 7
    %v960 = vsub.s32 %v690, %v959
    %v961 = vrot.slane %v417, %v960
    %v962 = vlaneseq
    %v963 = vshrl.u32 %v962, 7
    %v964 = vsub.s32 %v695, %v963
    %v965 = vrot.slane %v418, %v964
    %v966 = vsel %vm700, %v965, %v961
    %v967 = vlaneseq
    %v968 = vshrl.u32 %v967, 7
    %v969 = vsub.s32 %v702, %v968
    %v970 = vrot.slane %v419, %v969
    %v971 = vsel %vm707, %v970, %v966
    %v972 = vlaneseq
    %v973 = vshrl.u32 %v972, 7
    %v974 = vsub.s32 %v709, %v973
    %v975 = vrot.slane %v420, %v974
    %v976 = vsel %vm714, %v975, %v971
    %v977 = vlaneseq
    %v978 = vshrl.u32 %v977, 7
    %v979 = vsub.s32 %v716, %v978
    %v980 = vrot.slane %v421, %v979
    %v981 = vsel %vm721, %v980, %v976
    %v982 = vlaneseq
    %v983 = vshrl.u32 %v982, 7
    %v984 = vsub.s32 %v723, %v983
    %v985 = vrot.slane %v422, %v984
    %v986 = vsel %vm728, %v985, %v981
    %v987 = vlaneseq
    %v988 = vshrl.u32 %v987, 7
    %v989 = vsub.s32 %v730, %v988
    %v990 = vrot.slane %v423, %v989
    %v991 = vsel %vm735, %v990, %v986
    %v992 = vlaneseq
    %v993 = vshrl.u32 %v992, 7
    %v994 = vsub.s32 %v737, %v993
    %v995 = vrot.slane %v424, %v994
    %v996 = vsel %vm742, %v995, %v991
    %v997 = vlaneseq
    %v998 = vshrl.u32 %v997, 7
    %v999 = vsub.s32 %v744, %v998
    %v1000 = vrot.slane %v425, %v999
    %v1001 = vsel %vm749, %v1000, %v996
    %v1002 = vlaneseq
    %v1003 = vshrl.u32 %v1002, 7
    %v1004 = vsub.s32 %v751, %v1003
    %v1005 = vrot.slane %v426, %v1004
    %v1006 = vsel %vm756, %v1005, %v1001
    %v1007 = vlaneseq
    %v1008 = vshrl.u32 %v1007, 7
    %v1009 = vsub.s32 %v758, %v1008
    %v1010 = vrot.slane %v427, %v1009
    %v1011 = vsel %vm763, %v1010, %v1006
    %v1012 = vlaneseq
    %v1013 = vshrl.u32 %v1012, 7
    %v1014 = vsub.s32 %v765, %v1013
    %v1015 = vrot.slane %v428, %v1014
    %v1016 = vsel %vm770, %v1015, %v1011
    %v1017 = vlaneseq
    %v1018 = vshrl.u32 %v1017, 7
    %v1019 = vsub.s32 %v772, %v1018
    %v1020 = vrot.slane %v429, %v1019
    %v1021 = vsel %vm777, %v1020, %v1016
    %v1022 = vlaneseq
    %v1023 = vshrl.u32 %v1022, 7
    %v1024 = vsub.s32 %v779, %v1023
    %v1025 = vrot.slane %v430, %v1024
    %v1026 = vsel %vm784, %v1025, %v1021
    %v1027 = vlaneseq
    %v1028 = vshrl.u32 %v1027, 7
    %v1029 = vsub.s32 %v786, %v1028
    %v1030 = vrot.slane %v431, %v1029
    %v1031 = vsel %vm791, %v1030, %v1026
    %v1032 = vlaneseq
    %v1033 = vshrl.u32 %v1032, 7
    %v1034 = vsub.s32 %v793, %v1033
    %v1035 = vrot.slane %v432, %v1034
    %v1036 = vsel %vm798, %v1035, %v1031
    %vm1037 = vcmask 1041409
    %v1038 = vsel %vm1037, %v957, %v799
    %v1039 = vsel %vm1037, %v1036, %v878
    %v1106 = vlaneseq
    %v1107 = vshrl.u32 %v1106, 7
    %v1108 = vsub.s32 %v690, %v1107
    %v1109 = vrot.slane %v435, %v1108
    %v1110 = vlaneseq
    %v1111 = vshrl.u32 %v1110, 7
    %v1112 = vsub.s32 %v695, %v1111
    %v1113 = vrot.slane %v438, %v1112
    %v1114 = vsel %vm700, %v1113, %v1109
    %v1115 = vlaneseq
    %v1116 = vshrl.u32 %v1115, 7
    %v1117 = vsub.s32 %v702, %v1116
    %v1118 = vrot.slane %v441, %v1117
    %v1119 = vsel %vm707, %v1118, %v1114
    %v1120 = vlaneseq
    %v1121 = vshrl.u32 %v1120, 7
    %v1122 = vsub.s32 %v709, %v1121
    %v1123 = vrot.slane %v444, %v1122
    %v1124 = vsel %vm714, %v1123, %v1119
    %v1125 = vlaneseq
    %v1126 = vshrl.u32 %v1125, 7
    %v1127 = vsub.s32 %v716, %v1126
    %v1128 = vrot.slane %v447, %v1127
    %v1129 = vsel %vm721, %v1128, %v1124
    %v1130 = vlaneseq
    %v1131 = vshrl.u32 %v1130, 7
    %v1132 = vsub.s32 %v723, %v1131
    %v1133 = vrot.slane %v450, %v1132
    %v1134 = vsel %vm728, %v1133, %v1129
    %v1135 = vlaneseq
    %v1136 = vshrl.u32 %v1135, 7
    %v1137 = vsub.s32 %v730, %v1136
    %v1138 = vrot.slane %v453, %v1137
    %v1139 = vsel %vm735, %v1138, %v1134
    %v1140 = vlaneseq
    %v1141 = vshrl.u32 %v1140, 7
    %v1142 = vsub.s32 %v737, %v1141
    %v1143 = vrot.slane %v456, %v1142
    %v1144 = vsel %vm742, %v1143, %v1139
    %v1145 = vlaneseq
    %v1146 = vshrl.u32 %v1145, 7
    %v1147 = vsub.s32 %v744, %v1146
    %v1148 = vrot.slane %v459, %v1147
    %v1149 = vsel %vm749, %v1148, %v1144
    %v1150 = vlaneseq
    %v1151 = vshrl.u32 %v1150, 7
    %v1152 = vsub.s32 %v751, %v1151
    %v1153 = vrot.slane %v462, %v1152
    %v1154 = vsel %vm756, %v1153, %v1149
    %v1155 = vlaneseq
    %v1156 = vshrl.u32 %v1155, 7
    %v1157 = vsub.s32 %v758, %v1156
    %v1158 = vrot.slane %v465, %v1157
    %v1159 = vsel %vm763, %v1158, %v1154
    %v1160 = vlaneseq
    %v1161 = vshrl.u32 %v1160, 7
    %v1162 = vsub.s32 %v765, %v1161
    %v1163 = vrot.slane %v468, %v1162
    %v1164 = vsel %vm770, %v1163, %v1159
    %v1165 = vlaneseq
    %v1166 = vshrl.u32 %v1165, 7
    %v1167 = vsub.s32 %v772, %v1166
    %v1168 = vrot.slane %v471, %v1167
    %v1169 = vsel %vm777, %v1168, %v1164
    %v1170 = vlaneseq
    %v1171 = vshrl.u32 %v1170, 7
    %v1172 = vsub.s32 %v779, %v1171
    %v1173 = vrot.slane %v474, %v1172
    %v1174 = vsel %vm784, %v1173, %v1169
    %v1175 = vlaneseq
    %v1176 = vshrl.u32 %v1175, 7
    %v1177 = vsub.s32 %v786, %v1176
    %v1178 = vrot.slane %v477, %v1177
    %v1179 = vsel %vm791, %v1178, %v1174
    %v1180 = vlaneseq
    %v1181 = vshrl.u32 %v1180, 7
    %v1182 = vsub.s32 %v793, %v1181
    %v1183 = vrot.slane %v480, %v1182
    %v1184 = vsel %vm798, %v1183, %v1179
    %v1185 = vlaneseq
    %v1186 = vshrl.u32 %v1185, 7
    %v1187 = vsub.s32 %v690, %v1186
    %v1188 = vrot.slane %v483, %v1187
    %v1189 = vlaneseq
    %v1190 = vshrl.u32 %v1189, 7
    %v1191 = vsub.s32 %v695, %v1190
    %v1192 = vrot.slane %v486, %v1191
    %v1193 = vsel %vm700, %v1192, %v1188
    %v1194 = vlaneseq
    %v1195 = vshrl.u32 %v1194, 7
    %v1196 = vsub.s32 %v702, %v1195
    %v1197 = vrot.slane %v489, %v1196
    %v1198 = vsel %vm707, %v1197, %v1193
    %v1199 = vlaneseq
    %v1200 = vshrl.u32 %v1199, 7
    %v1201 = vsub.s32 %v709, %v1200
    %v1202 = vrot.slane %v492, %v1201
    %v1203 = vsel %vm714, %v1202, %v1198
    %v1204 = vlaneseq
    %v1205 = vshrl.u32 %v1204, 7
    %v1206 = vsub.s32 %v716, %v1205
    %v1207 = vrot.slane %v495, %v1206
    %v1208 = vsel %vm721, %v1207, %v1203
    %v1209 = vlaneseq
    %v1210 = vshrl.u32 %v1209, 7
    %v1211 = vsub.s32 %v723, %v1210
    %v1212 = vrot.slane %v498, %v1211
    %v1213 = vsel %vm728, %v1212, %v1208
    %v1214 = vlaneseq
    %v1215 = vshrl.u32 %v1214, 7
    %v1216 = vsub.s32 %v730, %v1215
    %v1217 = vrot.slane %v501, %v1216
    %v1218 = vsel %vm735, %v1217, %v1213
    %v1219 = vlaneseq
    %v1220 = vshrl.u32 %v1219, 7
    %v1221 = vsub.s32 %v737, %v1220
    %v1222 = vrot.slane %v504, %v1221
    %v1223 = vsel %vm742, %v1222, %v1218
    %v1224 = vlaneseq
    %v1225 = vshrl.u32 %v1224, 7
    %v1226 = vsub.s32 %v744, %v1225
    %v1227 = vrot.slane %v507, %v1226
    %v1228 = vsel %vm749, %v1227, %v1223
    %v1229 = vlaneseq
    %v1230 = vshrl.u32 %v1229, 7
    %v1231 = vsub.s32 %v751, %v1230
    %v1232 = vrot.slane %v510, %v1231
    %v1233 = vsel %vm756, %v1232, %v1228
    %v1234 = vlaneseq
    %v1235 = vshrl.u32 %v1234, 7
    %v1236 = vsub.s32 %v758, %v1235
    %v1237 = vrot.slane %v513, %v1236
    %v1238 = vsel %vm763, %v1237, %v1233
    %v1239 = vlaneseq
    %v1240 = vshrl.u32 %v1239, 7
    %v1241 = vsub.s32 %v765, %v1240
    %v1242 = vrot.slane %v516, %v1241
    %v1243 = vsel %vm770, %v1242, %v1238
    %v1244 = vlaneseq
    %v1245 = vshrl.u32 %v1244, 7
    %v1246 = vsub.s32 %v772, %v1245
    %v1247 = vrot.slane %v519, %v1246
    %v1248 = vsel %vm777, %v1247, %v1243
    %v1249 = vlaneseq
    %v1250 = vshrl.u32 %v1249, 7
    %v1251 = vsub.s32 %v779, %v1250
    %v1252 = vrot.slane %v522, %v1251
    %v1253 = vsel %vm784, %v1252, %v1248
    %v1254 = vlaneseq
    %v1255 = vshrl.u32 %v1254, 7
    %v1256 = vsub.s32 %v786, %v1255
    %v1257 = vrot.slane %v525, %v1256
    %v1258 = vsel %vm791, %v1257, %v1253
    %v1259 = vlaneseq
    %v1260 = vshrl.u32 %v1259, 7
    %v1261 = vsub.s32 %v793, %v1260
    %v1262 = vrot.slane %v528, %v1261
    %v1263 = vsel %vm798, %v1262, %v1258
    %v1264 = vlaneseq
    %v1265 = vshrl.u32 %v1264, 7
    %v1266 = vsub.s32 %v690, %v1265
    %v1267 = vrot.slane %v531, %v1266
    %v1268 = vlaneseq
    %v1269 = vshrl.u32 %v1268, 7
    %v1270 = vsub.s32 %v695, %v1269
    %v1271 = vrot.slane %v534, %v1270
    %v1272 = vsel %vm700, %v1271, %v1267
    %v1273 = vlaneseq
    %v1274 = vshrl.u32 %v1273, 7
    %v1275 = vsub.s32 %v702, %v1274
    %v1276 = vrot.slane %v537, %v1275
    %v1277 = vsel %vm707, %v1276, %v1272
    %v1278 = vlaneseq
    %v1279 = vshrl.u32 %v1278, 7
    %v1280 = vsub.s32 %v709, %v1279
    %v1281 = vrot.slane %v540, %v1280
    %v1282 = vsel %vm714, %v1281, %v1277
    %v1283 = vlaneseq
    %v1284 = vshrl.u32 %v1283, 7
    %v1285 = vsub.s32 %v716, %v1284
    %v1286 = vrot.slane %v543, %v1285
    %v1287 = vsel %vm721, %v1286, %v1282
    %v1288 = vlaneseq
    %v1289 = vshrl.u32 %v1288, 7
    %v1290 = vsub.s32 %v723, %v1289
    %v1291 = vrot.slane %v546, %v1290
    %v1292 = vsel %vm728, %v1291, %v1287
    %v1293 = vlaneseq
    %v1294 = vshrl.u32 %v1293, 7
    %v1295 = vsub.s32 %v730, %v1294
    %v1296 = vrot.slane %v549, %v1295
    %v1297 = vsel %vm735, %v1296, %v1292
    %v1298 = vlaneseq
    %v1299 = vshrl.u32 %v1298, 7
    %v1300 = vsub.s32 %v737, %v1299
    %v1301 = vrot.slane %v552, %v1300
    %v1302 = vsel %vm742, %v1301, %v1297
    %v1303 = vlaneseq
    %v1304 = vshrl.u32 %v1303, 7
    %v1305 = vsub.s32 %v744, %v1304
    %v1306 = vrot.slane %v555, %v1305
    %v1307 = vsel %vm749, %v1306, %v1302
    %v1308 = vlaneseq
    %v1309 = vshrl.u32 %v1308, 7
    %v1310 = vsub.s32 %v751, %v1309
    %v1311 = vrot.slane %v558, %v1310
    %v1312 = vsel %vm756, %v1311, %v1307
    %v1313 = vlaneseq
    %v1314 = vshrl.u32 %v1313, 7
    %v1315 = vsub.s32 %v758, %v1314
    %v1316 = vrot.slane %v561, %v1315
    %v1317 = vsel %vm763, %v1316, %v1312
    %v1318 = vlaneseq
    %v1319 = vshrl.u32 %v1318, 7
    %v1320 = vsub.s32 %v765, %v1319
    %v1321 = vrot.slane %v564, %v1320
    %v1322 = vsel %vm770, %v1321, %v1317
    %v1323 = vlaneseq
    %v1324 = vshrl.u32 %v1323, 7
    %v1325 = vsub.s32 %v772, %v1324
    %v1326 = vrot.slane %v567, %v1325
    %v1327 = vsel %vm777, %v1326, %v1322
    %v1328 = vlaneseq
    %v1329 = vshrl.u32 %v1328, 7
    %v1330 = vsub.s32 %v779, %v1329
    %v1331 = vrot.slane %v570, %v1330
    %v1332 = vsel %vm784, %v1331, %v1327
    %v1333 = vlaneseq
    %v1334 = vshrl.u32 %v1333, 7
    %v1335 = vsub.s32 %v786, %v1334
    %v1336 = vrot.slane %v573, %v1335
    %v1337 = vsel %vm791, %v1336, %v1332
    %v1338 = vlaneseq
    %v1339 = vshrl.u32 %v1338, 7
    %v1340 = vsub.s32 %v793, %v1339
    %v1341 = vrot.slane %v576, %v1340
    %v1342 = vsel %vm798, %v1341, %v1337
    %v1343 = vlaneseq
    %v1344 = vshrl.u32 %v1343, 7
    %v1345 = vsub.s32 %v690, %v1344
    %v1346 = vrot.slane %v579, %v1345
    %v1347 = vlaneseq
    %v1348 = vshrl.u32 %v1347, 7
    %v1349 = vsub.s32 %v695, %v1348
    %v1350 = vrot.slane %v582, %v1349
    %v1351 = vsel %vm700, %v1350, %v1346
    %v1352 = vlaneseq
    %v1353 = vshrl.u32 %v1352, 7
    %v1354 = vsub.s32 %v702, %v1353
    %v1355 = vrot.slane %v585, %v1354
    %v1356 = vsel %vm707, %v1355, %v1351
    %v1357 = vlaneseq
    %v1358 = vshrl.u32 %v1357, 7
    %v1359 = vsub.s32 %v709, %v1358
    %v1360 = vrot.slane %v588, %v1359
    %v1361 = vsel %vm714, %v1360, %v1356
    %v1362 = vlaneseq
    %v1363 = vshrl.u32 %v1362, 7
    %v1364 = vsub.s32 %v716, %v1363
    %v1365 = vrot.slane %v591, %v1364
    %v1366 = vsel %vm721, %v1365, %v1361
    %v1367 = vlaneseq
    %v1368 = vshrl.u32 %v1367, 7
    %v1369 = vsub.s32 %v723, %v1368
    %v1370 = vrot.slane %v594, %v1369
    %v1371 = vsel %vm728, %v1370, %v1366
    %v1372 = vlaneseq
    %v1373 = vshrl.u32 %v1372, 7
    %v1374 = vsub.s32 %v730, %v1373
    %v1375 = vrot.slane %v597, %v1374
    %v1376 = vsel %vm735, %v1375, %v1371
    %v1377 = vlaneseq
    %v1378 = vshrl.u32 %v1377, 7
    %v1379 = vsub.s32 %v737, %v1378
    %v1380 = vrot.slane %v600, %v1379
    %v1381 = vsel %vm742, %v1380, %v1376
    %v1382 = vlaneseq
    %v1383 = vshrl.u32 %v1382, 7
    %v1384 = vsub.s32 %v744, %v1383
    %v1385 = vrot.slane %v603, %v1384
    %v1386 = vsel %vm749, %v1385, %v1381
    %v1387 = vlaneseq
    %v1388 = vshrl.u32 %v1387, 7
    %v1389 = vsub.s32 %v751, %v1388
    %v1390 = vrot.slane %v606, %v1389
    %v1391 = vsel %vm756, %v1390, %v1386
    %v1392 = vlaneseq
    %v1393 = vshrl.u32 %v1392, 7
    %v1394 = vsub.s32 %v758, %v1393
    %v1395 = vrot.slane %v609, %v1394
    %v1396 = vsel %vm763, %v1395, %v1391
    %v1397 = vlaneseq
    %v1398 = vshrl.u32 %v1397, 7
    %v1399 = vsub.s32 %v765, %v1398
    %v1400 = vrot.slane %v612, %v1399
    %v1401 = vsel %vm770, %v1400, %v1396
    %v1402 = vlaneseq
    %v1403 = vshrl.u32 %v1402, 7
    %v1404 = vsub.s32 %v772, %v1403
    %v1405 = vrot.slane %v615, %v1404
    %v1406 = vsel %vm777, %v1405, %v1401
    %v1407 = vlaneseq
    %v1408 = vshrl.u32 %v1407, 7
    %v1409 = vsub.s32 %v779, %v1408
    %v1410 = vrot.slane %v618, %v1409
    %v1411 = vsel %vm784, %v1410, %v1406
    %v1412 = vlaneseq
    %v1413 = vshrl.u32 %v1412, 7
    %v1414 = vsub.s32 %v786, %v1413
    %v1415 = vrot.slane %v621, %v1414
    %v1416 = vsel %vm791, %v1415, %v1411
    %v1417 = vlaneseq
    %v1418 = vshrl.u32 %v1417, 7
    %v1419 = vsub.s32 %v793, %v1418
    %v1420 = vrot.slane %v624, %v1419
    %v1421 = vsel %vm798, %v1420, %v1416
    %vm1422 = vcmask 1043459
    %v1423 = vsel %vm1422, %v1342, %v1184
    %v1424 = vsel %vm1422, %v1421, %v1263
    %vm1427 = vcmask 1041408
    %v1428 = vsel %vm1427, %v1038, %v1423
    %v1429 = vsel %vm1427, %v1039, %v1424
    %v1430 = vld [vmem:[%s1] sm:$0xff]
    %v1431 = vld [vmem:[%s1 + $0x8] sm:$0xff]
    %v1432 = vld [vmem:[%s1 + $0x10] sm:$0xff]
    %v1433 = vld [vmem:[%s1 + $0x18] sm:$0xff]
    %v1434 = vld [vmem:[%s1 + $0x20] sm:$0xff]
    %v1435 = vld [vmem:[%s1 + $0x28] sm:$0xff]
    %v1436 = vld [vmem:[%s1 + $0x30] sm:$0xff]
    %v1437 = vld [vmem:[%s1 + $0x38] sm:$0xff]
    %v1438 = vld [vmem:[%s1 + $0x40] sm:$0xff]
    %v1439 = vld [vmem:[%s1 + $0x48] sm:$0xff]
    %v1440 = vld [vmem:[%s1 + $0x50] sm:$0xff]
    %v1441 = vld [vmem:[%s1 + $0x58] sm:$0xff]
    %v1442 = vld [vmem:[%s1 + $0x60] sm:$0xff]
    %v1443 = vld [vmem:[%s1 + $0x68] sm:$0xff]
    %v1444 = vld [vmem:[%s1 + $0x70] sm:$0xff]
    %v1445 = vld [vmem:[%s1 + $0x78] sm:$0xff]
    %v1446 = vld [vmem:[%s1 + $0x80] sm:$0xff]
    %v1447 = vld [vmem:[%s1 + $0x88] sm:$0xff]
    %v1448 = vld [vmem:[%s1 + $0x90] sm:$0xff]
    %v1449 = vld [vmem:[%s1 + $0x98] sm:$0xff]
    %v1450 = vld [vmem:[%s1 + $0xa0] sm:$0xff]
    %v1451 = vld [vmem:[%s1 + $0xa8] sm:$0xff]
    %v1452 = vld [vmem:[%s1 + $0xb0] sm:$0xff]
    %v1453 = vld [vmem:[%s1 + $0xb8] sm:$0xff]
    %v1454 = vld [vmem:[%s1 + $0xc0] sm:$0xff]
    %v1455 = vld [vmem:[%s1 + $0xc8] sm:$0xff]
    %v1456 = vld [vmem:[%s1 + $0xd0] sm:$0xff]
    %v1457 = vld [vmem:[%s1 + $0xd8] sm:$0xff]
    %v1458 = vld [vmem:[%s1 + $0xe0] sm:$0xff]
    %v1459 = vld [vmem:[%s1 + $0xe8] sm:$0xff]
    %v1460 = vld [vmem:[%s1 + $0xf0] sm:$0xff]
    %v1461 = vld [vmem:[%s1 + $0xf8] sm:$0xff]
    %1462 = vmatprep.subr.mxu0 0.0
    %v1463 = vand.u32 %v1430, 4294901760
    %1464 = vmatpush1.msra.mxu0 %v1463
    %1465 = vmatprep.subr.mxu0 0.0
    %v1466 = vand.u32 %v1431, 4294901760
    %1467 = vmatpush1.msra.mxu0 %v1466
    %1468 = vmatprep.subr.mxu0 0.0
    %v1469 = vand.u32 %v1432, 4294901760
    %1470 = vmatpush1.msra.mxu0 %v1469
    %1471 = vmatprep.subr.mxu0 0.0
    %v1472 = vand.u32 %v1433, 4294901760
    %1473 = vmatpush1.msra.mxu0 %v1472
    %1474 = vmatprep.subr.mxu0 0.0
    %v1475 = vand.u32 %v1434, 4294901760
    %1476 = vmatpush1.msra.mxu0 %v1475
    %1477 = vmatprep.subr.mxu0 0.0
    %v1478 = vand.u32 %v1435, 4294901760
    %1479 = vmatpush1.msra.mxu0 %v1478
    %1480 = vmatprep.subr.mxu0 0.0
    %v1481 = vand.u32 %v1436, 4294901760
    %1482 = vmatpush1.msra.mxu0 %v1481
    %1483 = vmatprep.subr.mxu0 0.0
    %v1484 = vand.u32 %v1437, 4294901760
    %1485 = vmatpush1.msra.mxu0 %v1484
    %1486 = vmatprep.subr.mxu0 0.0
    %v1487 = vand.u32 %v1438, 4294901760
    %1488 = vmatpush1.msra.mxu0 %v1487
    %1489 = vmatprep.subr.mxu0 0.0
    %v1490 = vand.u32 %v1439, 4294901760
    %1491 = vmatpush1.msra.mxu0 %v1490
    %1492 = vmatprep.subr.mxu0 0.0
    %v1493 = vand.u32 %v1440, 4294901760
    %1494 = vmatpush1.msra.mxu0 %v1493
    %1495 = vmatprep.subr.mxu0 0.0
    %v1496 = vand.u32 %v1441, 4294901760
    %1497 = vmatpush1.msra.mxu0 %v1496
    %1498 = vmatprep.subr.mxu0 0.0
    %v1499 = vand.u32 %v1442, 4294901760
    %1500 = vmatpush1.msra.mxu0 %v1499
    %1501 = vmatprep.subr.mxu0 0.0
    %v1502 = vand.u32 %v1443, 4294901760
    %1503 = vmatpush1.msra.mxu0 %v1502
    %1504 = vmatprep.subr.mxu0 0.0
    %v1505 = vand.u32 %v1444, 4294901760
    %1506 = vmatpush1.msra.mxu0 %v1505
    %1507 = vmatprep.subr.mxu0 0.0
    %v1508 = vand.u32 %v1445, 4294901760
    %1509 = vmatpush1.msra.mxu0 %v1508
    %1510 = vmatprep.subr.mxu0 0.0
    %v1511 = vand.u32 %v1446, 4294901760
    %1512 = vmatpush1.msra.mxu0 %v1511
    %1513 = vmatprep.subr.mxu0 0.0
    %v1514 = vand.u32 %v1447, 4294901760
    %1515 = vmatpush1.msra.mxu0 %v1514
    %1516 = vmatprep.subr.mxu0 0.0
    %v1517 = vand.u32 %v1448, 4294901760
    %1518 = vmatpush1.msra.mxu0 %v1517
    %1519 = vmatprep.subr.mxu0 0.0
    %v1520 = vand.u32 %v1449, 4294901760
    %1521 = vmatpush1.msra.mxu0 %v1520
    %1522 = vmatprep.subr.mxu0 0.0
    %v1523 = vand.u32 %v1450, 4294901760
    %1524 = vmatpush1.msra.mxu0 %v1523
    %1525 = vmatprep.subr.mxu0 0.0
    %v1526 = vand.u32 %v1451, 4294901760
    %1527 = vmatpush1.msra.mxu0 %v1526
    %1528 = vmatprep.subr.mxu0 0.0
    %v1529 = vand.u32 %v1452, 4294901760
    %1530 = vmatpush1.msra.mxu0 %v1529
    %1531 = vmatprep.subr.mxu0 0.0
    %v1532 = vand.u32 %v1453, 4294901760
    %1533 = vmatpush1.msra.mxu0 %v1532
    %1534 = vmatprep.subr.mxu0 0.0
    %v1535 = vand.u32 %v1454, 4294901760
    %1536 = vmatpush1.msra.mxu0 %v1535
    %1537 = vmatprep.subr.mxu0 0.0
    %v1538 = vand.u32 %v1455, 4294901760
    %1539 = vmatpush1.msra.mxu0 %v1538
    %1540 = vmatprep.subr.mxu0 0.0
    %v1541 = vand.u32 %v1456, 4294901760
    %1542 = vmatpush1.msra.mxu0 %v1541
    %1543 = vmatprep.subr.mxu0 0.0
    %v1544 = vand.u32 %v1457, 4294901760
    %1545 = vmatpush1.msra.mxu0 %v1544
    %1546 = vmatprep.subr.mxu0 0.0
    %v1547 = vand.u32 %v1458, 4294901760
    %1548 = vmatpush1.msra.mxu0 %v1547
    %1549 = vmatprep.subr.mxu0 0.0
    %v1550 = vand.u32 %v1459, 4294901760
    %1551 = vmatpush1.msra.mxu0 %v1550
    %1552 = vmatprep.subr.mxu0 0.0
    %v1553 = vand.u32 %v1460, 4294901760
    %1554 = vmatpush1.msra.mxu0 %v1553
    %1555 = vmatprep.subr.mxu0 0.0
    %v1556 = vand.u32 %v1461, 4294901760
    %1557 = vmatpush1.msra.mxu0 %v1556
    %v1558 = vand.u32 %v1429, 4294901760
    %v1559 = vsub.f32 %v1429, %v1558
    %v1560 = vand.u32 %v1559, 4294901760
    %v1561 = vsub.f32 %v1559, %v1560
    %v1562 = vand.u32 %v1561, 4294901760
    %1563 = vmatprep.mubr.f32.mxu0 %v1562
    %v1564 = vand.u32 %v1428, 4294901760
    %v1565 = vsub.f32 %v1428, %v1564
    %v1566 = vand.u32 %v1565, 4294901760
    %v1567 = vsub.f32 %v1565, %v1566
    %v1568 = vand.u32 %v1567, 4294901760
    %1569 = vmatmul.mubr.f32.gmra.mrb[0].mxu0 %v1568
    %v1570 = vpop.f32.mrb[0].mxu0
    %v1571 = vadd.f32 0.0, %v1570
    %v1572 = vpop.f32.mrb[0].mxu0
    %1573 = vdwg.mxu0
    %1574 = vmatprep.subr.mxu0 0.0
    %v1575 = vand.u32 %v1430, 4294901760
    %v1576 = vsub.f32 %v1430, %v1575
    %v1577 = vand.u32 %v1576, 4294901760
    %v1578 = vsub.f32 %v1576, %v1577
    %v1579 = vand.u32 %v1578, 4294901760
    %1580 = vmatpush1.msra.mxu0 %v1579
    %1581 = vmatprep.subr.mxu0 0.0
    %v1582 = vand.u32 %v1431, 4294901760
    %v1583 = vsub.f32 %v1431, %v1582
    %v1584 = vand.u32 %v1583, 4294901760
    %v1585 = vsub.f32 %v1583, %v1584
    %v1586 = vand.u32 %v1585, 4294901760
    %1587 = vmatpush1.msra.mxu0 %v1586
    %1588 = vmatprep.subr.mxu0 0.0
    %v1589 = vand.u32 %v1432, 4294901760
    %v1590 = vsub.f32 %v1432, %v1589
    %v1591 = vand.u32 %v1590, 4294901760
    %v1592 = vsub.f32 %v1590, %v1591
    %v1593 = vand.u32 %v1592, 4294901760
    %1594 = vmatpush1.msra.mxu0 %v1593
    %1595 = vmatprep.subr.mxu0 0.0
    %v1596 = vand.u32 %v1433, 4294901760
    %v1597 = vsub.f32 %v1433, %v1596
    %v1598 = vand.u32 %v1597, 4294901760
    %v1599 = vsub.f32 %v1597, %v1598
    %v1600 = vand.u32 %v1599, 4294901760
    %1601 = vmatpush1.msra.mxu0 %v1600
    %1602 = vmatprep.subr.mxu0 0.0
    %v1603 = vand.u32 %v1434, 4294901760
    %v1604 = vsub.f32 %v1434, %v1603
    %v1605 = vand.u32 %v1604, 4294901760
    %v1606 = vsub.f32 %v1604, %v1605
    %v1607 = vand.u32 %v1606, 4294901760
    %1608 = vmatpush1.msra.mxu0 %v1607
    %1609 = vmatprep.subr.mxu0 0.0
    %v1610 = vand.u32 %v1435, 4294901760
    %v1611 = vsub.f32 %v1435, %v1610
    %v1612 = vand.u32 %v1611, 4294901760
    %v1613 = vsub.f32 %v1611, %v1612
    %v1614 = vand.u32 %v1613, 4294901760
    %1615 = vmatpush1.msra.mxu0 %v1614
    %1616 = vmatprep.subr.mxu0 0.0
    %v1617 = vand.u32 %v1436, 4294901760
    %v1618 = vsub.f32 %v1436, %v1617
    %v1619 = vand.u32 %v1618, 4294901760
    %v1620 = vsub.f32 %v1618, %v1619
    %v1621 = vand.u32 %v1620, 4294901760
    %1622 = vmatpush1.msra.mxu0 %v1621
    %1623 = vmatprep.subr.mxu0 0.0
    %v1624 = vand.u32 %v1437, 4294901760
    %v1625 = vsub.f32 %v1437, %v1624
    %v1626 = vand.u32 %v1625, 4294901760
    %v1627 = vsub.f32 %v1625, %v1626
    %v1628 = vand.u32 %v1627, 4294901760
    %1629 = vmatpush1.msra.mxu0 %v1628
    %1630 = vmatprep.subr.mxu0 0.0
    %v1631 = vand.u32 %v1438, 4294901760
    %v1632 = vsub.f32 %v1438, %v1631
    %v1633 = vand.u32 %v1632, 4294901760
    %v1634 = vsub.f32 %v1632, %v1633
    %v1635 = vand.u32 %v1634, 4294901760
    %1636 = vmatpush1.msra.mxu0 %v1635
    %1637 = vmatprep.subr.mxu0 0.0
    %v1638 = vand.u32 %v1439, 4294901760
    %v1639 = vsub.f32 %v1439, %v1638
    %v1640 = vand.u32 %v1639, 4294901760
    %v1641 = vsub.f32 %v1639, %v1640
    %v1642 = vand.u32 %v1641, 4294901760
    %1643 = vmatpush1.msra.mxu0 %v1642
    %1644 = vmatprep.subr.mxu0 0.0
    %v1645 = vand.u32 %v1440, 4294901760
    %v1646 = vsub.f32 %v1440, %v1645
    %v1647 = vand.u32 %v1646, 4294901760
    %v1648 = vsub.f32 %v1646, %v1647
    %v1649 = vand.u32 %v1648, 4294901760
    %1650 = vmatpush1.msra.mxu0 %v1649
    %1651 = vmatprep.subr.mxu0 0.0
    %v1652 = vand.u32 %v1441, 4294901760
    %v1653 = vsub.f32 %v1441, %v1652
    %v1654 = vand.u32 %v1653, 4294901760
    %v1655 = vsub.f32 %v1653, %v1654
    %v1656 = vand.u32 %v1655, 4294901760
    %1657 = vmatpush1.msra.mxu0 %v1656
    %1658 = vmatprep.subr.mxu0 0.0
    %v1659 = vand.u32 %v1442, 4294901760
    %v1660 = vsub.f32 %v1442, %v1659
    %v1661 = vand.u32 %v1660, 4294901760
    %v1662 = vsub.f32 %v1660, %v1661
    %v1663 = vand.u32 %v1662, 4294901760
    %1664 = vmatpush1.msra.mxu0 %v1663
    %1665 = vmatprep.subr.mxu0 0.0
    %v1666 = vand.u32 %v1443, 4294901760
    %v1667 = vsub.f32 %v1443, %v1666
    %v1668 = vand.u32 %v1667, 4294901760
    %v1669 = vsub.f32 %v1667, %v1668
    %v1670 = vand.u32 %v1669, 4294901760
    %1671 = vmatpush1.msra.mxu0 %v1670
    %1672 = vmatprep.subr.mxu0 0.0
    %v1673 = vand.u32 %v1444, 4294901760
    %v1674 = vsub.f32 %v1444, %v1673
    %v1675 = vand.u32 %v1674, 4294901760
    %v1676 = vsub.f32 %v1674, %v1675
    %v1677 = vand.u32 %v1676, 4294901760
    %1678 = vmatpush1.msra.mxu0 %v1677
    %1679 = vmatprep.subr.mxu0 0.0
    %v1680 = vand.u32 %v1445, 4294901760
    %v1681 = vsub.f32 %v1445, %v1680
    %v1682 = vand.u32 %v1681, 4294901760
    %v1683 = vsub.f32 %v1681, %v1682
    %v1684 = vand.u32 %v1683, 4294901760
    %1685 = vmatpush1.msra.mxu0 %v1684
    %1686 = vmatprep.subr.mxu0 0.0
    %v1687 = vand.u32 %v1446, 4294901760
    %v1688 = vsub.f32 %v1446, %v1687
    %v1689 = vand.u32 %v1688, 4294901760
    %v1690 = vsub.f32 %v1688, %v1689
    %v1691 = vand.u32 %v1690, 4294901760
    %1692 = vmatpush1.msra.mxu0 %v1691
    %1693 = vmatprep.subr.mxu0 0.0
    %v1694 = vand.u32 %v1447, 4294901760
    %v1695 = vsub.f32 %v1447, %v1694
    %v1696 = vand.u32 %v1695, 4294901760
    %v1697 = vsub.f32 %v1695, %v1696
    %v1698 = vand.u32 %v1697, 4294901760
    %1699 = vmatpush1.msra.mxu0 %v1698
    %1700 = vmatprep.subr.mxu0 0.0
    %v1701 = vand.u32 %v1448, 4294901760
    %v1702 = vsub.f32 %v1448, %v1701
    %v1703 = vand.u32 %v1702, 4294901760
    %v1704 = vsub.f32 %v1702, %v1703
    %v1705 = vand.u32 %v1704, 4294901760
    %1706 = vmatpush1.msra.mxu0 %v1705
    %1707 = vmatprep.subr.mxu0 0.0
    %v1708 = vand.u32 %v1449, 4294901760
    %v1709 = vsub.f32 %v1449, %v1708
    %v1710 = vand.u32 %v1709, 4294901760
    %v1711 = vsub.f32 %v1709, %v1710
    %v1712 = vand.u32 %v1711, 4294901760
    %1713 = vmatpush1.msra.mxu0 %v1712
    %1714 = vmatprep.subr.mxu0 0.0
    %v1715 = vand.u32 %v1450, 4294901760
    %v1716 = vsub.f32 %v1450, %v1715
    %v1717 = vand.u32 %v1716, 4294901760
    %v1718 = vsub.f32 %v1716, %v1717
    %v1719 = vand.u32 %v1718, 4294901760
    %1720 = vmatpush1.msra.mxu0 %v1719
    %1721 = vmatprep.subr.mxu0 0.0
    %v1722 = vand.u32 %v1451, 4294901760
    %v1723 = vsub.f32 %v1451, %v1722
    %v1724 = vand.u32 %v1723, 4294901760
    %v1725 = vsub.f32 %v1723, %v1724
    %v1726 = vand.u32 %v1725, 4294901760
    %1727 = vmatpush1.msra.mxu0 %v1726
    %1728 = vmatprep.subr.mxu0 0.0
    %v1729 = vand.u32 %v1452, 4294901760
    %v1730 = vsub.f32 %v1452, %v1729
    %v1731 = vand.u32 %v1730, 4294901760
    %v1732 = vsub.f32 %v1730, %v1731
    %v1733 = vand.u32 %v1732, 4294901760
    %1734 = vmatpush1.msra.mxu0 %v1733
    %1735 = vmatprep.subr.mxu0 0.0
    %v1736 = vand.u32 %v1453, 4294901760
    %v1737 = vsub.f32 %v1453, %v1736
    %v1738 = vand.u32 %v1737, 4294901760
    %v1739 = vsub.f32 %v1737, %v1738
    %v1740 = vand.u32 %v1739, 4294901760
    %1741 = vmatpush1.msra.mxu0 %v1740
    %1742 = vmatprep.subr.mxu0 0.0
    %v1743 = vand.u32 %v1454, 4294901760
    %v1744 = vsub.f32 %v1454, %v1743
    %v1745 = vand.u32 %v1744, 4294901760
    %v1746 = vsub.f32 %v1744, %v1745
    %v1747 = vand.u32 %v1746, 4294901760
    %1748 = vmatpush1.msra.mxu0 %v1747
    %1749 = vmatprep.subr.mxu0 0.0
    %v1750 = vand.u32 %v1455, 4294901760
    %v1751 = vsub.f32 %v1455, %v1750
    %v1752 = vand.u32 %v1751, 4294901760
    %v1753 = vsub.f32 %v1751, %v1752
    %v1754 = vand.u32 %v1753, 4294901760
    %1755 = vmatpush1.msra.mxu0 %v1754
    %1756 = vmatprep.subr.mxu0 0.0
    %v1757 = vand.u32 %v1456, 4294901760
    %v1758 = vsub.f32 %v1456, %v1757
    %v1759 = vand.u32 %v1758, 4294901760
    %v1760 = vsub.f32 %v1758, %v1759
    %v1761 = vand.u32 %v1760, 4294901760
    %1762 = vmatpush1.msra.mxu0 %v1761
    %1763 = vmatprep.subr.mxu0 0.0
    %v1764 = vand.u32 %v1457, 4294901760
    %v1765 = vsub.f32 %v1457, %v1764
    %v1766 = vand.u32 %v1765, 4294901760
    %v1767 = vsub.f32 %v1765, %v1766
    %v1768 = vand.u32 %v1767, 4294901760
    %1769 = vmatpush1.msra.mxu0 %v1768
    %1770 = vmatprep.subr.mxu0 0.0
    %v1771 = vand.u32 %v1458, 4294901760
    %v1772 = vsub.f32 %v1458, %v1771
    %v1773 = vand.u32 %v1772, 4294901760
    %v1774 = vsub.f32 %v1772, %v1773
    %v1775 = vand.u32 %v1774, 4294901760
    %1776 = vmatpush1.msra.mxu0 %v1775
    %1777 = vmatprep.subr.mxu0 0.0
    %v1778 = vand.u32 %v1459, 4294901760
    %v1779 = vsub.f32 %v1459, %v1778
    %v1780 = vand.u32 %v1779, 4294901760
    %v1781 = vsub.f32 %v1779, %v1780
    %v1782 = vand.u32 %v1781, 4294901760
    %1783 = vmatpush1.msra.mxu0 %v1782
    %1784 = vmatprep.subr.mxu0 0.0
    %v1785 = vand.u32 %v1460, 4294901760
    %v1786 = vsub.f32 %v1460, %v1785
    %v1787 = vand.u32 %v1786, 4294901760
    %v1788 = vsub.f32 %v1786, %v1787
    %v1789 = vand.u32 %v1788, 4294901760
    %1790 = vmatpush1.msra.mxu0 %v1789
    %1791 = vmatprep.subr.mxu0 0.0
    %v1792 = vand.u32 %v1461, 4294901760
    %v1793 = vsub.f32 %v1461, %v1792
    %v1794 = vand.u32 %v1793, 4294901760
    %v1795 = vsub.f32 %v1793, %v1794
    %v1796 = vand.u32 %v1795, 4294901760
    %1797 = vmatpush1.msra.mxu0 %v1796
    %v1798 = vand.u32 %v1429, 4294901760
    %1799 = vmatprep.mubr.f32.mxu0 %v1798
    %v1800 = vand.u32 %v1428, 4294901760
    %1801 = vmatmul.mubr.f32.gmra.mrb[0].mxu0 %v1800
    %v1802 = vpop.f32.mrb[0].mxu0
    %v1803 = vadd.f32 %v1571, %v1802
    %v1804 = vpop.f32.mrb[0].mxu0
    %1805 = vdwg.mxu0
    %1806 = vmatprep.subr.mxu0 0.0
    %v1807 = vand.u32 %v1430, 4294901760
    %v1808 = vsub.f32 %v1430, %v1807
    %1809 = vmatpush1.msra.mxu0 %v1808
    %1810 = vmatprep.subr.mxu0 0.0
    %v1811 = vand.u32 %v1431, 4294901760
    %v1812 = vsub.f32 %v1431, %v1811
    %1813 = vmatpush1.msra.mxu0 %v1812
    %1814 = vmatprep.subr.mxu0 0.0
    %v1815 = vand.u32 %v1432, 4294901760
    %v1816 = vsub.f32 %v1432, %v1815
    %1817 = vmatpush1.msra.mxu0 %v1816
    %1818 = vmatprep.subr.mxu0 0.0
    %v1819 = vand.u32 %v1433, 4294901760
    %v1820 = vsub.f32 %v1433, %v1819
    %1821 = vmatpush1.msra.mxu0 %v1820
    %1822 = vmatprep.subr.mxu0 0.0
    %v1823 = vand.u32 %v1434, 4294901760
    %v1824 = vsub.f32 %v1434, %v1823
    %1825 = vmatpush1.msra.mxu0 %v1824
    %1826 = vmatprep.subr.mxu0 0.0
    %v1827 = vand.u32 %v1435, 4294901760
    %v1828 = vsub.f32 %v1435, %v1827
    %1829 = vmatpush1.msra.mxu0 %v1828
    %1830 = vmatprep.subr.mxu0 0.0
    %v1831 = vand.u32 %v1436, 4294901760
    %v1832 = vsub.f32 %v1436, %v1831
    %1833 = vmatpush1.msra.mxu0 %v1832
    %1834 = vmatprep.subr.mxu0 0.0
    %v1835 = vand.u32 %v1437, 4294901760
    %v1836 = vsub.f32 %v1437, %v1835
    %1837 = vmatpush1.msra.mxu0 %v1836
    %1838 = vmatprep.subr.mxu0 0.0
    %v1839 = vand.u32 %v1438, 4294901760
    %v1840 = vsub.f32 %v1438, %v1839
    %1841 = vmatpush1.msra.mxu0 %v1840
    %1842 = vmatprep.subr.mxu0 0.0
    %v1843 = vand.u32 %v1439, 4294901760
    %v1844 = vsub.f32 %v1439, %v1843
    %1845 = vmatpush1.msra.mxu0 %v1844
    %1846 = vmatprep.subr.mxu0 0.0
    %v1847 = vand.u32 %v1440, 4294901760
    %v1848 = vsub.f32 %v1440, %v1847
    %1849 = vmatpush1.msra.mxu0 %v1848
    %1850 = vmatprep.subr.mxu0 0.0
    %v1851 = vand.u32 %v1441, 4294901760
    %v1852 = vsub.f32 %v1441, %v1851
    %1853 = vmatpush1.msra.mxu0 %v1852
    %1854 = vmatprep.subr.mxu0 0.0
    %v1855 = vand.u32 %v1442, 4294901760
    %v1856 = vsub.f32 %v1442, %v1855
    %1857 = vmatpush1.msra.mxu0 %v1856
    %1858 = vmatprep.subr.mxu0 0.0
    %v1859 = vand.u32 %v1443, 4294901760
    %v1860 = vsub.f32 %v1443, %v1859
    %1861 = vmatpush1.msra.mxu0 %v1860
    %1862 = vmatprep.subr.mxu0 0.0
    %v1863 = vand.u32 %v1444, 4294901760
    %v1864 = vsub.f32 %v1444, %v1863
    %1865 = vmatpush1.msra.mxu0 %v1864
    %1866 = vmatprep.subr.mxu0 0.0
    %v1867 = vand.u32 %v1445, 4294901760
    %v1868 = vsub.f32 %v1445, %v1867
    %1869 = vmatpush1.msra.mxu0 %v1868
    %1870 = vmatprep.subr.mxu0 0.0
    %v1871 = vand.u32 %v1446, 4294901760
    %v1872 = vsub.f32 %v1446, %v1871
    %1873 = vmatpush1.msra.mxu0 %v1872
    %1874 = vmatprep.subr.mxu0 0.0
    %v1875 = vand.u32 %v1447, 4294901760
    %v1876 = vsub.f32 %v1447, %v1875
    %1877 = vmatpush1.msra.mxu0 %v1876
    %1878 = vmatprep.subr.mxu0 0.0
    %v1879 = vand.u32 %v1448, 4294901760
    %v1880 = vsub.f32 %v1448, %v1879
    %1881 = vmatpush1.msra.mxu0 %v1880
    %1882 = vmatprep.subr.mxu0 0.0
    %v1883 = vand.u32 %v1449, 4294901760
    %v1884 = vsub.f32 %v1449, %v1883
    %1885 = vmatpush1.msra.mxu0 %v1884
    %1886 = vmatprep.subr.mxu0 0.0
    %v1887 = vand.u32 %v1450, 4294901760
    %v1888 = vsub.f32 %v1450, %v1887
    %1889 = vmatpush1.msra.mxu0 %v1888
    %1890 = vmatprep.subr.mxu0 0.0
    %v1891 = vand.u32 %v1451, 4294901760
    %v1892 = vsub.f32 %v1451, %v1891
    %1893 = vmatpush1.msra.mxu0 %v1892
    %1894 = vmatprep.subr.mxu0 0.0
    %v1895 = vand.u32 %v1452, 4294901760
    %v1896 = vsub.f32 %v1452, %v1895
    %1897 = vmatpush1.msra.mxu0 %v1896
    %1898 = vmatprep.subr.mxu0 0.0
    %v1899 = vand.u32 %v1453, 4294901760
    %v1900 = vsub.f32 %v1453, %v1899
    %1901 = vmatpush1.msra.mxu0 %v1900
    %1902 = vmatprep.subr.mxu0 0.0
    %v1903 = vand.u32 %v1454, 4294901760
    %v1904 = vsub.f32 %v1454, %v1903
    %1905 = vmatpush1.msra.mxu0 %v1904
    %1906 = vmatprep.subr.mxu0 0.0
    %v1907 = vand.u32 %v1455, 4294901760
    %v1908 = vsub.f32 %v1455, %v1907
    %1909 = vmatpush1.msra.mxu0 %v1908
    %1910 = vmatprep.subr.mxu0 0.0
    %v1911 = vand.u32 %v1456, 4294901760
    %v1912 = vsub.f32 %v1456, %v1911
    %1913 = vmatpush1.msra.mxu0 %v1912
    %1914 = vmatprep.subr.mxu0 0.0
    %v1915 = vand.u32 %v1457, 4294901760
    %v1916 = vsub.f32 %v1457, %v1915
    %1917 = vmatpush1.msra.mxu0 %v1916
    %1918 = vmatprep.subr.mxu0 0.0
    %v1919 = vand.u32 %v1458, 4294901760
    %v1920 = vsub.f32 %v1458, %v1919
    %1921 = vmatpush1.msra.mxu0 %v1920
    %1922 = vmatprep.subr.mxu0 0.0
    %v1923 = vand.u32 %v1459, 4294901760
    %v1924 = vsub.f32 %v1459, %v1923
    %1925 = vmatpush1.msra.mxu0 %v1924
    %1926 = vmatprep.subr.mxu0 0.0
    %v1927 = vand.u32 %v1460, 4294901760
    %v1928 = vsub.f32 %v1460, %v1927
    %1929 = vmatpush1.msra.mxu0 %v1928
    %1930 = vmatprep.subr.mxu0 0.0
    %v1931 = vand.u32 %v1461, 4294901760
    %v1932 = vsub.f32 %v1461, %v1931
    %1933 = vmatpush1.msra.mxu0 %v1932
    %v1934 = vand.u32 %v1429, 4294901760
    %v1935 = vsub.f32 %v1429, %v1934
    %1936 = vmatprep.mubr.f32.mxu0 %v1935
    %v1937 = vand.u32 %v1428, 4294901760
    %v1938 = vsub.f32 %v1428, %v1937
    %1939 = vmatmul.mubr.f32.gmra.mrb[0].mxu0 %v1938
    %v1940 = vpop.f32.mrb[0].mxu0
    %v1941 = vadd.f32 %v1803, %v1940
    %v1942 = vpop.f32.mrb[0].mxu0
    %1943 = vdwg.mxu0
    %1944 = vmatprep.subr.mxu0 0.0
    %v1945 = vand.u32 %v1430, 4294901760
    %1946 = vmatpush1.msra.mxu0 %v1945
    %1947 = vmatprep.subr.mxu0 0.0
    %v1948 = vand.u32 %v1431, 4294901760
    %1949 = vmatpush1.msra.mxu0 %v1948
    %1950 = vmatprep.subr.mxu0 0.0
    %v1951 = vand.u32 %v1432, 4294901760
    %1952 = vmatpush1.msra.mxu0 %v1951
    %1953 = vmatprep.subr.mxu0 0.0
    %v1954 = vand.u32 %v1433, 4294901760
    %1955 = vmatpush1.msra.mxu0 %v1954
    %1956 = vmatprep.subr.mxu0 0.0
    %v1957 = vand.u32 %v1434, 4294901760
    %1958 = vmatpush1.msra.mxu0 %v1957
    %1959 = vmatprep.subr.mxu0 0.0
    %v1960 = vand.u32 %v1435, 4294901760
    %1961 = vmatpush1.msra.mxu0 %v1960
    %1962 = vmatprep.subr.mxu0 0.0
    %v1963 = vand.u32 %v1436, 4294901760
    %1964 = vmatpush1.msra.mxu0 %v1963
    %1965 = vmatprep.subr.mxu0 0.0
    %v1966 = vand.u32 %v1437, 4294901760
    %1967 = vmatpush1.msra.mxu0 %v1966
    %1968 = vmatprep.subr.mxu0 0.0
    %v1969 = vand.u32 %v1438, 4294901760
    %1970 = vmatpush1.msra.mxu0 %v1969
    %1971 = vmatprep.subr.mxu0 0.0
    %v1972 = vand.u32 %v1439, 4294901760
    %1973 = vmatpush1.msra.mxu0 %v1972
    %1974 = vmatprep.subr.mxu0 0.0
    %v1975 = vand.u32 %v1440, 4294901760
    %1976 = vmatpush1.msra.mxu0 %v1975
    %1977 = vmatprep.subr.mxu0 0.0
    %v1978 = vand.u32 %v1441, 4294901760
    %1979 = vmatpush1.msra.mxu0 %v1978
    %1980 = vmatprep.subr.mxu0 0.0
    %v1981 = vand.u32 %v1442, 4294901760
    %1982 = vmatpush1.msra.mxu0 %v1981
    %1983 = vmatprep.subr.mxu0 0.0
    %v1984 = vand.u32 %v1443, 4294901760
    %1985 = vmatpush1.msra.mxu0 %v1984
    %1986 = vmatprep.subr.mxu0 0.0
    %v1987 = vand.u32 %v1444, 4294901760
    %1988 = vmatpush1.msra.mxu0 %v1987
    %1989 = vmatprep.subr.mxu0 0.0
    %v1990 = vand.u32 %v1445, 4294901760
    %1991 = vmatpush1.msra.mxu0 %v1990
    %1992 = vmatprep.subr.mxu0 0.0
    %v1993 = vand.u32 %v1446, 4294901760
    %1994 = vmatpush1.msra.mxu0 %v1993
    %1995 = vmatprep.subr.mxu0 0.0
    %v1996 = vand.u32 %v1447, 4294901760
    %1997 = vmatpush1.msra.mxu0 %v1996
    %1998 = vmatprep.subr.mxu0 0.0
    %v1999 = vand.u32 %v1448, 4294901760
    %2000 = vmatpush1.msra.mxu0 %v1999
    %2001 = vmatprep.subr.mxu0 0.0
    %v2002 = vand.u32 %v1449, 4294901760
    %2003 = vmatpush1.msra.mxu0 %v2002
    %2004 = vmatprep.subr.mxu0 0.0
    %v2005 = vand.u32 %v1450, 4294901760
    %2006 = vmatpush1.msra.mxu0 %v2005
    %2007 = vmatprep.subr.mxu0 0.0
    %v2008 = vand.u32 %v1451, 4294901760
    %2009 = vmatpush1.msra.mxu0 %v2008
    %2010 = vmatprep.subr.mxu0 0.0
    %v2011 = vand.u32 %v1452, 4294901760
    %2012 = vmatpush1.msra.mxu0 %v2011
    %2013 = vmatprep.subr.mxu0 0.0
    %v2014 = vand.u32 %v1453, 4294901760
    %2015 = vmatpush1.msra.mxu0 %v2014
    %2016 = vmatprep.subr.mxu0 0.0
    %v2017 = vand.u32 %v1454, 4294901760
    %2018 = vmatpush1.msra.mxu0 %v2017
    %2019 = vmatprep.subr.mxu0 0.0
    %v2020 = vand.u32 %v1455, 4294901760
    %2021 = vmatpush1.msra.mxu0 %v2020
    %2022 = vmatprep.subr.mxu0 0.0
    %v2023 = vand.u32 %v1456, 4294901760
    %2024 = vmatpush1.msra.mxu0 %v2023
    %2025 = vmatprep.subr.mxu0 0.0
    %v2026 = vand.u32 %v1457, 4294901760
    %2027 = vmatpush1.msra.mxu0 %v2026
    %2028 = vmatprep.subr.mxu0 0.0
    %v2029 = vand.u32 %v1458, 4294901760
    %2030 = vmatpush1.msra.mxu0 %v2029
    %2031 = vmatprep.subr.mxu0 0.0
    %v2032 = vand.u32 %v1459, 4294901760
    %2033 = vmatpush1.msra.mxu0 %v2032
    %2034 = vmatprep.subr.mxu0 0.0
    %v2035 = vand.u32 %v1460, 4294901760
    %2036 = vmatpush1.msra.mxu0 %v2035
    %2037 = vmatprep.subr.mxu0 0.0
    %v2038 = vand.u32 %v1461, 4294901760
    %2039 = vmatpush1.msra.mxu0 %v2038
    %v2040 = vand.u32 %v1429, 4294901760
    %v2041 = vsub.f32 %v1429, %v2040
    %v2042 = vand.u32 %v2041, 4294901760
    %2043 = vmatprep.mubr.f32.mxu0 %v2042
    %v2044 = vand.u32 %v1428, 4294901760
    %v2045 = vsub.f32 %v1428, %v2044
    %v2046 = vand.u32 %v2045, 4294901760
    %2047 = vmatmul.mubr.f32.gmra.mrb[0].mxu0 %v2046
    %v2048 = vpop.f32.mrb[0].mxu0
    %v2049 = vadd.f32 %v1941, %v2048
    %v2050 = vpop.f32.mrb[0].mxu0
    %2051 = vdwg.mxu0
    %2052 = vmatprep.subr.mxu0 0.0
    %v2053 = vand.u32 %v1430, 4294901760
    %v2054 = vsub.f32 %v1430, %v2053
    %v2055 = vand.u32 %v2054, 4294901760
    %2056 = vmatpush1.msra.mxu0 %v2055
    %2057 = vmatprep.subr.mxu0 0.0
    %v2058 = vand.u32 %v1431, 4294901760
    %v2059 = vsub.f32 %v1431, %v2058
    %v2060 = vand.u32 %v2059, 4294901760
    %2061 = vmatpush1.msra.mxu0 %v2060
    %2062 = vmatprep.subr.mxu0 0.0
    %v2063 = vand.u32 %v1432, 4294901760
    %v2064 = vsub.f32 %v1432, %v2063
    %v2065 = vand.u32 %v2064, 4294901760
    %2066 = vmatpush1.msra.mxu0 %v2065
    %2067 = vmatprep.subr.mxu0 0.0
    %v2068 = vand.u32 %v1433, 4294901760
    %v2069 = vsub.f32 %v1433, %v2068
    %v2070 = vand.u32 %v2069, 4294901760
    %2071 = vmatpush1.msra.mxu0 %v2070
    %2072 = vmatprep.subr.mxu0 0.0
    %v2073 = vand.u32 %v1434, 4294901760
    %v2074 = vsub.f32 %v1434, %v2073
    %v2075 = vand.u32 %v2074, 4294901760
    %2076 = vmatpush1.msra.mxu0 %v2075
    %2077 = vmatprep.subr.mxu0 0.0
    %v2078 = vand.u32 %v1435, 4294901760
    %v2079 = vsub.f32 %v1435, %v2078
    %v2080 = vand.u32 %v2079, 4294901760
    %2081 = vmatpush1.msra.mxu0 %v2080
    %2082 = vmatprep.subr.mxu0 0.0
    %v2083 = vand.u32 %v1436, 4294901760
    %v2084 = vsub.f32 %v1436, %v2083
    %v2085 = vand.u32 %v2084, 4294901760
    %2086 = vmatpush1.msra.mxu0 %v2085
    %2087 = vmatprep.subr.mxu0 0.0
    %v2088 = vand.u32 %v1437, 4294901760
    %v2089 = vsub.f32 %v1437, %v2088
    %v2090 = vand.u32 %v2089, 4294901760
    %2091 = vmatpush1.msra.mxu0 %v2090
    %2092 = vmatprep.subr.mxu0 0.0
    %v2093 = vand.u32 %v1438, 4294901760
    %v2094 = vsub.f32 %v1438, %v2093
    %v2095 = vand.u32 %v2094, 4294901760
    %2096 = vmatpush1.msra.mxu0 %v2095
    %2097 = vmatprep.subr.mxu0 0.0
    %v2098 = vand.u32 %v1439, 4294901760
    %v2099 = vsub.f32 %v1439, %v2098
    %v2100 = vand.u32 %v2099, 4294901760
    %2101 = vmatpush1.msra.mxu0 %v2100
    %2102 = vmatprep.subr.mxu0 0.0
    %v2103 = vand.u32 %v1440, 4294901760
    %v2104 = vsub.f32 %v1440, %v2103
    %v2105 = vand.u32 %v2104, 4294901760
    %2106 = vmatpush1.msra.mxu0 %v2105
    %2107 = vmatprep.subr.mxu0 0.0
    %v2108 = vand.u32 %v1441, 4294901760
    %v2109 = vsub.f32 %v1441, %v2108
    %v2110 = vand.u32 %v2109, 4294901760
    %2111 = vmatpush1.msra.mxu0 %v2110
    %2112 = vmatprep.subr.mxu0 0.0
    %v2113 = vand.u32 %v1442, 4294901760
    %v2114 = vsub.f32 %v1442, %v2113
    %v2115 = vand.u32 %v2114, 4294901760
    %2116 = vmatpush1.msra.mxu0 %v2115
    %2117 = vmatprep.subr.mxu0 0.0
    %v2118 = vand.u32 %v1443, 4294901760
    %v2119 = vsub.f32 %v1443, %v2118
    %v2120 = vand.u32 %v2119, 4294901760
    %2121 = vmatpush1.msra.mxu0 %v2120
    %2122 = vmatprep.subr.mxu0 0.0
    %v2123 = vand.u32 %v1444, 4294901760
    %v2124 = vsub.f32 %v1444, %v2123
    %v2125 = vand.u32 %v2124, 4294901760
    %2126 = vmatpush1.msra.mxu0 %v2125
    %2127 = vmatprep.subr.mxu0 0.0
    %v2128 = vand.u32 %v1445, 4294901760
    %v2129 = vsub.f32 %v1445, %v2128
    %v2130 = vand.u32 %v2129, 4294901760
    %2131 = vmatpush1.msra.mxu0 %v2130
    %2132 = vmatprep.subr.mxu0 0.0
    %v2133 = vand.u32 %v1446, 4294901760
    %v2134 = vsub.f32 %v1446, %v2133
    %v2135 = vand.u32 %v2134, 4294901760
    %2136 = vmatpush1.msra.mxu0 %v2135
    %2137 = vmatprep.subr.mxu0 0.0
    %v2138 = vand.u32 %v1447, 4294901760
    %v2139 = vsub.f32 %v1447, %v2138
    %v2140 = vand.u32 %v2139, 4294901760
    %2141 = vmatpush1.msra.mxu0 %v2140
    %2142 = vmatprep.subr.mxu0 0.0
    %v2143 = vand.u32 %v1448, 4294901760
    %v2144 = vsub.f32 %v1448, %v2143
    %v2145 = vand.u32 %v2144, 4294901760
    %2146 = vmatpush1.msra.mxu0 %v2145
    %2147 = vmatprep.subr.mxu0 0.0
    %v2148 = vand.u32 %v1449, 4294901760
    %v2149 = vsub.f32 %v1449, %v2148
    %v2150 = vand.u32 %v2149, 4294901760
    %2151 = vmatpush1.msra.mxu0 %v2150
    %2152 = vmatprep.subr.mxu0 0.0
    %v2153 = vand.u32 %v1450, 4294901760
    %v2154 = vsub.f32 %v1450, %v2153
    %v2155 = vand.u32 %v2154, 4294901760
    %2156 = vmatpush1.msra.mxu0 %v2155
    %2157 = vmatprep.subr.mxu0 0.0
    %v2158 = vand.u32 %v1451, 4294901760
    %v2159 = vsub.f32 %v1451, %v2158
    %v2160 = vand.u32 %v2159, 4294901760
    %2161 = vmatpush1.msra.mxu0 %v2160
    %2162 = vmatprep.subr.mxu0 0.0
    %v2163 = vand.u32 %v1452, 4294901760
    %v2164 = vsub.f32 %v1452, %v2163
    %v2165 = vand.u32 %v2164, 4294901760
    %2166 = vmatpush1.msra.mxu0 %v2165
    %2167 = vmatprep.subr.mxu0 0.0
    %v2168 = vand.u32 %v1453, 4294901760
    %v2169 = vsub.f32 %v1453, %v2168
    %v2170 = vand.u32 %v2169, 4294901760
    %2171 = vmatpush1.msra.mxu0 %v2170
    %2172 = vmatprep.subr.mxu0 0.0
    %v2173 = vand.u32 %v1454, 4294901760
    %v2174 = vsub.f32 %v1454, %v2173
    %v2175 = vand.u32 %v2174, 4294901760
    %2176 = vmatpush1.msra.mxu0 %v2175
    %2177 = vmatprep.subr.mxu0 0.0
    %v2178 = vand.u32 %v1455, 4294901760
    %v2179 = vsub.f32 %v1455, %v2178
    %v2180 = vand.u32 %v2179, 4294901760
    %2181 = vmatpush1.msra.mxu0 %v2180
    %2182 = vmatprep.subr.mxu0 0.0
    %v2183 = vand.u32 %v1456, 4294901760
    %v2184 = vsub.f32 %v1456, %v2183
    %v2185 = vand.u32 %v2184, 4294901760
    %2186 = vmatpush1.msra.mxu0 %v2185
    %2187 = vmatprep.subr.mxu0 0.0
    %v2188 = vand.u32 %v1457, 4294901760
    %v2189 = vsub.f32 %v1457, %v2188
    %v2190 = vand.u32 %v2189, 4294901760
    %2191 = vmatpush1.msra.mxu0 %v2190
    %2192 = vmatprep.subr.mxu0 0.0
    %v2193 = vand.u32 %v1458, 4294901760
    %v2194 = vsub.f32 %v1458, %v2193
    %v2195 = vand.u32 %v2194, 4294901760
    %2196 = vmatpush1.msra.mxu0 %v2195
    %2197 = vmatprep.subr.mxu0 0.0
    %v2198 = vand.u32 %v1459, 4294901760
    %v2199 = vsub.f32 %v1459, %v2198
    %v2200 = vand.u32 %v2199, 4294901760
    %2201 = vmatpush1.msra.mxu0 %v2200
    %2202 = vmatprep.subr.mxu0 0.0
    %v2203 = vand.u32 %v1460, 4294901760
    %v2204 = vsub.f32 %v1460, %v2203
    %v2205 = vand.u32 %v2204, 4294901760
    %2206 = vmatpush1.msra.mxu0 %v2205
    %2207 = vmatprep.subr.mxu0 0.0
    %v2208 = vand.u32 %v1461, 4294901760
    %v2209 = vsub.f32 %v1461, %v2208
    %v2210 = vand.u32 %v2209, 4294901760
    %2211 = vmatpush1.msra.mxu0 %v2210
    %v2212 = vand.u32 %v1429, 4294901760
    %2213 = vmatprep.mubr.f32.mxu0 %v2212
    %v2214 = vand.u32 %v1428, 4294901760
    %2215 = vmatmul.mubr.f32.gmra.mrb[0].mxu0 %v2214
    %v2216 = vpop.f32.mrb[0].mxu0
    %v2217 = vadd.f32 %v2049, %v2216
    %v2218 = vpop.f32.mrb[0].mxu0
    %2219 = vdwg.mxu0
    %2220 = vmatprep.subr.mxu0 0.0
    %v2221 = vand.u32 %v1430, 4294901760
    %2222 = vmatpush1.msra.mxu0 %v2221
    %2223 = vmatprep.subr.mxu0 0.0
    %v2224 = vand.u32 %v1431, 4294901760
    %2225 = vmatpush1.msra.mxu0 %v2224
    %2226 = vmatprep.subr.mxu0 0.0
    %v2227 = vand.u32 %v1432, 4294901760
    %2228 = vmatpush1.msra.mxu0 %v2227
    %2229 = vmatprep.subr.mxu0 0.0
    %v2230 = vand.u32 %v1433, 4294901760
    %2231 = vmatpush1.msra.mxu0 %v2230
    %2232 = vmatprep.subr.mxu0 0.0
    %v2233 = vand.u32 %v1434, 4294901760
    %2234 = vmatpush1.msra.mxu0 %v2233
    %2235 = vmatprep.subr.mxu0 0.0
    %v2236 = vand.u32 %v1435, 4294901760
    %2237 = vmatpush1.msra.mxu0 %v2236
    %2238 = vmatprep.subr.mxu0 0.0
    %v2239 = vand.u32 %v1436, 4294901760
    %2240 = vmatpush1.msra.mxu0 %v2239
    %2241 = vmatprep.subr.mxu0 0.0
    %v2242 = vand.u32 %v1437, 4294901760
    %2243 = vmatpush1.msra.mxu0 %v2242
    %2244 = vmatprep.subr.mxu0 0.0
    %v2245 = vand.u32 %v1438, 4294901760
    %2246 = vmatpush1.msra.mxu0 %v2245
    %2247 = vmatprep.subr.mxu0 0.0
    %v2248 = vand.u32 %v1439, 4294901760
    %2249 = vmatpush1.msra.mxu0 %v2248
    %2250 = vmatprep.subr.mxu0 0.0
    %v2251 = vand.u32 %v1440, 4294901760
    %2252 = vmatpush1.msra.mxu0 %v2251
    %2253 = vmatprep.subr.mxu0 0.0
    %v2254 = vand.u32 %v1441, 4294901760
    %2255 = vmatpush1.msra.mxu0 %v2254
    %2256 = vmatprep.subr.mxu0 0.0
    %v2257 = vand.u32 %v1442, 4294901760
    %2258 = vmatpush1.msra.mxu0 %v2257
    %2259 = vmatprep.subr.mxu0 0.0
    %v2260 = vand.u32 %v1443, 4294901760
    %2261 = vmatpush1.msra.mxu0 %v2260
    %2262 = vmatprep.subr.mxu0 0.0
    %v2263 = vand.u32 %v1444, 4294901760
    %2264 = vmatpush1.msra.mxu0 %v2263
    %2265 = vmatprep.subr.mxu0 0.0
    %v2266 = vand.u32 %v1445, 4294901760
    %2267 = vmatpush1.msra.mxu0 %v2266
    %2268 = vmatprep.subr.mxu0 0.0
    %v2269 = vand.u32 %v1446, 4294901760
    %2270 = vmatpush1.msra.mxu0 %v2269
    %2271 = vmatprep.subr.mxu0 0.0
    %v2272 = vand.u32 %v1447, 4294901760
    %2273 = vmatpush1.msra.mxu0 %v2272
    %2274 = vmatprep.subr.mxu0 0.0
    %v2275 = vand.u32 %v1448, 4294901760
    %2276 = vmatpush1.msra.mxu0 %v2275
    %2277 = vmatprep.subr.mxu0 0.0
    %v2278 = vand.u32 %v1449, 4294901760
    %2279 = vmatpush1.msra.mxu0 %v2278
    %2280 = vmatprep.subr.mxu0 0.0
    %v2281 = vand.u32 %v1450, 4294901760
    %2282 = vmatpush1.msra.mxu0 %v2281
    %2283 = vmatprep.subr.mxu0 0.0
    %v2284 = vand.u32 %v1451, 4294901760
    %2285 = vmatpush1.msra.mxu0 %v2284
    %2286 = vmatprep.subr.mxu0 0.0
    %v2287 = vand.u32 %v1452, 4294901760
    %2288 = vmatpush1.msra.mxu0 %v2287
    %2289 = vmatprep.subr.mxu0 0.0
    %v2290 = vand.u32 %v1453, 4294901760
    %2291 = vmatpush1.msra.mxu0 %v2290
    %2292 = vmatprep.subr.mxu0 0.0
    %v2293 = vand.u32 %v1454, 4294901760
    %2294 = vmatpush1.msra.mxu0 %v2293
    %2295 = vmatprep.subr.mxu0 0.0
    %v2296 = vand.u32 %v1455, 4294901760
    %2297 = vmatpush1.msra.mxu0 %v2296
    %2298 = vmatprep.subr.mxu0 0.0
    %v2299 = vand.u32 %v1456, 4294901760
    %2300 = vmatpush1.msra.mxu0 %v2299
    %2301 = vmatprep.subr.mxu0 0.0
    %v2302 = vand.u32 %v1457, 4294901760
    %2303 = vmatpush1.msra.mxu0 %v2302
    %2304 = vmatprep.subr.mxu0 0.0
    %v2305 = vand.u32 %v1458, 4294901760
    %2306 = vmatpush1.msra.mxu0 %v2305
    %2307 = vmatprep.subr.mxu0 0.0
    %v2308 = vand.u32 %v1459, 4294901760
    %2309 = vmatpush1.msra.mxu0 %v2308
    %2310 = vmatprep.subr.mxu0 0.0
    %v2311 = vand.u32 %v1460, 4294901760
    %2312 = vmatpush1.msra.mxu0 %v2311
    %2313 = vmatprep.subr.mxu0 0.0
    %v2314 = vand.u32 %v1461, 4294901760
    %2315 = vmatpush1.msra.mxu0 %v2314
    %v2316 = vand.u32 %v1429, 4294901760
    %2317 = vmatprep.mubr.f32.mxu0 %v2316
    %v2318 = vand.u32 %v1428, 4294901760
    %2319 = vmatmul.mubr.f32.gmra.mrb[0].mxu0 %v2318
    %v2320 = vpop.f32.mrb[0].mxu0
    %v2321 = vadd.f32 %v2217, %v2320
    %v2322 = vpop.f32.mrb[0].mxu0
    %2323 = vdwg.mxu0
    %v2324 = vmax.f32 %v2321, 0.0
    %v2325 = vld [vmem:[%s2] sm:$0xff]
    %v2326 = vld [vmem:[%s2 + $0x8] sm:$0xff]
    %v2327 = vld [vmem:[%s2 + $0x10] sm:$0xff]
    %v2328 = vld [vmem:[%s2 + $0x18] sm:$0xff]
    %vm2329 = vcmask 130048
    %v2331 = vsel %vm2329, %v2324, 0
    %v2333 = vand.u32 %v2326, 4294901760
    %2334 = vmatprep.subr.mxu0 %v2333
    %v2335 = vand.u32 %v2325, 4294901760
    %2336 = vmatpush1.msra.mxu0 %v2335
    %v2337 = vand.u32 %v2328, 4294901760
    %2338 = vmatprep.subr.mxu0 %v2337
    %v2339 = vand.u32 %v2327, 4294901760
    %2340 = vmatpush1.msra.mxu0 %v2339
    %2341 = vmatprep.subr.mxu0 0.0
    %2342 = vmatpush1.msra.mxu0 0.0
    %2343 = vmatprep.subr.mxu0 0.0
    %2344 = vmatpush1.msra.mxu0 0.0
    %2345 = vmatprep.subr.mxu0 0.0
    %2346 = vmatpush1.msra.mxu0 0.0
    %2347 = vmatprep.subr.mxu0 0.0
    %2348 = vmatpush1.msra.mxu0 0.0
    %2349 = vmatprep.subr.mxu0 0.0
    %2350 = vmatpush1.msra.mxu0 0.0
    %2351 = vmatprep.subr.mxu0 0.0
    %2352 = vmatpush1.msra.mxu0 0.0
    %2353 = vmatprep.subr.mxu0 0.0
    %2354 = vmatpush1.msra.mxu0 0.0
    %2355 = vmatprep.subr.mxu0 0.0
    %2356 = vmatpush1.msra.mxu0 0.0
    %2357 = vmatprep.subr.mxu0 0.0
    %2358 = vmatpush1.msra.mxu0 0.0
    %2359 = vmatprep.subr.mxu0 0.0
    %2360 = vmatpush1.msra.mxu0 0.0
    %2361 = vmatprep.subr.mxu0 0.0
    %2362 = vmatpush1.msra.mxu0 0.0
    %2363 = vmatprep.subr.mxu0 0.0
    %2364 = vmatpush1.msra.mxu0 0.0
    %2365 = vmatprep.subr.mxu0 0.0
    %2366 = vmatpush1.msra.mxu0 0.0
    %2367 = vmatprep.subr.mxu0 0.0
    %2368 = vmatpush1.msra.mxu0 0.0
    %2369 = vmatprep.subr.mxu0 0.0
    %2370 = vmatpush1.msra.mxu0 0.0
    %2371 = vmatprep.subr.mxu0 0.0
    %2372 = vmatpush1.msra.mxu0 0.0
    %2373 = vmatprep.subr.mxu0 0.0
    %2374 = vmatpush1.msra.mxu0 0.0
    %2375 = vmatprep.subr.mxu0 0.0
    %2376 = vmatpush1.msra.mxu0 0.0
    %2377 = vmatprep.subr.mxu0 0.0
    %2378 = vmatpush1.msra.mxu0 0.0
    %2379 = vmatprep.subr.mxu0 0.0
    %2380 = vmatpush1.msra.mxu0 0.0
    %2381 = vmatprep.subr.mxu0 0.0
    %2382 = vmatpush1.msra.mxu0 0.0
    %2383 = vmatprep.subr.mxu0 0.0
    %2384 = vmatpush1.msra.mxu0 0.0
    %2385 = vmatprep.subr.mxu0 0.0
    %2386 = vmatpush1.msra.mxu0 0.0
    %2387 = vmatprep.subr.mxu0 0.0
    %2388 = vmatpush1.msra.mxu0 0.0
    %2389 = vmatprep.subr.mxu0 0.0
    %2390 = vmatpush1.msra.mxu0 0.0
    %2391 = vmatprep.subr.mxu0 0.0
    %2392 = vmatpush1.msra.mxu0 0.0
    %2393 = vmatprep.subr.mxu0 0.0
    %2394 = vmatpush1.msra.mxu0 0.0
    %2395 = vmatprep.subr.mxu0 0.0
    %2396 = vmatpush1.msra.mxu0 0.0
    %2397 = vmatprep.subr.mxu0 0.0
    %2398 = vmatpush1.msra.mxu0 0.0
    %2399 = vmatprep.subr.mxu0 0.0
    %2400 = vmatpush1.msra.mxu0 0.0
    %2401 = vmatprep.mubr.f32.mxu0 0.0
    %v2402 = vand.u32 %v2331, 4294901760
    %v2403 = vsub.f32 %v2331, %v2402
    %v2404 = vand.u32 %v2403, 4294901760
    %v2405 = vsub.f32 %v2403, %v2404
    %v2406 = vand.u32 %v2405, 4294901760
    %2407 = vmatmul.mubr.f32.gmra.mrb[0].mxu0 %v2406
    %v2408 = vpop.f32.mrb[0].mxu0
    %v2409 = vadd.f32 0.0, %v2408
    %v2410 = vpop.f32.mrb[0].mxu0
    %v2411 = vadd.f32 0.0, %v2410
    %2412 = vdwg.mxu0
    %v2413 = vand.u32 %v2326, 4294901760
    %v2414 = vsub.f32 %v2326, %v2413
    %v2415 = vand.u32 %v2414, 4294901760
    %v2416 = vsub.f32 %v2414, %v2415
    %v2417 = vand.u32 %v2416, 4294901760
    %2418 = vmatprep.subr.mxu0 %v2417
    %v2419 = vand.u32 %v2325, 4294901760
    %v2420 = vsub.f32 %v2325, %v2419
    %v2421 = vand.u32 %v2420, 4294901760
    %v2422 = vsub.f32 %v2420, %v2421
    %v2423 = vand.u32 %v2422, 4294901760
    %2424 = vmatpush1.msra.mxu0 %v2423
    %v2425 = vand.u32 %v2328, 4294901760
    %v2426 = vsub.f32 %v2328, %v2425
    %v2427 = vand.u32 %v2426, 4294901760
    %v2428 = vsub.f32 %v2426, %v2427
    %v2429 = vand.u32 %v2428, 4294901760
    %2430 = vmatprep.subr.mxu0 %v2429
    %v2431 = vand.u32 %v2327, 4294901760
    %v2432 = vsub.f32 %v2327, %v2431
    %v2433 = vand.u32 %v2432, 4294901760
    %v2434 = vsub.f32 %v2432, %v2433
    %v2435 = vand.u32 %v2434, 4294901760
    %2436 = vmatpush1.msra.mxu0 %v2435
    %2437 = vmatprep.subr.mxu0 0.0
    %2438 = vmatpush1.msra.mxu0 0.0
    %2439 = vmatprep.subr.mxu0 0.0
    %2440 = vmatpush1.msra.mxu0 0.0
    %2441 = vmatprep.subr.mxu0 0.0
    %2442 = vmatpush1.msra.mxu0 0.0
    %2443 = vmatprep.subr.mxu0 0.0
    %2444 = vmatpush1.msra.mxu0 0.0
    %2445 = vmatprep.subr.mxu0 0.0
    %2446 = vmatpush1.msra.mxu0 0.0
    %2447 = vmatprep.subr.mxu0 0.0
    %2448 = vmatpush1.msra.mxu0 0.0
    %2449 = vmatprep.subr.mxu0 0.0
    %2450 = vmatpush1.msra.mxu0 0.0
    %2451 = vmatprep.subr.mxu0 0.0
    %2452 = vmatpush1.msra.mxu0 0.0
    %2453 = vmatprep.subr.mxu0 0.0
    %2454 = vmatpush1.msra.mxu0 0.0
    %2455 = vmatprep.subr.mxu0 0.0
    %2456 = vmatpush1.msra.mxu0 0.0
    %2457 = vmatprep.subr.mxu0 0.0
    %2458 = vmatpush1.msra.mxu0 0.0
    %2459 = vmatprep.subr.mxu0 0.0
    %2460 = vmatpush1.msra.mxu0 0.0
    %2461 = vmatprep.subr.mxu0 0.0
    %2462 = vmatpush1.msra.mxu0 0.0
    %2463 = vmatprep.subr.mxu0 0.0
    %2464 = vmatpush1.msra.mxu0 0.0
    %2465 = vmatprep.subr.mxu0 0.0
    %2466 = vmatpush1.msra.mxu0 0.0
    %2467 = vmatprep.subr.mxu0 0.0
    %2468 = vmatpush1.msra.mxu0 0.0
    %2469 = vmatprep.subr.mxu0 0.0
    %2470 = vmatpush1.msra.mxu0 0.0
    %2471 = vmatprep.subr.mxu0 0.0
    %2472 = vmatpush1.msra.mxu0 0.0
    %2473 = vmatprep.subr.mxu0 0.0
    %2474 = vmatpush1.msra.mxu0 0.0
    %2475 = vmatprep.subr.mxu0 0.0
    %2476 = vmatpush1.msra.mxu0 0.0
    %2477 = vmatprep.subr.mxu0 0.0
    %2478 = vmatpush1.msra.mxu0 0.0
    %2479 = vmatprep.subr.mxu0 0.0
    %2480 = vmatpush1.msra.mxu0 0.0
    %2481 = vmatprep.subr.mxu0 0.0
    %2482 = vmatpush1.msra.mxu0 0.0
    %2483 = vmatprep.subr.mxu0 0.0
    %2484 = vmatpush1.msra.mxu0 0.0
    %2485 = vmatprep.subr.mxu0 0.0
    %2486 = vmatpush1.msra.mxu0 0.0
    %2487 = vmatprep.subr.mxu0 0.0
    %2488 = vmatpush1.msra.mxu0 0.0
    %2489 = vmatprep.subr.mxu0 0.0
    %2490 = vmatpush1.msra.mxu0 0.0
    %2491 = vmatprep.subr.mxu0 0.0
    %2492 = vmatpush1.msra.mxu0 0.0
    %2493 = vmatprep.subr.mxu0 0.0
    %2494 = vmatpush1.msra.mxu0 0.0
    %2495 = vmatprep.subr.mxu0 0.0
    %2496 = vmatpush1.msra.mxu0 0.0
    %2497 = vmatprep.mubr.f32.mxu0 0.0
    %v2498 = vand.u32 %v2331, 4294901760
    %2499 = vmatmul.mubr.f32.gmra.mrb[0].mxu0 %v2498
    %v2500 = vpop.f32.mrb[0].mxu0
    %v2501 = vadd.f32 %v2409, %v2500
    %v2502 = vpop.f32.mrb[0].mxu0
    %v2503 = vadd.f32 %v2411, %v2502
    %2504 = vdwg.mxu0
    %v2505 = vand.u32 %v2326, 4294901760
    %v2506 = vsub.f32 %v2326, %v2505
    %2507 = vmatprep.subr.mxu0 %v2506
    %v2508 = vand.u32 %v2325, 4294901760
    %v2509 = vsub.f32 %v2325, %v2508
    %2510 = vmatpush1.msra.mxu0 %v2509
    %v2511 = vand.u32 %v2328, 4294901760
    %v2512 = vsub.f32 %v2328, %v2511
    %2513 = vmatprep.subr.mxu0 %v2512
    %v2514 = vand.u32 %v2327, 4294901760
    %v2515 = vsub.f32 %v2327, %v2514
    %2516 = vmatpush1.msra.mxu0 %v2515
    %2517 = vmatprep.subr.mxu0 0.0
    %2518 = vmatpush1.msra.mxu0 0.0
    %2519 = vmatprep.subr.mxu0 0.0
    %2520 = vmatpush1.msra.mxu0 0.0
    %2521 = vmatprep.subr.mxu0 0.0
    %2522 = vmatpush1.msra.mxu0 0.0
    %2523 = vmatprep.subr.mxu0 0.0
    %2524 = vmatpush1.msra.mxu0 0.0
    %2525 = vmatprep.subr.mxu0 0.0
    %2526 = vmatpush1.msra.mxu0 0.0
    %2527 = vmatprep.subr.mxu0 0.0
    %2528 = vmatpush1.msra.mxu0 0.0
    %2529 = vmatprep.subr.mxu0 0.0
    %2530 = vmatpush1.msra.mxu0 0.0
    %2531 = vmatprep.subr.mxu0 0.0
    %2532 = vmatpush1.msra.mxu0 0.0
    %2533 = vmatprep.subr.mxu0 0.0
    %2534 = vmatpush1.msra.mxu0 0.0
    %2535 = vmatprep.subr.mxu0 0.0
    %2536 = vmatpush1.msra.mxu0 0.0
    %2537 = vmatprep.subr.mxu0 0.0
    %2538 = vmatpush1.msra.mxu0 0.0
    %2539 = vmatprep.subr.mxu0 0.0
    %2540 = vmatpush1.msra.mxu0 0.0
    %2541 = vmatprep.subr.mxu0 0.0
    %2542 = vmatpush1.msra.mxu0 0.0
    %2543 = vmatprep.subr.mxu0 0.0
    %2544 = vmatpush1.msra.mxu0 0.0
    %2545 = vmatprep.subr.mxu0 0.0
    %2546 = vmatpush1.msra.mxu0 0.0
    %2547 = vmatprep.subr.mxu0 0.0
    %2548 = vmatpush1.msra.mxu0 0.0
    %2549 = vmatprep.subr.mxu0 0.0
    %2550 = vmatpush1.msra.mxu0 0.0
    %2551 = vmatprep.subr.mxu0 0.0
    %2552 = vmatpush1.msra.mxu0 0.0
    %2553 = vmatprep.subr.mxu0 0.0
    %2554 = vmatpush1.msra.mxu0 0.0
    %2555 = vmatprep.subr.mxu0 0.0
    %2556 = vmatpush1.msra.mxu0 0.0
    %2557 = vmatprep.subr.mxu0 0.0
    %2558 = vmatpush1.msra.mxu0 0.0
    %2559 = vmatprep.subr.mxu0 0.0
    %2560 = vmatpush1.msra.mxu0 0.0
    %2561 = vmatprep.subr.mxu0 0.0
    %2562 = vmatpush1.msra.mxu0 0.0
    %2563 = vmatprep.subr.mxu0 0.0
    %2564 = vmatpush1.msra.mxu0 0.0
    %2565 = vmatprep.subr.mxu0 0.0
    %2566 = vmatpush1.msra.mxu0 0.0
    %2567 = vmatprep.subr.mxu0 0.0
    %2568 = vmatpush1.msra.mxu0 0.0
    %2569 = vmatprep.subr.mxu0 0.0
    %2570 = vmatpush1.msra.mxu0 0.0
    %2571 = vmatprep.subr.mxu0 0.0
    %2572 = vmatpush1.msra.mxu0 0.0
    %2573 = vmatprep.subr.mxu0 0.0
    %2574 = vmatpush1.msra.mxu0 0.0
    %2575 = vmatprep.subr.mxu0 0.0
    %2576 = vmatpush1.msra.mxu0 0.0
    %2577 = vmatprep.mubr.f32.mxu0 0.0
    %v2578 = vand.u32 %v2331, 4294901760
    %v2579 = vsub.f32 %v2331, %v2578
    %2580 = vmatmul.mubr.f32.gmra.mrb[0].mxu0 %v2579
    %v2581 = vpop.f32.mrb[0].mxu0
    %v2582 = vadd.f32 %v2501, %v2581
    %v2583 = vpop.f32.mrb[0].mxu0
    %v2584 = vadd.f32 %v2503, %v2583
    %2585 = vdwg.mxu0
    %v2586 = vand.u32 %v2326, 4294901760
    %2587 = vmatprep.subr.mxu0 %v2586
    %v2588 = vand.u32 %v2325, 4294901760
    %2589 = vmatpush1.msra.mxu0 %v2588
    %v2590 = vand.u32 %v2328, 4294901760
    %2591 = vmatprep.subr.mxu0 %v2590
    %v2592 = vand.u32 %v2327, 4294901760
    %2593 = vmatpush1.msra.mxu0 %v2592
    %2594 = vmatprep.subr.mxu0 0.0
    %2595 = vmatpush1.msra.mxu0 0.0
    %2596 = vmatprep.subr.mxu0 0.0
    %2597 = vmatpush1.msra.mxu0 0.0
    %2598 = vmatprep.subr.mxu0 0.0
    %2599 = vmatpush1.msra.mxu0 0.0
    %2600 = vmatprep.subr.mxu0 0.0
    %2601 = vmatpush1.msra.mxu0 0.0
    %2602 = vmatprep.subr.mxu0 0.0
    %2603 = vmatpush1.msra.mxu0 0.0
    %2604 = vmatprep.subr.mxu0 0.0
    %2605 = vmatpush1.msra.mxu0 0.0
    %2606 = vmatprep.subr.mxu0 0.0
    %2607 = vmatpush1.msra.mxu0 0.0
    %2608 = vmatprep.subr.mxu0 0.0
    %2609 = vmatpush1.msra.mxu0 0.0
    %2610 = vmatprep.subr.mxu0 0.0
    %2611 = vmatpush1.msra.mxu0 0.0
    %2612 = vmatprep.subr.mxu0 0.0
    %2613 = vmatpush1.msra.mxu0 0.0
    %2614 = vmatprep.subr.mxu0 0.0
    %2615 = vmatpush1.msra.mxu0 0.0
    %2616 = vmatprep.subr.mxu0 0.0
    %2617 = vmatpush1.msra.mxu0 0.0
    %2618 = vmatprep.subr.mxu0 0.0
    %2619 = vmatpush1.msra.mxu0 0.0
    %2620 = vmatprep.subr.mxu0 0.0
    %2621 = vmatpush1.msra.mxu0 0.0
    %2622 = vmatprep.subr.mxu0 0.0
    %2623 = vmatpush1.msra.mxu0 0.0
    %2624 = vmatprep.subr.mxu0 0.0
    %2625 = vmatpush1.msra.mxu0 0.0
    %2626 = vmatprep.subr.mxu0 0.0
    %2627 = vmatpush1.msra.mxu0 0.0
    %2628 = vmatprep.subr.mxu0 0.0
    %2629 = vmatpush1.msra.mxu0 0.0
    %2630 = vmatprep.subr.mxu0 0.0
    %2631 = vmatpush1.msra.mxu0 0.0
    %2632 = vmatprep.subr.mxu0 0.0
    %2633 = vmatpush1.msra.mxu0 0.0
    %2634 = vmatprep.subr.mxu0 0.0
    %2635 = vmatpush1.msra.mxu0 0.0
    %2636 = vmatprep.subr.mxu0 0.0
    %2637 = vmatpush1.msra.mxu0 0.0
    %2638 = vmatprep.subr.mxu0 0.0
    %2639 = vmatpush1.msra.mxu0 0.0
    %2640 = vmatprep.subr.mxu0 0.0
    %2641 = vmatpush1.msra.mxu0 0.0
    %2642 = vmatprep.subr.mxu0 0.0
    %2643 = vmatpush1.msra.mxu0 0.0
    %2644 = vmatprep.subr.mxu0 0.0
    %2645 = vmatpush1.msra.mxu0 0.0
    %2646 = vmatprep.subr.mxu0 0.0
    %2647 = vmatpush1.msra.mxu0 0.0
    %2648 = vmatprep.subr.mxu0 0.0
    %2649 = vmatpush1.msra.mxu0 0.0
    %2650 = vmatprep.subr.mxu0 0.0
    %2651 = vmatpush1.msra.mxu0 0.0
    %2652 = vmatprep.subr.mxu0 0.0
    %2653 = vmatpush1.msra.mxu0 0.0
    %2654 = vmatprep.mubr.f32.mxu0 0.0
    %v2655 = vand.u32 %v2331, 4294901760
    %v2656 = vsub.f32 %v2331, %v2655
    %v2657 = vand.u32 %v2656, 4294901760
    %2658 = vmatmul.mubr.f32.gmra.mrb[0].mxu0 %v2657
    %v2659 = vpop.f32.mrb[0].mxu0
    %v2660 = vadd.f32 %v2582, %v2659
    %v2661 = vpop.f32.mrb[0].mxu0
    %v2662 = vadd.f32 %v2584, %v2661
    %2663 = vdwg.mxu0
    %v2664 = vand.u32 %v2326, 4294901760
    %v2665 = vsub.f32 %v2326, %v2664
    %v2666 = vand.u32 %v2665, 4294901760
    %2667 = vmatprep.subr.mxu0 %v2666
    %v2668 = vand.u32 %v2325, 4294901760
    %v2669 = vsub.f32 %v2325, %v2668
    %v2670 = vand.u32 %v2669, 4294901760
    %2671 = vmatpush1.msra.mxu0 %v2670
    %v2672 = vand.u32 %v2328, 4294901760
    %v2673 = vsub.f32 %v2328, %v2672
    %v2674 = vand.u32 %v2673, 4294901760
    %2675 = vmatprep.subr.mxu0 %v2674
    %v2676 = vand.u32 %v2327, 4294901760
    %v2677 = vsub.f32 %v2327, %v2676
    %v2678 = vand.u32 %v2677, 4294901760
    %2679 = vmatpush1.msra.mxu0 %v2678
    %2680 = vmatprep.subr.mxu0 0.0
    %2681 = vmatpush1.msra.mxu0 0.0
    %2682 = vmatprep.subr.mxu0 0.0
    %2683 = vmatpush1.msra.mxu0 0.0
    %2684 = vmatprep.subr.mxu0 0.0
    %2685 = vmatpush1.msra.mxu0 0.0
    %2686 = vmatprep.subr.mxu0 0.0
    %2687 = vmatpush1.msra.mxu0 0.0
    %2688 = vmatprep.subr.mxu0 0.0
    %2689 = vmatpush1.msra.mxu0 0.0
    %2690 = vmatprep.subr.mxu0 0.0
    %2691 = vmatpush1.msra.mxu0 0.0
    %2692 = vmatprep.subr.mxu0 0.0
    %2693 = vmatpush1.msra.mxu0 0.0
    %2694 = vmatprep.subr.mxu0 0.0
    %2695 = vmatpush1.msra.mxu0 0.0
    %2696 = vmatprep.subr.mxu0 0.0
    %2697 = vmatpush1.msra.mxu0 0.0
    %2698 = vmatprep.subr.mxu0 0.0
    %2699 = vmatpush1.msra.mxu0 0.0
    %2700 = vmatprep.subr.mxu0 0.0
    %2701 = vmatpush1.msra.mxu0 0.0
    %2702 = vmatprep.subr.mxu0 0.0
    %2703 = vmatpush1.msra.mxu0 0.0
    %2704 = vmatprep.subr.mxu0 0.0
    %2705 = vmatpush1.msra.mxu0 0.0
    %2706 = vmatprep.subr.mxu0 0.0
    %2707 = vmatpush1.msra.mxu0 0.0
    %2708 = vmatprep.subr.mxu0 0.0
    %2709 = vmatpush1.msra.mxu0 0.0
    %2710 = vmatprep.subr.mxu0 0.0
    %2711 = vmatpush1.msra.mxu0 0.0
    %2712 = vmatprep.subr.mxu0 0.0
    %2713 = vmatpush1.msra.mxu0 0.0
    %2714 = vmatprep.subr.mxu0 0.0
    %2715 = vmatpush1.msra.mxu0 0.0
    %2716 = vmatprep.subr.mxu0 0.0
    %2717 = vmatpush1.msra.mxu0 0.0
    %2718 = vmatprep.subr.mxu0 0.0
    %2719 = vmatpush1.msra.mxu0 0.0
    %2720 = vmatprep.subr.mxu0 0.0
    %2721 = vmatpush1.msra.mxu0 0.0
    %2722 = vmatprep.subr.mxu0 0.0
    %2723 = vmatpush1.msra.mxu0 0.0
    %2724 = vmatprep.subr.mxu0 0.0
    %2725 = vmatpush1.msra.mxu0 0.0
    %2726 = vmatprep.subr.mxu0 0.0
    %2727 = vmatpush1.msra.mxu0 0.0
    %2728 = vmatprep.subr.mxu0 0.0
    %2729 = vmatpush1.msra.mxu0 0.0
    %2730 = vmatprep.subr.mxu0 0.0
    %2731 = vmatpush1.msra.mxu0 0.0
    %2732 = vmatprep.subr.mxu0 0.0
    %2733 = vmatpush1.msra.mxu0 0.0
    %2734 = vmatprep.subr.mxu0 0.0
    %2735 = vmatpush1.msra.mxu0 0.0
    %2736 = vmatprep.subr.mxu0 0.0
    %2737 = vmatpush1.msra.mxu0 0.0
    %2738 = vmatprep.subr.mxu0 0.0
    %2739 = vmatpush1.msra.mxu0 0.0
    %2740 = vmatprep.mubr.f32.mxu0 0.0
    %v2741 = vand.u32 %v2331, 4294901760
    %2742 = vmatmul.mubr.f32.gmra.mrb[0].mxu0 %v2741
    %v2743 = vpop.f32.mrb[0].mxu0
    %v2744 = vadd.f32 %v2660, %v2743
    %v2745 = vpop.f32.mrb[0].mxu0
    %v2746 = vadd.f32 %v2662, %v2745
    %2747 = vdwg.mxu0
    %v2748 = vand.u32 %v2326, 4294901760
    %2749 = vmatprep.subr.mxu0 %v2748
    %v2750 = vand.u32 %v2325, 4294901760
    %2751 = vmatpush1.msra.mxu0 %v2750
    %v2752 = vand.u32 %v2328, 4294901760
    %2753 = vmatprep.subr.mxu0 %v2752
    %v2754 = vand.u32 %v2327, 4294901760
    %2755 = vmatpush1.msra.mxu0 %v2754
    %2756 = vmatprep.subr.mxu0 0.0
    %2757 = vmatpush1.msra.mxu0 0.0
    %2758 = vmatprep.subr.mxu0 0.0
    %2759 = vmatpush1.msra.mxu0 0.0
    %2760 = vmatprep.subr.mxu0 0.0
    %2761 = vmatpush1.msra.mxu0 0.0
    %2762 = vmatprep.subr.mxu0 0.0
    %2763 = vmatpush1.msra.mxu0 0.0
    %2764 = vmatprep.subr.mxu0 0.0
    %2765 = vmatpush1.msra.mxu0 0.0
    %2766 = vmatprep.subr.mxu0 0.0
    %2767 = vmatpush1.msra.mxu0 0.0
    %2768 = vmatprep.subr.mxu0 0.0
    %2769 = vmatpush1.msra.mxu0 0.0
    %2770 = vmatprep.subr.mxu0 0.0
    %2771 = vmatpush1.msra.mxu0 0.0
    %2772 = vmatprep.subr.mxu0 0.0
    %2773 = vmatpush1.msra.mxu0 0.0
    %2774 = vmatprep.subr.mxu0 0.0
    %2775 = vmatpush1.msra.mxu0 0.0
    %2776 = vmatprep.subr.mxu0 0.0
    %2777 = vmatpush1.msra.mxu0 0.0
    %2778 = vmatprep.subr.mxu0 0.0
    %2779 = vmatpush1.msra.mxu0 0.0
    %2780 = vmatprep.subr.mxu0 0.0
    %2781 = vmatpush1.msra.mxu0 0.0
    %2782 = vmatprep.subr.mxu0 0.0
    %2783 = vmatpush1.msra.mxu0 0.0
    %2784 = vmatprep.subr.mxu0 0.0
    %2785 = vmatpush1.msra.mxu0 0.0
    %2786 = vmatprep.subr.mxu0 0.0
    %2787 = vmatpush1.msra.mxu0 0.0
    %2788 = vmatprep.subr.mxu0 0.0
    %2789 = vmatpush1.msra.mxu0 0.0
    %2790 = vmatprep.subr.mxu0 0.0
    %2791 = vmatpush1.msra.mxu0 0.0
    %2792 = vmatprep.subr.mxu0 0.0
    %2793 = vmatpush1.msra.mxu0 0.0
    %2794 = vmatprep.subr.mxu0 0.0
    %2795 = vmatpush1.msra.mxu0 0.0
    %2796 = vmatprep.subr.mxu0 0.0
    %2797 = vmatpush1.msra.mxu0 0.0
    %2798 = vmatprep.subr.mxu0 0.0
    %2799 = vmatpush1.msra.mxu0 0.0
    %2800 = vmatprep.subr.mxu0 0.0
    %2801 = vmatpush1.msra.mxu0 0.0
    %2802 = vmatprep.subr.mxu0 0.0
    %2803 = vmatpush1.msra.mxu0 0.0
    %2804 = vmatprep.subr.mxu0 0.0
    %2805 = vmatpush1.msra.mxu0 0.0
    %2806 = vmatprep.subr.mxu0 0.0
    %2807 = vmatpush1.msra.mxu0 0.0
    %2808 = vmatprep.subr.mxu0 0.0
    %2809 = vmatpush1.msra.mxu0 0.0
    %2810 = vmatprep.subr.mxu0 0.0
    %2811 = vmatpush1.msra.mxu0 0.0
    %2812 = vmatprep.subr.mxu0 0.0
    %2813 = vmatpush1.msra.mxu0 0.0
    %2814 = vmatprep.subr.mxu0 0.0
    %2815 = vmatpush1.msra.mxu0 0.0
    %2816 = vmatprep.mubr.f32.mxu0 0.0
    %v2817 = vand.u32 %v2331, 4294901760
    %2818 = vmatmul.mubr.f32.gmra.mrb[0].mxu0 %v2817
    %v2819 = vpop.f32.mrb[0].mxu0
    %v2820 = vadd.f32 %v2744, %v2819
    %v2821 = vpop.f32.mrb[0].mxu0
    %v2822 = vadd.f32 %v2746, %v2821
    %2823 = vdwg.mxu0
    %v2826 = vrot.slane %v2820, 2
    %v2827 = vrot.slane %v2822, 2
    %v2830 = vadd.f32 %v2820, %v2826
    %v2831 = vadd.f32 %v2822, %v2827
    %v2832 = vxor.u32 %v2830, 2147483648
    %v2833 = vxor.u32 %v2831, 2147483648
    %v2834 = vmul.f32 %v2832, 1.442695
    %v2835 = vpow.pop %v2834
    %v2836 = vmul.f32 %v2833, 1.442695
    %v2837 = vpow.pop %v2836
    %v2838 = vadd.f32 %v2835, 1.0
    %v2839 = vadd.f32 %v2837, 1.0
    %v2840 = vrcp.pop %v2838
    %v2841 = vmul.f32 1.0, %v2840
    %v2842 = vrcp.pop %v2839
    %v2843 = vmul.f32 1.0, %v2842
    %v2844 = vlaneseq
    %v2845 = vshrl.u32 %v2844, 7
    %v2846 = vsub.s32 0, %v2845
    %v2847 = vrot.slane %v2841, %v2846
    %2849 = vbcast.lane.b32.xlu0 %v2847, 256
    %v2850 = vpop.permute.xlu0 %2849
    %s2852 = sor.u32 256, 8
    %2853 = vbcast.lane.b32.xlu0 %v2847, %s2852
    %v2854 = vpop.permute.xlu0 %2853
    %s2856 = sor.u32 256, 16
    %2857 = vbcast.lane.b32.xlu0 %v2847, %s2856
    %v2858 = vpop.permute.xlu0 %2857
    %s2860 = sor.u32 256, 24
    %2861 = vbcast.lane.b32.xlu0 %v2847, %s2860
    %v2862 = vpop.permute.xlu0 %2861
    %s2864 = sor.u32 256, 32
    %2865 = vbcast.lane.b32.xlu0 %v2847, %s2864
    %v2866 = vpop.permute.xlu0 %2865
    %s2868 = sor.u32 256, 40
    %2869 = vbcast.lane.b32.xlu0 %v2847, %s2868
    %v2870 = vpop.permute.xlu0 %2869
    %s2872 = sor.u32 256, 48
    %2873 = vbcast.lane.b32.xlu0 %v2847, %s2872
    %v2874 = vpop.permute.xlu0 %2873
    %s2876 = sor.u32 256, 56
    %2877 = vbcast.lane.b32.xlu0 %v2847, %s2876
    %v2878 = vpop.permute.xlu0 %2877
    %s2880 = sor.u32 256, 64
    %2881 = vbcast.lane.b32.xlu0 %v2847, %s2880
    %v2882 = vpop.permute.xlu0 %2881
    %s2884 = sor.u32 256, 72
    %2885 = vbcast.lane.b32.xlu0 %v2847, %s2884
    %v2886 = vpop.permute.xlu0 %2885
    %s2888 = sor.u32 256, 80
    %2889 = vbcast.lane.b32.xlu0 %v2847, %s2888
    %v2890 = vpop.permute.xlu0 %2889
    %s2892 = sor.u32 256, 88
    %2893 = vbcast.lane.b32.xlu0 %v2847, %s2892
    %v2894 = vpop.permute.xlu0 %2893
    %s2896 = sor.u32 256, 96
    %2897 = vbcast.lane.b32.xlu0 %v2847, %s2896
    %v2898 = vpop.permute.xlu0 %2897
    %s2900 = sor.u32 256, 104
    %2901 = vbcast.lane.b32.xlu0 %v2847, %s2900
    %v2902 = vpop.permute.xlu0 %2901
    %s2904 = sor.u32 256, 112
    %2905 = vbcast.lane.b32.xlu0 %v2847, %s2904
    %v2906 = vpop.permute.xlu0 %2905
    %s2908 = sor.u32 256, 120
    %2909 = vbcast.lane.b32.xlu0 %v2847, %s2908
    %v2910 = vpop.permute.xlu0 %2909
    %v2911 = vlaneseq
    %v2912 = vshrl.u32 %v2911, 7
    %v2913 = vsub.s32 0, %v2912
    %v2914 = vrot.slane %v2843, %v2913
    %2916 = vbcast.lane.b32.xlu0 %v2914, 256
    %v2917 = vpop.permute.xlu0 %2916
    %s2919 = sor.u32 256, 8
    %2920 = vbcast.lane.b32.xlu0 %v2914, %s2919
    %v2921 = vpop.permute.xlu0 %2920
    %s2923 = sor.u32 256, 16
    %2924 = vbcast.lane.b32.xlu0 %v2914, %s2923
    %v2925 = vpop.permute.xlu0 %2924
    %s2927 = sor.u32 256, 24
    %2928 = vbcast.lane.b32.xlu0 %v2914, %s2927
    %v2929 = vpop.permute.xlu0 %2928
    %s2931 = sor.u32 256, 32
    %2932 = vbcast.lane.b32.xlu0 %v2914, %s2931
    %v2933 = vpop.permute.xlu0 %2932
    %s2935 = sor.u32 256, 40
    %2936 = vbcast.lane.b32.xlu0 %v2914, %s2935
    %v2937 = vpop.permute.xlu0 %2936
    %s2939 = sor.u32 256, 48
    %2940 = vbcast.lane.b32.xlu0 %v2914, %s2939
    %v2941 = vpop.permute.xlu0 %2940
    %s2943 = sor.u32 256, 56
    %2944 = vbcast.lane.b32.xlu0 %v2914, %s2943
    %v2945 = vpop.permute.xlu0 %2944
    %s2947 = sor.u32 256, 64
    %2948 = vbcast.lane.b32.xlu0 %v2914, %s2947
    %v2949 = vpop.permute.xlu0 %2948
    %s2951 = sor.u32 256, 72
    %2952 = vbcast.lane.b32.xlu0 %v2914, %s2951
    %v2953 = vpop.permute.xlu0 %2952
    %s2955 = sor.u32 256, 80
    %2956 = vbcast.lane.b32.xlu0 %v2914, %s2955
    %v2957 = vpop.permute.xlu0 %2956
    %s2959 = sor.u32 256, 88
    %2960 = vbcast.lane.b32.xlu0 %v2914, %s2959
    %v2961 = vpop.permute.xlu0 %2960
    %s2963 = sor.u32 256, 96
    %2964 = vbcast.lane.b32.xlu0 %v2914, %s2963
    %v2965 = vpop.permute.xlu0 %2964
    %s2967 = sor.u32 256, 104
    %2968 = vbcast.lane.b32.xlu0 %v2914, %s2967
    %v2969 = vpop.permute.xlu0 %2968
    %s2971 = sor.u32 256, 112
    %2972 = vbcast.lane.b32.xlu0 %v2914, %s2971
    %v2973 = vpop.permute.xlu0 %2972
    %s2975 = sor.u32 256, 120
    %2976 = vbcast.lane.b32.xlu0 %v2914, %s2975
    %v2977 = vpop.permute.xlu0 %2976
    %v2978 = vlaneseq
    %v2979 = vshrl.u32 %v2978, 7
    %v2980 = vsub.s32 1, %v2979
    %v2981 = vrot.slane %v2841, %v2980
    %2983 = vbcast.lane.b32.xlu0 %v2981, 256
    %v2984 = vpop.permute.xlu0 %2983
    %s2986 = sor.u32 256, 8
    %2987 = vbcast.lane.b32.xlu0 %v2981, %s2986
    %v2988 = vpop.permute.xlu0 %2987
    %s2990 = sor.u32 256, 16
    %2991 = vbcast.lane.b32.xlu0 %v2981, %s2990
    %v2992 = vpop.permute.xlu0 %2991
    %s2994 = sor.u32 256, 24
    %2995 = vbcast.lane.b32.xlu0 %v2981, %s2994
    %v2996 = vpop.permute.xlu0 %2995
    %s2998 = sor.u32 256, 32
    %2999 = vbcast.lane.b32.xlu0 %v2981, %s2998
    %v3000 = vpop.permute.xlu0 %2999
    %s3002 = sor.u32 256, 40
    %3003 = vbcast.lane.b32.xlu0 %v2981, %s3002
    %v3004 = vpop.permute.xlu0 %3003
    %s3006 = sor.u32 256, 48
    %3007 = vbcast.lane.b32.xlu0 %v2981, %s3006
    %v3008 = vpop.permute.xlu0 %3007
    %s3010 = sor.u32 256, 56
    %3011 = vbcast.lane.b32.xlu0 %v2981, %s3010
    %v3012 = vpop.permute.xlu0 %3011
    %s3014 = sor.u32 256, 64
    %3015 = vbcast.lane.b32.xlu0 %v2981, %s3014
    %v3016 = vpop.permute.xlu0 %3015
    %s3018 = sor.u32 256, 72
    %3019 = vbcast.lane.b32.xlu0 %v2981, %s3018
    %v3020 = vpop.permute.xlu0 %3019
    %s3022 = sor.u32 256, 80
    %3023 = vbcast.lane.b32.xlu0 %v2981, %s3022
    %v3024 = vpop.permute.xlu0 %3023
    %s3026 = sor.u32 256, 88
    %3027 = vbcast.lane.b32.xlu0 %v2981, %s3026
    %v3028 = vpop.permute.xlu0 %3027
    %s3030 = sor.u32 256, 96
    %3031 = vbcast.lane.b32.xlu0 %v2981, %s3030
    %v3032 = vpop.permute.xlu0 %3031
    %s3034 = sor.u32 256, 104
    %3035 = vbcast.lane.b32.xlu0 %v2981, %s3034
    %v3036 = vpop.permute.xlu0 %3035
    %s3038 = sor.u32 256, 112
    %3039 = vbcast.lane.b32.xlu0 %v2981, %s3038
    %v3040 = vpop.permute.xlu0 %3039
    %s3042 = sor.u32 256, 120
    %3043 = vbcast.lane.b32.xlu0 %v2981, %s3042
    %v3044 = vpop.permute.xlu0 %3043
    %v3045 = vlaneseq
    %v3046 = vshrl.u32 %v3045, 7
    %v3047 = vsub.s32 1, %v3046
    %v3048 = vrot.slane %v2843, %v3047
    %3050 = vbcast.lane.b32.xlu0 %v3048, 256
    %v3051 = vpop.permute.xlu0 %3050
    %s3053 = sor.u32 256, 8
    %3054 = vbcast.lane.b32.xlu0 %v3048, %s3053
    %v3055 = vpop.permute.xlu0 %3054
    %s3057 = sor.u32 256, 16
    %3058 = vbcast.lane.b32.xlu0 %v3048, %s3057
    %v3059 = vpop.permute.xlu0 %3058
    %s3061 = sor.u32 256, 24
    %3062 = vbcast.lane.b32.xlu0 %v3048, %s3061
    %v3063 = vpop.permute.xlu0 %3062
    %s3065 = sor.u32 256, 32
    %3066 = vbcast.lane.b32.xlu0 %v3048, %s3065
    %v3067 = vpop.permute.xlu0 %3066
    %s3069 = sor.u32 256, 40
    %3070 = vbcast.lane.b32.xlu0 %v3048, %s3069
    %v3071 = vpop.permute.xlu0 %3070
    %s3073 = sor.u32 256, 48
    %3074 = vbcast.lane.b32.xlu0 %v3048, %s3073
    %v3075 = vpop.permute.xlu0 %3074
    %s3077 = sor.u32 256, 56
    %3078 = vbcast.lane.b32.xlu0 %v3048, %s3077
    %v3079 = vpop.permute.xlu0 %3078
    %s3081 = sor.u32 256, 64
    %3082 = vbcast.lane.b32.xlu0 %v3048, %s3081
    %v3083 = vpop.permute.xlu0 %3082
    %s3085 = sor.u32 256, 72
    %3086 = vbcast.lane.b32.xlu0 %v3048, %s3085
    %v3087 = vpop.permute.xlu0 %3086
    %s3089 = sor.u32 256, 80
    %3090 = vbcast.lane.b32.xlu0 %v3048, %s3089
    %v3091 = vpop.permute.xlu0 %3090
    %s3093 = sor.u32 256, 88
    %3094 = vbcast.lane.b32.xlu0 %v3048, %s3093
    %v3095 = vpop.permute.xlu0 %3094
    %s3097 = sor.u32 256, 96
    %3098 = vbcast.lane.b32.xlu0 %v3048, %s3097
    %v3099 = vpop.permute.xlu0 %3098
    %s3101 = sor.u32 256, 104
    %3102 = vbcast.lane.b32.xlu0 %v3048, %s3101
    %v3103 = vpop.permute.xlu0 %3102
    %s3105 = sor.u32 256, 112
    %3106 = vbcast.lane.b32.xlu0 %v3048, %s3105
    %v3107 = vpop.permute.xlu0 %3106
    %s3109 = sor.u32 256, 120
    %3110 = vbcast.lane.b32.xlu0 %v3048, %s3109
    %v3111 = vpop.permute.xlu0 %3110
    %v3112 = vmul.f32 %v49, %v2850
    %v3113 = vmul.f32 %v50, %v2850
    %v3114 = vmul.f32 %v51, %v2854
    %v3115 = vmul.f32 %v52, %v2854
    %v3116 = vmul.f32 %v53, %v2858
    %v3117 = vmul.f32 %v54, %v2858
    %v3118 = vmul.f32 %v55, %v2862
    %v3119 = vmul.f32 %v56, %v2862
    %v3120 = vmul.f32 %v57, %v2866
    %v3121 = vmul.f32 %v58, %v2866
    %v3122 = vmul.f32 %v59, %v2870
    %v3123 = vmul.f32 %v60, %v2870
    %v3124 = vmul.f32 %v61, %v2874
    %v3125 = vmul.f32 %v62, %v2874
    %v3126 = vmul.f32 %v63, %v2878
    %v3127 = vmul.f32 %v64, %v2878
    %v3128 = vmul.f32 %v65, %v2882
    %v3129 = vmul.f32 %v66, %v2882
    %v3130 = vmul.f32 %v67, %v2886
    %v3131 = vmul.f32 %v68, %v2886
    %v3132 = vmul.f32 %v69, %v2890
    %v3133 = vmul.f32 %v70, %v2890
    %v3134 = vmul.f32 %v71, %v2894
    %v3135 = vmul.f32 %v72, %v2894
    %v3136 = vmul.f32 %v73, %v2898
    %v3137 = vmul.f32 %v74, %v2898
    %v3138 = vmul.f32 %v75, %v2902
    %v3139 = vmul.f32 %v76, %v2902
    %v3140 = vmul.f32 %v77, %v2906
    %v3141 = vmul.f32 %v78, %v2906
    %v3142 = vmul.f32 %v79, %v2910
    %v3143 = vmul.f32 %v80, %v2910
    %v3144 = vmul.f32 %v81, %v2917
    %v3145 = vmul.f32 %v82, %v2917
    %v3146 = vmul.f32 %v83, %v2921
    %v3147 = vmul.f32 %v84, %v2921
    %v3148 = vmul.f32 %v85, %v2925
    %v3149 = vmul.f32 %v86, %v2925
    %v3150 = vmul.f32 %v87, %v2929
    %v3151 = vmul.f32 %v88, %v2929
    %v3152 = vmul.f32 %v89, %v2933
    %v3153 = vmul.f32 %v90, %v2933
    %v3154 = vmul.f32 %v91, %v2937
    %v3155 = vmul.f32 %v92, %v2937
    %v3156 = vmul.f32 %v93, %v2941
    %v3157 = vmul.f32 %v94, %v2941
    %v3158 = vmul.f32 %v95, %v2945
    %v3159 = vmul.f32 %v96, %v2945
    %v3160 = vmul.f32 %v97, %v2949
    %v3161 = vmul.f32 %v98, %v2949
    %v3162 = vmul.f32 %v99, %v2953
    %v3163 = vmul.f32 %v100, %v2953
    %v3164 = vmul.f32 %v101, %v2957
    %v3165 = vmul.f32 %v102, %v2957
    %v3166 = vmul.f32 %v103, %v2961
    %v3167 = vmul.f32 %v104, %v2961
    %v3168 = vmul.f32 %v105, %v2965
    %v3169 = vmul.f32 %v106, %v2965
    %v3170 = vmul.f32 %v107, %v2969
    %v3171 = vmul.f32 %v108, %v2969
    %v3172 = vmul.f32 %v109, %v2973
    %v3173 = vmul.f32 %v110, %v2973
    %v3174 = vmul.f32 %v111, %v2977
    %v3175 = vmul.f32 %v112, %v2977
    %v3176 = vmul.f32 %v113, %v2984
    %v3177 = vmul.f32 %v114, %v2984
    %v3178 = vmul.f32 %v115, %v2988
    %v3179 = vmul.f32 %v116, %v2988
    %v3180 = vmul.f32 %v117, %v2992
    %v3181 = vmul.f32 %v118, %v2992
    %v3182 = vmul.f32 %v119, %v2996
    %v3183 = vmul.f32 %v120, %v2996
    %v3184 = vmul.f32 %v121, %v3000
    %v3185 = vmul.f32 %v122, %v3000
    %v3186 = vmul.f32 %v123, %v3004
    %v3187 = vmul.f32 %v124, %v3004
    %v3188 = vmul.f32 %v125, %v3008
    %v3189 = vmul.f32 %v126, %v3008
    %v3190 = vmul.f32 %v127, %v3012
    %v3191 = vmul.f32 %v128, %v3012
    %v3192 = vmul.f32 %v129, %v3016
    %v3193 = vmul.f32 %v130, %v3016
    %v3194 = vmul.f32 %v131, %v3020
    %v3195 = vmul.f32 %v132, %v3020
    %v3196 = vmul.f32 %v133, %v3024
    %v3197 = vmul.f32 %v134, %v3024
    %v3198 = vmul.f32 %v135, %v3028
    %v3199 = vmul.f32 %v136, %v3028
    %v3200 = vmul.f32 %v137, %v3032
    %v3201 = vmul.f32 %v138, %v3032
    %v3202 = vmul.f32 %v139, %v3036
    %v3203 = vmul.f32 %v140, %v3036
    %v3204 = vmul.f32 %v141, %v3040
    %v3205 = vmul.f32 %v142, %v3040
    %v3206 = vmul.f32 %v143, %v3044
    %v3207 = vmul.f32 %v144, %v3044
    %v3208 = vmul.f32 %v145, %v3051
    %v3209 = vmul.f32 %v146, %v3051
    %v3210 = vmul.f32 %v147, %v3055
    %v3211 = vmul.f32 %v148, %v3055
    %v3212 = vmul.f32 %v149, %v3059
    %v3213 = vmul.f32 %v150, %v3059
    %v3214 = vmul.f32 %v151, %v3063
    %v3215 = vmul.f32 %v152, %v3063
    %v3216 = vmul.f32 %v153, %v3067
    %v3217 = vmul.f32 %v154, %v3067
    %v3218 = vmul.f32 %v155, %v3071
    %v3219 = vmul.f32 %v156, %v3071
    %v3220 = vmul.f32 %v157, %v3075
    %v3221 = vmul.f32 %v158, %v3075
    %v3222 = vmul.f32 %v159, %v3079
    %v3223 = vmul.f32 %v160, %v3079
    %v3224 = vmul.f32 %v161, %v3083
    %v3225 = vmul.f32 %v162, %v3083
    %v3226 = vmul.f32 %v163, %v3087
    %v3227 = vmul.f32 %v164, %v3087
    %v3228 = vmul.f32 %v165, %v3091
    %v3229 = vmul.f32 %v166, %v3091
    %v3230 = vmul.f32 %v167, %v3095
    %v3231 = vmul.f32 %v168, %v3095
    %v3232 = vmul.f32 %v169, %v3099
    %v3233 = vmul.f32 %v170, %v3099
    %v3234 = vmul.f32 %v171, %v3103
    %v3235 = vmul.f32 %v172, %v3103
    %v3236 = vmul.f32 %v173, %v3107
    %v3237 = vmul.f32 %v174, %v3107
    %v3238 = vmul.f32 %v175, %v3111
    %v3239 = vmul.f32 %v176, %v3111
    %v3240 = vadd.f32 %v3112, %v3114
    %v3241 = vadd.f32 %v3240, %v3116
    %v3242 = vadd.f32 %v3241, %v3118
    %v3243 = vadd.f32 %v3242, %v3120
    %v3244 = vadd.f32 %v3243, %v3122
    %v3245 = vadd.f32 %v3244, %v3124
    %v3246 = vadd.f32 %v3245, %v3126
    %v3247 = vadd.f32 %v3246, %v3128
    %v3248 = vadd.f32 %v3247, %v3130
    %v3249 = vadd.f32 %v3248, %v3132
    %v3250 = vadd.f32 %v3249, %v3134
    %v3251 = vadd.f32 %v3250, %v3136
    %v3252 = vadd.f32 %v3251, %v3138
    %v3253 = vadd.f32 %v3252, %v3140
    %v3254 = vadd.f32 %v3253, %v3142
    %v3255 = vadd.f32 %v3254, %v3144
    %v3256 = vadd.f32 %v3255, %v3146
    %v3257 = vadd.f32 %v3256, %v3148
    %v3258 = vadd.f32 %v3257, %v3150
    %v3259 = vadd.f32 %v3258, %v3152
    %v3260 = vadd.f32 %v3259, %v3154
    %v3261 = vadd.f32 %v3260, %v3156
    %v3262 = vadd.f32 %v3261, %v3158
    %v3263 = vadd.f32 %v3262, %v3160
    %v3264 = vadd.f32 %v3263, %v3162
    %v3265 = vadd.f32 %v3264, %v3164
    %v3266 = vadd.f32 %v3265, %v3166
    %v3267 = vadd.f32 %v3266, %v3168
    %v3268 = vadd.f32 %v3267, %v3170
    %v3269 = vadd.f32 %v3268, %v3172
    %v3270 = vadd.f32 %v3269, %v3174
    %v3271 = vrot.slane %v3270, 4
    %v3272 = vadd.f32 %v3270, %v3271
    %v3273 = vrot.slane %v3272, 2
    %v3274 = vadd.f32 %v3272, %v3273
    %v3275 = vrot.slane %v3274, 1
    %v3276 = vadd.f32 %v3274, %v3275
    %v3277 = vadd.f32 %v3113, %v3115
    %v3278 = vadd.f32 %v3277, %v3117
    %v3279 = vadd.f32 %v3278, %v3119
    %v3280 = vadd.f32 %v3279, %v3121
    %v3281 = vadd.f32 %v3280, %v3123
    %v3282 = vadd.f32 %v3281, %v3125
    %v3283 = vadd.f32 %v3282, %v3127
    %v3284 = vadd.f32 %v3283, %v3129
    %v3285 = vadd.f32 %v3284, %v3131
    %v3286 = vadd.f32 %v3285, %v3133
    %v3287 = vadd.f32 %v3286, %v3135
    %v3288 = vadd.f32 %v3287, %v3137
    %v3289 = vadd.f32 %v3288, %v3139
    %v3290 = vadd.f32 %v3289, %v3141
    %v3291 = vadd.f32 %v3290, %v3143
    %v3292 = vadd.f32 %v3291, %v3145
    %v3293 = vadd.f32 %v3292, %v3147
    %v3294 = vadd.f32 %v3293, %v3149
    %v3295 = vadd.f32 %v3294, %v3151
    %v3296 = vadd.f32 %v3295, %v3153
    %v3297 = vadd.f32 %v3296, %v3155
    %v3298 = vadd.f32 %v3297, %v3157
    %v3299 = vadd.f32 %v3298, %v3159
    %v3300 = vadd.f32 %v3299, %v3161
    %v3301 = vadd.f32 %v3300, %v3163
    %v3302 = vadd.f32 %v3301, %v3165
    %v3303 = vadd.f32 %v3302, %v3167
    %v3304 = vadd.f32 %v3303, %v3169
    %v3305 = vadd.f32 %v3304, %v3171
    %v3306 = vadd.f32 %v3305, %v3173
    %v3307 = vadd.f32 %v3306, %v3175
    %v3308 = vrot.slane %v3307, 4
    %v3309 = vadd.f32 %v3307, %v3308
    %v3310 = vrot.slane %v3309, 2
    %v3311 = vadd.f32 %v3309, %v3310
    %v3312 = vrot.slane %v3311, 1
    %v3313 = vadd.f32 %v3311, %v3312
    %v3314 = vadd.f32 %v3176, %v3178
    %v3315 = vadd.f32 %v3314, %v3180
    %v3316 = vadd.f32 %v3315, %v3182
    %v3317 = vadd.f32 %v3316, %v3184
    %v3318 = vadd.f32 %v3317, %v3186
    %v3319 = vadd.f32 %v3318, %v3188
    %v3320 = vadd.f32 %v3319, %v3190
    %v3321 = vadd.f32 %v3320, %v3192
    %v3322 = vadd.f32 %v3321, %v3194
    %v3323 = vadd.f32 %v3322, %v3196
    %v3324 = vadd.f32 %v3323, %v3198
    %v3325 = vadd.f32 %v3324, %v3200
    %v3326 = vadd.f32 %v3325, %v3202
    %v3327 = vadd.f32 %v3326, %v3204
    %v3328 = vadd.f32 %v3327, %v3206
    %v3329 = vadd.f32 %v3328, %v3208
    %v3330 = vadd.f32 %v3329, %v3210
    %v3331 = vadd.f32 %v3330, %v3212
    %v3332 = vadd.f32 %v3331, %v3214
    %v3333 = vadd.f32 %v3332, %v3216
    %v3334 = vadd.f32 %v3333, %v3218
    %v3335 = vadd.f32 %v3334, %v3220
    %v3336 = vadd.f32 %v3335, %v3222
    %v3337 = vadd.f32 %v3336, %v3224
    %v3338 = vadd.f32 %v3337, %v3226
    %v3339 = vadd.f32 %v3338, %v3228
    %v3340 = vadd.f32 %v3339, %v3230
    %v3341 = vadd.f32 %v3340, %v3232
    %v3342 = vadd.f32 %v3341, %v3234
    %v3343 = vadd.f32 %v3342, %v3236
    %v3344 = vadd.f32 %v3343, %v3238
    %v3345 = vrot.slane %v3344, 4
    %v3346 = vadd.f32 %v3344, %v3345
    %v3347 = vrot.slane %v3346, 2
    %v3348 = vadd.f32 %v3346, %v3347
    %v3349 = vrot.slane %v3348, 1
    %v3350 = vadd.f32 %v3348, %v3349
    %v3351 = vadd.f32 %v3177, %v3179
    %v3352 = vadd.f32 %v3351, %v3181
    %v3353 = vadd.f32 %v3352, %v3183
    %v3354 = vadd.f32 %v3353, %v3185
    %v3355 = vadd.f32 %v3354, %v3187
    %v3356 = vadd.f32 %v3355, %v3189
    %v3357 = vadd.f32 %v3356, %v3191
    %v3358 = vadd.f32 %v3357, %v3193
    %v3359 = vadd.f32 %v3358, %v3195
    %v3360 = vadd.f32 %v3359, %v3197
    %v3361 = vadd.f32 %v3360, %v3199
    %v3362 = vadd.f32 %v3361, %v3201
    %v3363 = vadd.f32 %v3362, %v3203
    %v3364 = vadd.f32 %v3363, %v3205
    %v3365 = vadd.f32 %v3364, %v3207
    %v3366 = vadd.f32 %v3365, %v3209
    %v3367 = vadd.f32 %v3366, %v3211
    %v3368 = vadd.f32 %v3367, %v3213
    %v3369 = vadd.f32 %v3368, %v3215
    %v3370 = vadd.f32 %v3369, %v3217
    %v3371 = vadd.f32 %v3370, %v3219
    %v3372 = vadd.f32 %v3371, %v3221
    %v3373 = vadd.f32 %v3372, %v3223
    %v3374 = vadd.f32 %v3373, %v3225
    %v3375 = vadd.f32 %v3374, %v3227
    %v3376 = vadd.f32 %v3375, %v3229
    %v3377 = vadd.f32 %v3376, %v3231
    %v3378 = vadd.f32 %v3377, %v3233
    %v3379 = vadd.f32 %v3378, %v3235
    %v3380 = vadd.f32 %v3379, %v3237
    %v3381 = vadd.f32 %v3380, %v3239
    %v3382 = vrot.slane %v3381, 4
    %v3383 = vadd.f32 %v3381, %v3382
    %v3384 = vrot.slane %v3383, 2
    %v3385 = vadd.f32 %v3383, %v3384
    %v3386 = vrot.slane %v3385, 1
    %v3387 = vadd.f32 %v3385, %v3386
    %v3388 = vmul.f32 %v3276, 0.00390625
    %v3389 = vmul.f32 %v3313, 0.00390625
    %v3390 = vmul.f32 %v3350, 0.00390625
    %v3391 = vmul.f32 %v3387, 0.00390625
    %v3392 = vmax.f32 %v3112, %v3114
    %v3393 = vmax.f32 %v3392, %v3116
    %v3394 = vmax.f32 %v3393, %v3118
    %v3395 = vmax.f32 %v3394, %v3120
    %v3396 = vmax.f32 %v3395, %v3122
    %v3397 = vmax.f32 %v3396, %v3124
    %v3398 = vmax.f32 %v3397, %v3126
    %v3399 = vmax.f32 %v3398, %v3128
    %v3400 = vmax.f32 %v3399, %v3130
    %v3401 = vmax.f32 %v3400, %v3132
    %v3402 = vmax.f32 %v3401, %v3134
    %v3403 = vmax.f32 %v3402, %v3136
    %v3404 = vmax.f32 %v3403, %v3138
    %v3405 = vmax.f32 %v3404, %v3140
    %v3406 = vmax.f32 %v3405, %v3142
    %v3407 = vmax.f32 %v3406, %v3144
    %v3408 = vmax.f32 %v3407, %v3146
    %v3409 = vmax.f32 %v3408, %v3148
    %v3410 = vmax.f32 %v3409, %v3150
    %v3411 = vmax.f32 %v3410, %v3152
    %v3412 = vmax.f32 %v3411, %v3154
    %v3413 = vmax.f32 %v3412, %v3156
    %v3414 = vmax.f32 %v3413, %v3158
    %v3415 = vmax.f32 %v3414, %v3160
    %v3416 = vmax.f32 %v3415, %v3162
    %v3417 = vmax.f32 %v3416, %v3164
    %v3418 = vmax.f32 %v3417, %v3166
    %v3419 = vmax.f32 %v3418, %v3168
    %v3420 = vmax.f32 %v3419, %v3170
    %v3421 = vmax.f32 %v3420, %v3172
    %v3422 = vmax.f32 %v3421, %v3174
    %v3423 = vrot.slane %v3422, 4
    %v3424 = vmax.f32 %v3422, %v3423
    %v3425 = vrot.slane %v3424, 2
    %v3426 = vmax.f32 %v3424, %v3425
    %v3427 = vrot.slane %v3426, 1
    %v3428 = vmax.f32 %v3426, %v3427
    %v3429 = vmax.f32 %v3113, %v3115
    %v3430 = vmax.f32 %v3429, %v3117
    %v3431 = vmax.f32 %v3430, %v3119
    %v3432 = vmax.f32 %v3431, %v3121
    %v3433 = vmax.f32 %v3432, %v3123
    %v3434 = vmax.f32 %v3433, %v3125
    %v3435 = vmax.f32 %v3434, %v3127
    %v3436 = vmax.f32 %v3435, %v3129
    %v3437 = vmax.f32 %v3436, %v3131
    %v3438 = vmax.f32 %v3437, %v3133
    %v3439 = vmax.f32 %v3438, %v3135
    %v3440 = vmax.f32 %v3439, %v3137
    %v3441 = vmax.f32 %v3440, %v3139
    %v3442 = vmax.f32 %v3441, %v3141
    %v3443 = vmax.f32 %v3442, %v3143
    %v3444 = vmax.f32 %v3443, %v3145
    %v3445 = vmax.f32 %v3444, %v3147
    %v3446 = vmax.f32 %v3445, %v3149
    %v3447 = vmax.f32 %v3446, %v3151
    %v3448 = vmax.f32 %v3447, %v3153
    %v3449 = vmax.f32 %v3448, %v3155
    %v3450 = vmax.f32 %v3449, %v3157
    %v3451 = vmax.f32 %v3450, %v3159
    %v3452 = vmax.f32 %v3451, %v3161
    %v3453 = vmax.f32 %v3452, %v3163
    %v3454 = vmax.f32 %v3453, %v3165
    %v3455 = vmax.f32 %v3454, %v3167
    %v3456 = vmax.f32 %v3455, %v3169
    %v3457 = vmax.f32 %v3456, %v3171
    %v3458 = vmax.f32 %v3457, %v3173
    %v3459 = vmax.f32 %v3458, %v3175
    %v3460 = vrot.slane %v3459, 4
    %v3461 = vmax.f32 %v3459, %v3460
    %v3462 = vrot.slane %v3461, 2
    %v3463 = vmax.f32 %v3461, %v3462
    %v3464 = vrot.slane %v3463, 1
    %v3465 = vmax.f32 %v3463, %v3464
    %v3466 = vmax.f32 %v3176, %v3178
    %v3467 = vmax.f32 %v3466, %v3180
    %v3468 = vmax.f32 %v3467, %v3182
    %v3469 = vmax.f32 %v3468, %v3184
    %v3470 = vmax.f32 %v3469, %v3186
    %v3471 = vmax.f32 %v3470, %v3188
    %v3472 = vmax.f32 %v3471, %v3190
    %v3473 = vmax.f32 %v3472, %v3192
    %v3474 = vmax.f32 %v3473, %v3194
    %v3475 = vmax.f32 %v3474, %v3196
    %v3476 = vmax.f32 %v3475, %v3198
    %v3477 = vmax.f32 %v3476, %v3200
    %v3478 = vmax.f32 %v3477, %v3202
    %v3479 = vmax.f32 %v3478, %v3204
    %v3480 = vmax.f32 %v3479, %v3206
    %v3481 = vmax.f32 %v3480, %v3208
    %v3482 = vmax.f32 %v3481, %v3210
    %v3483 = vmax.f32 %v3482, %v3212
    %v3484 = vmax.f32 %v3483, %v3214
    %v3485 = vmax.f32 %v3484, %v3216
    %v3486 = vmax.f32 %v3485, %v3218
    %v3487 = vmax.f32 %v3486, %v3220
    %v3488 = vmax.f32 %v3487, %v3222
    %v3489 = vmax.f32 %v3488, %v3224
    %v3490 = vmax.f32 %v3489, %v3226
    %v3491 = vmax.f32 %v3490, %v3228
    %v3492 = vmax.f32 %v3491, %v3230
    %v3493 = vmax.f32 %v3492, %v3232
    %v3494 = vmax.f32 %v3493, %v3234
    %v3495 = vmax.f32 %v3494, %v3236
    %v3496 = vmax.f32 %v3495, %v3238
    %v3497 = vrot.slane %v3496, 4
    %v3498 = vmax.f32 %v3496, %v3497
    %v3499 = vrot.slane %v3498, 2
    %v3500 = vmax.f32 %v3498, %v3499
    %v3501 = vrot.slane %v3500, 1
    %v3502 = vmax.f32 %v3500, %v3501
    %v3503 = vmax.f32 %v3177, %v3179
    %v3504 = vmax.f32 %v3503, %v3181
    %v3505 = vmax.f32 %v3504, %v3183
    %v3506 = vmax.f32 %v3505, %v3185
    %v3507 = vmax.f32 %v3506, %v3187
    %v3508 = vmax.f32 %v3507, %v3189
    %v3509 = vmax.f32 %v3508, %v3191
    %v3510 = vmax.f32 %v3509, %v3193
    %v3511 = vmax.f32 %v3510, %v3195
    %v3512 = vmax.f32 %v3511, %v3197
    %v3513 = vmax.f32 %v3512, %v3199
    %v3514 = vmax.f32 %v3513, %v3201
    %v3515 = vmax.f32 %v3514, %v3203
    %v3516 = vmax.f32 %v3515, %v3205
    %v3517 = vmax.f32 %v3516, %v3207
    %v3518 = vmax.f32 %v3517, %v3209
    %v3519 = vmax.f32 %v3518, %v3211
    %v3520 = vmax.f32 %v3519, %v3213
    %v3521 = vmax.f32 %v3520, %v3215
    %v3522 = vmax.f32 %v3521, %v3217
    %v3523 = vmax.f32 %v3522, %v3219
    %v3524 = vmax.f32 %v3523, %v3221
    %v3525 = vmax.f32 %v3524, %v3223
    %v3526 = vmax.f32 %v3525, %v3225
    %v3527 = vmax.f32 %v3526, %v3227
    %v3528 = vmax.f32 %v3527, %v3229
    %v3529 = vmax.f32 %v3528, %v3231
    %v3530 = vmax.f32 %v3529, %v3233
    %v3531 = vmax.f32 %v3530, %v3235
    %v3532 = vmax.f32 %v3531, %v3237
    %v3533 = vmax.f32 %v3532, %v3239
    %v3534 = vrot.slane %v3533, 4
    %v3535 = vmax.f32 %v3533, %v3534
    %v3536 = vrot.slane %v3535, 2
    %v3537 = vmax.f32 %v3535, %v3536
    %v3538 = vrot.slane %v3537, 1
    %v3539 = vmax.f32 %v3537, %v3538
    %s3540 = sld [smem:[#allocation7]]
    %v3541 = vstv %s3540
    %v3542 = vmul.f32 %v3541, %v3388
    %v3543 = vmul.f32 %v3541, %v3389
    %v3544 = vmul.f32 %v3541, %v3390
    %v3545 = vmul.f32 %v3541, %v3391
    %s3546 = sld [smem:[#allocation7 + $0x1]]
    %v3547 = vstv %s3546
    %v3548 = vmul.f32 %v3547, %v3428
    %v3549 = vmul.f32 %v3547, %v3465
    %v3550 = vmul.f32 %v3547, %v3502
    %v3551 = vmul.f32 %v3547, %v3539
    %v3552 = vadd.f32 %v3542, %v3548
    %v3553 = vadd.f32 %v3543, %v3549
    %v3554 = vadd.f32 %v3544, %v3550
    %v3555 = vadd.f32 %v3545, %v3551
    %s3556 = sld [smem:[#allocation2]]
    %v3557 = vstv %s3556
    %v3558 = vadd.f32 %v3552, %v3557
    %v3559 = vadd.f32 %v3553, %v3557
    %v3560 = vadd.f32 %v3554, %v3557
    %v3561 = vadd.f32 %v3555, %v3557
    %v3562 = vxor.u32 %v3558, 2147483648
    %v3563 = vxor.u32 %v3559, 2147483648
    %v3564 = vxor.u32 %v3560, 2147483648
    %v3565 = vxor.u32 %v3561, 2147483648
    %v3566 = vmul.f32 %v3562, 1.442695
    %v3567 = vpow.pop %v3566
    %v3568 = vmul.f32 %v3563, 1.442695
    %v3569 = vpow.pop %v3568
    %v3570 = vmul.f32 %v3564, 1.442695
    %v3571 = vpow.pop %v3570
    %v3572 = vmul.f32 %v3565, 1.442695
    %v3573 = vpow.pop %v3572
    %v3574 = vadd.f32 %v3567, 1.0
    %v3575 = vadd.f32 %v3569, 1.0
    %v3576 = vadd.f32 %v3571, 1.0
    %v3577 = vadd.f32 %v3573, 1.0
    %v3578 = vrcp.pop %v3574
    %v3579 = vmul.f32 1.0, %v3578
    %v3580 = vrcp.pop %v3575
    %v3581 = vmul.f32 1.0, %v3580
    %v3582 = vrcp.pop %v3576
    %v3583 = vmul.f32 1.0, %v3582
    %v3584 = vrcp.pop %v3577
    %v3585 = vmul.f32 1.0, %v3584
    %v3586 = vmul.f32 %v3112, %v3579
    %v3587 = vmul.f32 %v3113, %v3581
    %v3588 = vmul.f32 %v3114, %v3579
    %v3589 = vmul.f32 %v3115, %v3581
    %v3590 = vmul.f32 %v3116, %v3579
    %v3591 = vmul.f32 %v3117, %v3581
    %v3592 = vmul.f32 %v3118, %v3579
    %v3593 = vmul.f32 %v3119, %v3581
    %v3594 = vmul.f32 %v3120, %v3579
    %v3595 = vmul.f32 %v3121, %v3581
    %v3596 = vmul.f32 %v3122, %v3579
    %v3597 = vmul.f32 %v3123, %v3581
    %v3598 = vmul.f32 %v3124, %v3579
    %v3599 = vmul.f32 %v3125, %v3581
    %v3600 = vmul.f32 %v3126, %v3579
    %v3601 = vmul.f32 %v3127, %v3581
    %v3602 = vmul.f32 %v3128, %v3579
    %v3603 = vmul.f32 %v3129, %v3581
    %v3604 = vmul.f32 %v3130, %v3579
    %v3605 = vmul.f32 %v3131, %v3581
    %v3606 = vmul.f32 %v3132, %v3579
    %v3607 = vmul.f32 %v3133, %v3581
    %v3608 = vmul.f32 %v3134, %v3579
    %v3609 = vmul.f32 %v3135, %v3581
    %v3610 = vmul.f32 %v3136, %v3579
    %v3611 = vmul.f32 %v3137, %v3581
    %v3612 = vmul.f32 %v3138, %v3579
    %v3613 = vmul.f32 %v3139, %v3581
    %v3614 = vmul.f32 %v3140, %v3579
    %v3615 = vmul.f32 %v3141, %v3581
    %v3616 = vmul.f32 %v3142, %v3579
    %v3617 = vmul.f32 %v3143, %v3581
    %v3618 = vmul.f32 %v3144, %v3579
    %v3619 = vmul.f32 %v3145, %v3581
    %v3620 = vmul.f32 %v3146, %v3579
    %v3621 = vmul.f32 %v3147, %v3581
    %v3622 = vmul.f32 %v3148, %v3579
    %v3623 = vmul.f32 %v3149, %v3581
    %v3624 = vmul.f32 %v3150, %v3579
    %v3625 = vmul.f32 %v3151, %v3581
    %v3626 = vmul.f32 %v3152, %v3579
    %v3627 = vmul.f32 %v3153, %v3581
    %v3628 = vmul.f32 %v3154, %v3579
    %v3629 = vmul.f32 %v3155, %v3581
    %v3630 = vmul.f32 %v3156, %v3579
    %v3631 = vmul.f32 %v3157, %v3581
    %v3632 = vmul.f32 %v3158, %v3579
    %v3633 = vmul.f32 %v3159, %v3581
    %v3634 = vmul.f32 %v3160, %v3579
    %v3635 = vmul.f32 %v3161, %v3581
    %v3636 = vmul.f32 %v3162, %v3579
    %v3637 = vmul.f32 %v3163, %v3581
    %v3638 = vmul.f32 %v3164, %v3579
    %v3639 = vmul.f32 %v3165, %v3581
    %v3640 = vmul.f32 %v3166, %v3579
    %v3641 = vmul.f32 %v3167, %v3581
    %v3642 = vmul.f32 %v3168, %v3579
    %v3643 = vmul.f32 %v3169, %v3581
    %v3644 = vmul.f32 %v3170, %v3579
    %v3645 = vmul.f32 %v3171, %v3581
    %v3646 = vmul.f32 %v3172, %v3579
    %v3647 = vmul.f32 %v3173, %v3581
    %v3648 = vmul.f32 %v3174, %v3579
    %v3649 = vmul.f32 %v3175, %v3581
    %v3650 = vmul.f32 %v3176, %v3583
    %v3651 = vmul.f32 %v3177, %v3585
    %v3652 = vmul.f32 %v3178, %v3583
    %v3653 = vmul.f32 %v3179, %v3585
    %v3654 = vmul.f32 %v3180, %v3583
    %v3655 = vmul.f32 %v3181, %v3585
    %v3656 = vmul.f32 %v3182, %v3583
    %v3657 = vmul.f32 %v3183, %v3585
    %v3658 = vmul.f32 %v3184, %v3583
    %v3659 = vmul.f32 %v3185, %v3585
    %v3660 = vmul.f32 %v3186, %v3583
    %v3661 = vmul.f32 %v3187, %v3585
    %v3662 = vmul.f32 %v3188, %v3583
    %v3663 = vmul.f32 %v3189, %v3585
    %v3664 = vmul.f32 %v3190, %v3583
    %v3665 = vmul.f32 %v3191, %v3585
    %v3666 = vmul.f32 %v3192, %v3583
    %v3667 = vmul.f32 %v3193, %v3585
    %v3668 = vmul.f32 %v3194, %v3583
    %v3669 = vmul.f32 %v3195, %v3585
    %v3670 = vmul.f32 %v3196, %v3583
    %v3671 = vmul.f32 %v3197, %v3585
    %v3672 = vmul.f32 %v3198, %v3583
    %v3673 = vmul.f32 %v3199, %v3585
    %v3674 = vmul.f32 %v3200, %v3583
    %v3675 = vmul.f32 %v3201, %v3585
    %v3676 = vmul.f32 %v3202, %v3583
    %v3677 = vmul.f32 %v3203, %v3585
    %v3678 = vmul.f32 %v3204, %v3583
    %v3679 = vmul.f32 %v3205, %v3585
    %v3680 = vmul.f32 %v3206, %v3583
    %v3681 = vmul.f32 %v3207, %v3585
    %v3682 = vmul.f32 %v3208, %v3583
    %v3683 = vmul.f32 %v3209, %v3585
    %v3684 = vmul.f32 %v3210, %v3583
    %v3685 = vmul.f32 %v3211, %v3585
    %v3686 = vmul.f32 %v3212, %v3583
    %v3687 = vmul.f32 %v3213, %v3585
    %v3688 = vmul.f32 %v3214, %v3583
    %v3689 = vmul.f32 %v3215, %v3585
    %v3690 = vmul.f32 %v3216, %v3583
    %v3691 = vmul.f32 %v3217, %v3585
    %v3692 = vmul.f32 %v3218, %v3583
    %v3693 = vmul.f32 %v3219, %v3585
    %v3694 = vmul.f32 %v3220, %v3583
    %v3695 = vmul.f32 %v3221, %v3585
    %v3696 = vmul.f32 %v3222, %v3583
    %v3697 = vmul.f32 %v3223, %v3585
    %v3698 = vmul.f32 %v3224, %v3583
    %v3699 = vmul.f32 %v3225, %v3585
    %v3700 = vmul.f32 %v3226, %v3583
    %v3701 = vmul.f32 %v3227, %v3585
    %v3702 = vmul.f32 %v3228, %v3583
    %v3703 = vmul.f32 %v3229, %v3585
    %v3704 = vmul.f32 %v3230, %v3583
    %v3705 = vmul.f32 %v3231, %v3585
    %v3706 = vmul.f32 %v3232, %v3583
    %v3707 = vmul.f32 %v3233, %v3585
    %v3708 = vmul.f32 %v3234, %v3583
    %v3709 = vmul.f32 %v3235, %v3585
    %v3710 = vmul.f32 %v3236, %v3583
    %v3711 = vmul.f32 %v3237, %v3585
    %v3712 = vmul.f32 %v3238, %v3583
    %v3713 = vmul.f32 %v3239, %v3585
    %v3714 = vadd.f32 %v49, %v3586
    %v3715 = vadd.f32 %v50, %v3587
    %v3716 = vadd.f32 %v51, %v3588
    %v3717 = vadd.f32 %v52, %v3589
    %v3718 = vadd.f32 %v53, %v3590
    %v3719 = vadd.f32 %v54, %v3591
    %v3720 = vadd.f32 %v55, %v3592
    %v3721 = vadd.f32 %v56, %v3593
    %v3722 = vadd.f32 %v57, %v3594
    %v3723 = vadd.f32 %v58, %v3595
    %v3724 = vadd.f32 %v59, %v3596
    %v3725 = vadd.f32 %v60, %v3597
    %v3726 = vadd.f32 %v61, %v3598
    %v3727 = vadd.f32 %v62, %v3599
    %v3728 = vadd.f32 %v63, %v3600
    %v3729 = vadd.f32 %v64, %v3601
    %v3730 = vadd.f32 %v65, %v3602
    %v3731 = vadd.f32 %v66, %v3603
    %v3732 = vadd.f32 %v67, %v3604
    %v3733 = vadd.f32 %v68, %v3605
    %v3734 = vadd.f32 %v69, %v3606
    %v3735 = vadd.f32 %v70, %v3607
    %v3736 = vadd.f32 %v71, %v3608
    %v3737 = vadd.f32 %v72, %v3609
    %v3738 = vadd.f32 %v73, %v3610
    %v3739 = vadd.f32 %v74, %v3611
    %v3740 = vadd.f32 %v75, %v3612
    %v3741 = vadd.f32 %v76, %v3613
    %v3742 = vadd.f32 %v77, %v3614
    %v3743 = vadd.f32 %v78, %v3615
    %v3744 = vadd.f32 %v79, %v3616
    %v3745 = vadd.f32 %v80, %v3617
    %v3746 = vadd.f32 %v81, %v3618
    %v3747 = vadd.f32 %v82, %v3619
    %v3748 = vadd.f32 %v83, %v3620
    %v3749 = vadd.f32 %v84, %v3621
    %v3750 = vadd.f32 %v85, %v3622
    %v3751 = vadd.f32 %v86, %v3623
    %v3752 = vadd.f32 %v87, %v3624
    %v3753 = vadd.f32 %v88, %v3625
    %v3754 = vadd.f32 %v89, %v3626
    %v3755 = vadd.f32 %v90, %v3627
    %v3756 = vadd.f32 %v91, %v3628
    %v3757 = vadd.f32 %v92, %v3629
    %v3758 = vadd.f32 %v93, %v3630
    %v3759 = vadd.f32 %v94, %v3631
    %v3760 = vadd.f32 %v95, %v3632
    %v3761 = vadd.f32 %v96, %v3633
    %v3762 = vadd.f32 %v97, %v3634
    %v3763 = vadd.f32 %v98, %v3635
    %v3764 = vadd.f32 %v99, %v3636
    %v3765 = vadd.f32 %v100, %v3637
    %v3766 = vadd.f32 %v101, %v3638
    %v3767 = vadd.f32 %v102, %v3639
    %v3768 = vadd.f32 %v103, %v3640
    %v3769 = vadd.f32 %v104, %v3641
    %v3770 = vadd.f32 %v105, %v3642
    %v3771 = vadd.f32 %v106, %v3643
    %v3772 = vadd.f32 %v107, %v3644
    %v3773 = vadd.f32 %v108, %v3645
    %v3774 = vadd.f32 %v109, %v3646
    %v3775 = vadd.f32 %v110, %v3647
    %v3776 = vadd.f32 %v111, %v3648
    %v3777 = vadd.f32 %v112, %v3649
    %v3778 = vadd.f32 %v113, %v3650
    %v3779 = vadd.f32 %v114, %v3651
    %v3780 = vadd.f32 %v115, %v3652
    %v3781 = vadd.f32 %v116, %v3653
    %v3782 = vadd.f32 %v117, %v3654
    %v3783 = vadd.f32 %v118, %v3655
    %v3784 = vadd.f32 %v119, %v3656
    %v3785 = vadd.f32 %v120, %v3657
    %v3786 = vadd.f32 %v121, %v3658
    %v3787 = vadd.f32 %v122, %v3659
    %v3788 = vadd.f32 %v123, %v3660
    %v3789 = vadd.f32 %v124, %v3661
    %v3790 = vadd.f32 %v125, %v3662
    %v3791 = vadd.f32 %v126, %v3663
    %v3792 = vadd.f32 %v127, %v3664
    %v3793 = vadd.f32 %v128, %v3665
    %v3794 = vadd.f32 %v129, %v3666
    %v3795 = vadd.f32 %v130, %v3667
    %v3796 = vadd.f32 %v131, %v3668
    %v3797 = vadd.f32 %v132, %v3669
    %v3798 = vadd.f32 %v133, %v3670
    %v3799 = vadd.f32 %v134, %v3671
    %v3800 = vadd.f32 %v135, %v3672
    %v3801 = vadd.f32 %v136, %v3673
    %v3802 = vadd.f32 %v137, %v3674
    %v3803 = vadd.f32 %v138, %v3675
    %v3804 = vadd.f32 %v139, %v3676
    %v3805 = vadd.f32 %v140, %v3677
    %v3806 = vadd.f32 %v141, %v3678
    %v3807 = vadd.f32 %v142, %v3679
    %v3808 = vadd.f32 %v143, %v3680
    %v3809 = vadd.f32 %v144, %v3681
    %v3810 = vadd.f32 %v145, %v3682
    %v3811 = vadd.f32 %v146, %v3683
    %v3812 = vadd.f32 %v147, %v3684
    %v3813 = vadd.f32 %v148, %v3685
    %v3814 = vadd.f32 %v149, %v3686
    %v3815 = vadd.f32 %v150, %v3687
    %v3816 = vadd.f32 %v151, %v3688
    %v3817 = vadd.f32 %v152, %v3689
    %v3818 = vadd.f32 %v153, %v3690
    %v3819 = vadd.f32 %v154, %v3691
    %v3820 = vadd.f32 %v155, %v3692
    %v3821 = vadd.f32 %v156, %v3693
    %v3822 = vadd.f32 %v157, %v3694
    %v3823 = vadd.f32 %v158, %v3695
    %v3824 = vadd.f32 %v159, %v3696
    %v3825 = vadd.f32 %v160, %v3697
    %v3826 = vadd.f32 %v161, %v3698
    %v3827 = vadd.f32 %v162, %v3699
    %v3828 = vadd.f32 %v163, %v3700
    %v3829 = vadd.f32 %v164, %v3701
    %v3830 = vadd.f32 %v165, %v3702
    %v3831 = vadd.f32 %v166, %v3703
    %v3832 = vadd.f32 %v167, %v3704
    %v3833 = vadd.f32 %v168, %v3705
    %v3834 = vadd.f32 %v169, %v3706
    %v3835 = vadd.f32 %v170, %v3707
    %v3836 = vadd.f32 %v171, %v3708
    %v3837 = vadd.f32 %v172, %v3709
    %v3838 = vadd.f32 %v173, %v3710
    %v3839 = vadd.f32 %v174, %v3711
    %v3840 = vadd.f32 %v175, %v3712
    %v3841 = vadd.f32 %v176, %v3713
    %v3842 = vmax.f32 %v3714, 0.0
    %v3843 = vmax.f32 %v3715, 0.0
    %v3844 = vmax.f32 %v3716, 0.0
    %v3845 = vmax.f32 %v3717, 0.0
    %v3846 = vmax.f32 %v3718, 0.0
    %v3847 = vmax.f32 %v3719, 0.0
    %v3848 = vmax.f32 %v3720, 0.0
    %v3849 = vmax.f32 %v3721, 0.0
    %v3850 = vmax.f32 %v3722, 0.0
    %v3851 = vmax.f32 %v3723, 0.0
    %v3852 = vmax.f32 %v3724, 0.0
    %v3853 = vmax.f32 %v3725, 0.0
    %v3854 = vmax.f32 %v3726, 0.0
    %v3855 = vmax.f32 %v3727, 0.0
    %v3856 = vmax.f32 %v3728, 0.0
    %v3857 = vmax.f32 %v3729, 0.0
    %v3858 = vmax.f32 %v3730, 0.0
    %v3859 = vmax.f32 %v3731, 0.0
    %v3860 = vmax.f32 %v3732, 0.0
    %v3861 = vmax.f32 %v3733, 0.0
    %v3862 = vmax.f32 %v3734, 0.0
    %v3863 = vmax.f32 %v3735, 0.0
    %v3864 = vmax.f32 %v3736, 0.0
    %v3865 = vmax.f32 %v3737, 0.0
    %v3866 = vmax.f32 %v3738, 0.0
    %v3867 = vmax.f32 %v3739, 0.0
    %v3868 = vmax.f32 %v3740, 0.0
    %v3869 = vmax.f32 %v3741, 0.0
    %v3870 = vmax.f32 %v3742, 0.0
    %v3871 = vmax.f32 %v3743, 0.0
    %v3872 = vmax.f32 %v3744, 0.0
    %v3873 = vmax.f32 %v3745, 0.0
    %v3874 = vmax.f32 %v3746, 0.0
    %v3875 = vmax.f32 %v3747, 0.0
    %v3876 = vmax.f32 %v3748, 0.0
    %v3877 = vmax.f32 %v3749, 0.0
    %v3878 = vmax.f32 %v3750, 0.0
    %v3879 = vmax.f32 %v3751, 0.0
    %v3880 = vmax.f32 %v3752, 0.0
    %v3881 = vmax.f32 %v3753, 0.0
    %v3882 = vmax.f32 %v3754, 0.0
    %v3883 = vmax.f32 %v3755, 0.0
    %v3884 = vmax.f32 %v3756, 0.0
    %v3885 = vmax.f32 %v3757, 0.0
    %v3886 = vmax.f32 %v3758, 0.0
    %v3887 = vmax.f32 %v3759, 0.0
    %v3888 = vmax.f32 %v3760, 0.0
    %v3889 = vmax.f32 %v3761, 0.0
    %v3890 = vmax.f32 %v3762, 0.0
    %v3891 = vmax.f32 %v3763, 0.0
    %v3892 = vmax.f32 %v3764, 0.0
    %v3893 = vmax.f32 %v3765, 0.0
    %v3894 = vmax.f32 %v3766, 0.0
    %v3895 = vmax.f32 %v3767, 0.0
    %v3896 = vmax.f32 %v3768, 0.0
    %v3897 = vmax.f32 %v3769, 0.0
    %v3898 = vmax.f32 %v3770, 0.0
    %v3899 = vmax.f32 %v3771, 0.0
    %v3900 = vmax.f32 %v3772, 0.0
    %v3901 = vmax.f32 %v3773, 0.0
    %v3902 = vmax.f32 %v3774, 0.0
    %v3903 = vmax.f32 %v3775, 0.0
    %v3904 = vmax.f32 %v3776, 0.0
    %v3905 = vmax.f32 %v3777, 0.0
    %v3906 = vmax.f32 %v3778, 0.0
    %v3907 = vmax.f32 %v3779, 0.0
    %v3908 = vmax.f32 %v3780, 0.0
    %v3909 = vmax.f32 %v3781, 0.0
    %v3910 = vmax.f32 %v3782, 0.0
    %v3911 = vmax.f32 %v3783, 0.0
    %v3912 = vmax.f32 %v3784, 0.0
    %v3913 = vmax.f32 %v3785, 0.0
    %v3914 = vmax.f32 %v3786, 0.0
    %v3915 = vmax.f32 %v3787, 0.0
    %v3916 = vmax.f32 %v3788, 0.0
    %v3917 = vmax.f32 %v3789, 0.0
    %v3918 = vmax.f32 %v3790, 0.0
    %v3919 = vmax.f32 %v3791, 0.0
    %v3920 = vmax.f32 %v3792, 0.0
    %v3921 = vmax.f32 %v3793, 0.0
    %v3922 = vmax.f32 %v3794, 0.0
    %v3923 = vmax.f32 %v3795, 0.0
    %v3924 = vmax.f32 %v3796, 0.0
    %v3925 = vmax.f32 %v3797, 0.0
    %v3926 = vmax.f32 %v3798, 0.0
    %v3927 = vmax.f32 %v3799, 0.0
    %v3928 = vmax.f32 %v3800, 0.0
    %v3929 = vmax.f32 %v3801, 0.0
    %v3930 = vmax.f32 %v3802, 0.0
    %v3931 = vmax.f32 %v3803, 0.0
    %v3932 = vmax.f32 %v3804, 0.0
    %v3933 = vmax.f32 %v3805, 0.0
    %v3934 = vmax.f32 %v3806, 0.0
    %v3935 = vmax.f32 %v3807, 0.0
    %v3936 = vmax.f32 %v3808, 0.0
    %v3937 = vmax.f32 %v3809, 0.0
    %v3938 = vmax.f32 %v3810, 0.0
    %v3939 = vmax.f32 %v3811, 0.0
    %v3940 = vmax.f32 %v3812, 0.0
    %v3941 = vmax.f32 %v3813, 0.0
    %v3942 = vmax.f32 %v3814, 0.0
    %v3943 = vmax.f32 %v3815, 0.0
    %v3944 = vmax.f32 %v3816, 0.0
    %v3945 = vmax.f32 %v3817, 0.0
    %v3946 = vmax.f32 %v3818, 0.0
    %v3947 = vmax.f32 %v3819, 0.0
    %v3948 = vmax.f32 %v3820, 0.0
    %v3949 = vmax.f32 %v3821, 0.0
    %v3950 = vmax.f32 %v3822, 0.0
    %v3951 = vmax.f32 %v3823, 0.0
    %v3952 = vmax.f32 %v3824, 0.0
    %v3953 = vmax.f32 %v3825, 0.0
    %v3954 = vmax.f32 %v3826, 0.0
    %v3955 = vmax.f32 %v3827, 0.0
    %v3956 = vmax.f32 %v3828, 0.0
    %v3957 = vmax.f32 %v3829, 0.0
    %v3958 = vmax.f32 %v3830, 0.0
    %v3959 = vmax.f32 %v3831, 0.0
    %v3960 = vmax.f32 %v3832, 0.0
    %v3961 = vmax.f32 %v3833, 0.0
    %v3962 = vmax.f32 %v3834, 0.0
    %v3963 = vmax.f32 %v3835, 0.0
    %v3964 = vmax.f32 %v3836, 0.0
    %v3965 = vmax.f32 %v3837, 0.0
    %v3966 = vmax.f32 %v3838, 0.0
    %v3967 = vmax.f32 %v3839, 0.0
    %v3968 = vmax.f32 %v3840, 0.0
    %v3969 = vmax.f32 %v3841, 0.0
    %3970 = vst [vmem:[#allocation8] sm:$0xff] %v3842
    %3971 = vst [vmem:[#allocation8 + $0x8] sm:$0xff] %v3843
    %3972 = vst [vmem:[#allocation8 + $0x10] sm:$0xff] %v3844
    %3973 = vst [vmem:[#allocation8 + $0x18] sm:$0xff] %v3845
    %3974 = vst [vmem:[#allocation8 + $0x20] sm:$0xff] %v3846
    %3975 = vst [vmem:[#allocation8 + $0x28] sm:$0xff] %v3847
    %3976 = vst [vmem:[#allocation8 + $0x30] sm:$0xff] %v3848
    %3977 = vst [vmem:[#allocation8 + $0x38] sm:$0xff] %v3849
    %3978 = vst [vmem:[#allocation8 + $0x40] sm:$0xff] %v3850
    %3979 = vst [vmem:[#allocation8 + $0x48] sm:$0xff] %v3851
    %3980 = vst [vmem:[#allocation8 + $0x50] sm:$0xff] %v3852
    %3981 = vst [vmem:[#allocation8 + $0x58] sm:$0xff] %v3853
    %3982 = vst [vmem:[#allocation8 + $0x60] sm:$0xff] %v3854
    %3983 = vst [vmem:[#allocation8 + $0x68] sm:$0xff] %v3855
    %3984 = vst [vmem:[#allocation8 + $0x70] sm:$0xff] %v3856
    %3985 = vst [vmem:[#allocation8 + $0x78] sm:$0xff] %v3857
    %3986 = vst [vmem:[#allocation8 + $0x80] sm:$0xff] %v3858
    %3987 = vst [vmem:[#allocation8 + $0x88] sm:$0xff] %v3859
    %3988 = vst [vmem:[#allocation8 + $0x90] sm:$0xff] %v3860
    %3989 = vst [vmem:[#allocation8 + $0x98] sm:$0xff] %v3861
    %3990 = vst [vmem:[#allocation8 + $0xa0] sm:$0xff] %v3862
    %3991 = vst [vmem:[#allocation8 + $0xa8] sm:$0xff] %v3863
    %3992 = vst [vmem:[#allocation8 + $0xb0] sm:$0xff] %v3864
    %3993 = vst [vmem:[#allocation8 + $0xb8] sm:$0xff] %v3865
    %3994 = vst [vmem:[#allocation8 + $0xc0] sm:$0xff] %v3866
    %3995 = vst [vmem:[#allocation8 + $0xc8] sm:$0xff] %v3867
    %3996 = vst [vmem:[#allocation8 + $0xd0] sm:$0xff] %v3868
    %3997 = vst [vmem:[#allocation8 + $0xd8] sm:$0xff] %v3869
    %3998 = vst [vmem:[#allocation8 + $0xe0] sm:$0xff] %v3870
    %3999 = vst [vmem:[#allocation8 + $0xe8] sm:$0xff] %v3871
    %4000 = vst [vmem:[#allocation8 + $0xf0] sm:$0xff] %v3872
    %4001 = vst [vmem:[#allocation8 + $0xf8] sm:$0xff] %v3873
    %4002 = vst [vmem:[#allocation8 + $0x100] sm:$0xff] %v3874
    %4003 = vst [vmem:[#allocation8 + $0x108] sm:$0xff] %v3875
    %4004 = vst [vmem:[#allocation8 + $0x110] sm:$0xff] %v3876
    %4005 = vst [vmem:[#allocation8 + $0x118] sm:$0xff] %v3877
    %4006 = vst [vmem:[#allocation8 + $0x120] sm:$0xff] %v3878
    %4007 = vst [vmem:[#allocation8 + $0x128] sm:$0xff] %v3879
    %4008 = vst [vmem:[#allocation8 + $0x130] sm:$0xff] %v3880
    %4009 = vst [vmem:[#allocation8 + $0x138] sm:$0xff] %v3881
    %4010 = vst [vmem:[#allocation8 + $0x140] sm:$0xff] %v3882
    %4011 = vst [vmem:[#allocation8 + $0x148] sm:$0xff] %v3883
    %4012 = vst [vmem:[#allocation8 + $0x150] sm:$0xff] %v3884
    %4013 = vst [vmem:[#allocation8 + $0x158] sm:$0xff] %v3885
    %4014 = vst [vmem:[#allocation8 + $0x160] sm:$0xff] %v3886
    %4015 = vst [vmem:[#allocation8 + $0x168] sm:$0xff] %v3887
    %4016 = vst [vmem:[#allocation8 + $0x170] sm:$0xff] %v3888
    %4017 = vst [vmem:[#allocation8 + $0x178] sm:$0xff] %v3889
    %4018 = vst [vmem:[#allocation8 + $0x180] sm:$0xff] %v3890
    %4019 = vst [vmem:[#allocation8 + $0x188] sm:$0xff] %v3891
    %4020 = vst [vmem:[#allocation8 + $0x190] sm:$0xff] %v3892
    %4021 = vst [vmem:[#allocation8 + $0x198] sm:$0xff] %v3893
    %4022 = vst [vmem:[#allocation8 + $0x1a0] sm:$0xff] %v3894
    %4023 = vst [vmem:[#allocation8 + $0x1a8] sm:$0xff] %v3895
    %4024 = vst [vmem:[#allocation8 + $0x1b0] sm:$0xff] %v3896
    %4025 = vst [vmem:[#allocation8 + $0x1b8] sm:$0xff] %v3897
    %4026 = vst [vmem:[#allocation8 + $0x1c0] sm:$0xff] %v3898
    %4027 = vst [vmem:[#allocation8 + $0x1c8] sm:$0xff] %v3899
    %4028 = vst [vmem:[#allocation8 + $0x1d0] sm:$0xff] %v3900
    %4029 = vst [vmem:[#allocation8 + $0x1d8] sm:$0xff] %v3901
    %4030 = vst [vmem:[#allocation8 + $0x1e0] sm:$0xff] %v3902
    %4031 = vst [vmem:[#allocation8 + $0x1e8] sm:$0xff] %v3903
    %4032 = vst [vmem:[#allocation8 + $0x1f0] sm:$0xff] %v3904
    %4033 = vst [vmem:[#allocation8 + $0x1f8] sm:$0xff] %v3905
    %4034 = vst [vmem:[#allocation8 + $0x200] sm:$0xff] %v3906
    %4035 = vst [vmem:[#allocation8 + $0x208] sm:$0xff] %v3907
    %4036 = vst [vmem:[#allocation8 + $0x210] sm:$0xff] %v3908
    %4037 = vst [vmem:[#allocation8 + $0x218] sm:$0xff] %v3909
    %4038 = vst [vmem:[#allocation8 + $0x220] sm:$0xff] %v3910
    %4039 = vst [vmem:[#allocation8 + $0x228] sm:$0xff] %v3911
    %4040 = vst [vmem:[#allocation8 + $0x230] sm:$0xff] %v3912
    %4041 = vst [vmem:[#allocation8 + $0x238] sm:$0xff] %v3913
    %4042 = vst [vmem:[#allocation8 + $0x240] sm:$0xff] %v3914
    %4043 = vst [vmem:[#allocation8 + $0x248] sm:$0xff] %v3915
    %4044 = vst [vmem:[#allocation8 + $0x250] sm:$0xff] %v3916
    %4045 = vst [vmem:[#allocation8 + $0x258] sm:$0xff] %v3917
    %4046 = vst [vmem:[#allocation8 + $0x260] sm:$0xff] %v3918
    %4047 = vst [vmem:[#allocation8 + $0x268] sm:$0xff] %v3919
    %4048 = vst [vmem:[#allocation8 + $0x270] sm:$0xff] %v3920
    %4049 = vst [vmem:[#allocation8 + $0x278] sm:$0xff] %v3921
    %4050 = vst [vmem:[#allocation8 + $0x280] sm:$0xff] %v3922
    %4051 = vst [vmem:[#allocation8 + $0x288] sm:$0xff] %v3923
    %4052 = vst [vmem:[#allocation8 + $0x290] sm:$0xff] %v3924
    %4053 = vst [vmem:[#allocation8 + $0x298] sm:$0xff] %v3925
    %4054 = vst [vmem:[#allocation8 + $0x2a0] sm:$0xff] %v3926
    %4055 = vst [vmem:[#allocation8 + $0x2a8] sm:$0xff] %v3927
    %4056 = vst [vmem:[#allocation8 + $0x2b0] sm:$0xff] %v3928
    %4057 = vst [vmem:[#allocation8 + $0x2b8] sm:$0xff] %v3929
    %4058 = vst [vmem:[#allocation8 + $0x2c0] sm:$0xff] %v3930
    %4059 = vst [vmem:[#allocation8 + $0x2c8] sm:$0xff] %v3931
    %4060 = vst [vmem:[#allocation8 + $0x2d0] sm:$0xff] %v3932
    %4061 = vst [vmem:[#allocation8 + $0x2d8] sm:$0xff] %v3933
    %4062 = vst [vmem:[#allocation8 + $0x2e0] sm:$0xff] %v3934
    %4063 = vst [vmem:[#allocation8 + $0x2e8] sm:$0xff] %v3935
    %4064 = vst [vmem:[#allocation8 + $0x2f0] sm:$0xff] %v3936
    %4065 = vst [vmem:[#allocation8 + $0x2f8] sm:$0xff] %v3937
    %4066 = vst [vmem:[#allocation8 + $0x300] sm:$0xff] %v3938
    %4067 = vst [vmem:[#allocation8 + $0x308] sm:$0xff] %v3939
    %4068 = vst [vmem:[#allocation8 + $0x310] sm:$0xff] %v3940
    %4069 = vst [vmem:[#allocation8 + $0x318] sm:$0xff] %v3941
    %4070 = vst [vmem:[#allocation8 + $0x320] sm:$0xff] %v3942
    %4071 = vst [vmem:[#allocation8 + $0x328] sm:$0xff] %v3943
    %4072 = vst [vmem:[#allocation8 + $0x330] sm:$0xff] %v3944
    %4073 = vst [vmem:[#allocation8 + $0x338] sm:$0xff] %v3945
    %4074 = vst [vmem:[#allocation8 + $0x340] sm:$0xff] %v3946
    %4075 = vst [vmem:[#allocation8 + $0x348] sm:$0xff] %v3947
    %4076 = vst [vmem:[#allocation8 + $0x350] sm:$0xff] %v3948
    %4077 = vst [vmem:[#allocation8 + $0x358] sm:$0xff] %v3949
    %4078 = vst [vmem:[#allocation8 + $0x360] sm:$0xff] %v3950
    %4079 = vst [vmem:[#allocation8 + $0x368] sm:$0xff] %v3951
    %4080 = vst [vmem:[#allocation8 + $0x370] sm:$0xff] %v3952
    %4081 = vst [vmem:[#allocation8 + $0x378] sm:$0xff] %v3953
    %4082 = vst [vmem:[#allocation8 + $0x380] sm:$0xff] %v3954
    %4083 = vst [vmem:[#allocation8 + $0x388] sm:$0xff] %v3955
    %4084 = vst [vmem:[#allocation8 + $0x390] sm:$0xff] %v3956
    %4085 = vst [vmem:[#allocation8 + $0x398] sm:$0xff] %v3957
    %4086 = vst [vmem:[#allocation8 + $0x3a0] sm:$0xff] %v3958
    %4087 = vst [vmem:[#allocation8 + $0x3a8] sm:$0xff] %v3959
    %4088 = vst [vmem:[#allocation8 + $0x3b0] sm:$0xff] %v3960
    %4089 = vst [vmem:[#allocation8 + $0x3b8] sm:$0xff] %v3961
    %4090 = vst [vmem:[#allocation8 + $0x3c0] sm:$0xff] %v3962
    %4091 = vst [vmem:[#allocation8 + $0x3c8] sm:$0xff] %v3963
    %4092 = vst [vmem:[#allocation8 + $0x3d0] sm:$0xff] %v3964
    %4093 = vst [vmem:[#allocation8 + $0x3d8] sm:$0xff] %v3965
    %4094 = vst [vmem:[#allocation8 + $0x3e0] sm:$0xff] %v3966
    %4095 = vst [vmem:[#allocation8 + $0x3e8] sm:$0xff] %v3967
    %4096 = vst [vmem:[#allocation8 + $0x3f0] sm:$0xff] %v3968
    %4097 = vst [vmem:[#allocation8 + $0x3f8] sm:$0xff] %v3969
    // Predicated region
    $region30: #{tpu_custom_call.1} parent=1 // pred_check
      _
    $region31: #{tpu_custom_call.1} parent=1 // pred_check_branch
      %4099 = sbr.rel (0) target = $region33
    $region32: #{tpu_custom_call.1} parent=1 // pred_region
      %s4101 = ssub.s32 16384, 16384
      %4102 = vsyncadd [#allocation5], %s4101
      %s4103 = sshll.u32 [#allocation8], 4
      %s4104 = int_to_ptr.vmem [resolvable:$true] %s4103
      %4109 = dma.vmem_to_hbm [thread:$0]  %s4104, 16384, %s5, [#allocation5], 256, 256, 16
    $region33: #{tpu_custom_call.1} parent=1 // pred_fallthru
      _
    // Predicated region
    $region34: #{tpu_custom_call.1} parent=1 // pred_check
      _
    $region35: #{tpu_custom_call.1} parent=1 // pred_check_branch
      %4111 = sbr.rel (0) target = $region37
    $region36: #{tpu_custom_call.1} parent=1 // pred_region
      %4112 = dma.done [#allocation5], 16384
    $region37: #{tpu_custom_call.1} parent=1 // pred_fallthru
      _
    %4113 = vsyncpa [#allocation4], 1
    %4114 = vsyncpa [#allocation5], 1
    %4115 = vsyncpa [#allocation6], 1

</llo_original>
